<compile_context>
chip_gen: v7x
topology: tpu7x:2x2x1
jax: 0.10.0
libtpu: 0.0.40
codegen_flags: <defaults>
</compile_context>

<pallas_src>
from functools import partial

import jax
import jax.numpy as jnp
from jax.experimental import pallas as pl
from jax.experimental.pallas import tpu as pltpu


# ----------------------------------------------------------------------------
# Fused MBConv kernel (one batch element per grid step)
# ----------------------------------------------------------------------------
def _mbconv_fused_kernel(x2_ref, m_ref, w1_ref, b1_ref, wd_ref, bd_ref,
                         wd1_ref, bd1_ref, w3_ref, b3_ref, o_ref,
                         eb_ref, pad_ref, *, K, s, p, A, B, Ho, Wo, layers):
    """Fused expand(1x1)+ReLU -> dwise(KxK,stride s)+ReLU ->
    (layers-1) x dwise1(KxK,stride 1)+ReLU -> project(1x1).

    x2_ref : (1, s*s*A*B, Cin)   space-to-batch (phase) layout of the padded input
    m_ref  : (s*s*A*B, 1)        1.0 on real pixels, 0.0 on the conv zero-padding
    w1_ref : (Cin, C6)   b1_ref : (1, C6)
    wd_ref : (K*K, C6)   bd_ref : (1, C6)     strided depthwise taps
    wd1_ref: (K*K, C6)   bd1_ref: (1, C6)     stride-1 depthwise taps
    w3_ref : (C6, Cout)  b3_ref : (1, Cout)
    o_ref  : (1, Ho, Wo, Cout)
    eb_ref : VMEM (s*s, A, B, C6)   phase-decomposed expanded activation
    pad_ref: VMEM (Ho+2p, Wo+2p, C6) zero-padded buffer for the stride-1 dwise
    """
    C6 = w1_ref.shape[1]
    f32 = jnp.float32

    # ---- 1) expand 1x1 + bias + ReLU (one M-batched matmul over all phases).
    # The mask keeps the conv's zero-padding ring exactly zero after bias+ReLU.
    x2 = x2_ref[0]                                                    # (M2, Cin)
    e2 = jnp.dot(x2, w1_ref[...], preferred_element_type=f32)         # (M2, C6)
    e2 = jnp.maximum(e2 + b1_ref[...], 0.0) * m_ref[...]

    # Materialise the phase-decomposed activation as (s*s, A, B, C6) via VMEM
    # scratch ("reshape through memory": only contiguous slices + ref stores).
    for q in range(s * s):
        for a in range(A):
            r0 = (q * A + a) * B
            eb_ref[q, a, :, :] = e2[r0:r0 + B, :]

    # ---- 2) depthwise KxK, stride s, + bias + ReLU.
    # Strided output computed directly: tap (kh, kw) of output (i, j) is a
    # CONTIGUOUS slice of phase buffer (kh % s, kw % s) at offset (kh//s, kw//s).
    wd = wd_ref[...]                                                  # (K*K, C6)
    eph = [eb_ref[q] for q in range(s * s)]                           # (A, B, C6)
    acc = jnp.zeros((Ho, Wo, C6), f32)
    for kh in range(K):
        for kw in range(K):
            q = (kh % s) * s + (kw % s)
            dh, dw = kh // s, kw // s
            t = kh * K + kw
            acc = acc + eph[q][dh:dh + Ho, dw:dw + Wo, :] * wd[t:t + 1, :]
    y = jnp.maximum(acc + bd_ref[...], 0.0)                           # (Ho, Wo, C6)

    # ---- 3) (layers-1) x depthwise KxK, stride 1, + bias + ReLU.
    # Zero-padded neighbourhood kept in VMEM scratch (border zeroed once).
    if layers > 1:
        pad_ref[...] = jnp.zeros(pad_ref.shape, f32)
        wd1 = wd1_ref[...]
        bd1 = bd1_ref[...]
        for _ in range(layers - 1):
            pad_ref[pl.ds(p, Ho), pl.ds(p, Wo), :] = y
            xp = pad_ref[...]                                         # (Ho+2p, Wo+2p, C6)
            acc = jnp.zeros((Ho, Wo, C6), f32)
            for kh in range(K):
                for kw in range(K):
                    t = kh * K + kw
                    acc = acc + xp[kh:kh + Ho, kw:kw + Wo, :] * wd1[t:t + 1, :]
            y = jnp.maximum(acc + bd1, 0.0)

    # ---- 4) project 1x1 + bias (no ReLU), emitted row-by-row.
    w3 = w3_ref[...]
    b3 = b3_ref[...]
    for h in range(Ho):
        row = jnp.dot(y[h], w3, preferred_element_type=f32) + b3      # (Wo, Cout)
        o_ref[0, h, :, :] = row.astype(o_ref.dtype)


# ----------------------------------------------------------------------------
# Wrapper: layout plumbing (NCHW <-> NHWC, space-to-batch phases) + pallas_call
# ----------------------------------------------------------------------------
def mbconv_forward(x_nchw, params, *, size, s, layers):
    K = size
    assert K % 2 == 1, "odd kernel sizes only (pad = size // 2 preserves H, W)"
    p = K // 2
    N, Cin, H, W = x_nchw.shape
    C6 = params["w1"].shape[1]
    Cout = params["w3"].shape[1]

    Hp, Wp = H + 2 * p, W + 2 * p
    Ho = (Hp - K) // s + 1
    Wo = (Wp - K) // s + 1
    A = -(-Hp // s)          # ceil(Hp / s)
    B = -(-Wp // s)
    M2 = s * s * A * B

    # NCHW -> NHWC, zero-pad (conv padding + round spatial up to multiples of s),
    # then space-to-batch: phase (ph, pw) holds padded[ph::s, pw::s].
    xh = jnp.transpose(x_nchw, (0, 2, 3, 1))
    pad_h = (p, A * s - H - p)
    pad_w = (p, B * s - W - p)
    xp = jnp.pad(xh, ((0, 0), pad_h, pad_w, (0, 0)))
    x2 = (xp.reshape(N, A, s, B, s, Cin)
            .transpose(0, 2, 4, 1, 3, 5)                 # (N, ph, pw, A, B, Cin)
            .reshape(N, M2, Cin))
    mask = jnp.pad(jnp.ones((1, H, W, 1), jnp.float32), ((0, 0), pad_h, pad_w, (0, 0)))
    m2 = (mask.reshape(1, A, s, B, s, 1)
              .transpose(0, 2, 4, 1, 3, 5)
              .reshape(M2, 1))

    kernel = partial(_mbconv_fused_kernel, K=K, s=s, p=p, A=A, B=B,
                     Ho=Ho, Wo=Wo, layers=layers)

    out_nhwc = pl.pallas_call(
        kernel,
        out_shape=jax.ShapeDtypeStruct((N, Ho, Wo, Cout), x_nchw.dtype),
        grid=(N,),
        in_specs=[
            pl.BlockSpec((1, M2, Cin), lambda n: (n, 0, 0)),
            pl.BlockSpec((M2, 1), lambda n: (0, 0)),
            pl.BlockSpec((Cin, C6), lambda n: (0, 0)),
            pl.BlockSpec((1, C6), lambda n: (0, 0)),
            pl.BlockSpec((K * K, C6), lambda n: (0, 0)),
            pl.BlockSpec((1, C6), lambda n: (0, 0)),
            pl.BlockSpec((K * K, C6), lambda n: (0, 0)),
            pl.BlockSpec((1, C6), lambda n: (0, 0)),
            pl.BlockSpec((C6, Cout), lambda n: (0, 0)),
            pl.BlockSpec((1, Cout), lambda n: (0, 0)),
        ],
        out_specs=pl.BlockSpec((1, Ho, Wo, Cout), lambda n: (n, 0, 0, 0)),
        scratch_shapes=[
            pltpu.VMEM((s * s, A, B, C6), jnp.float32),
            pltpu.VMEM((Ho + 2 * p, Wo + 2 * p, C6), jnp.float32),
        ],
        compiler_params=pltpu.CompilerParams(dimension_semantics=("parallel",)),
    )(
        x2, m2,
        params["w1"], params["b1"].reshape(1, C6),
        params["wd"].reshape(K * K, C6), params["bd"].reshape(1, C6),
        params["wd1"].reshape(K * K, C6), params["bd1"].reshape(1, C6),
        params["w3"], params["b3"].reshape(1, Cout),
    )
    # For large H*W one would add a row-strip grid axis with a (K-1)-halo and
    # bf16 intermediates (v6e/v7x); at these shapes one batch element fits VMEM.
    return jnp.transpose(out_nhwc, (0, 3, 1, 2))          # NHWC -> NCHW


# ----------------------------------------------------------------------------
# Pure-JAX reference (for correctness check)
# ----------------------------------------------------------------------------
def _conv_ref(x, w_oihw, b, stride, pad, groups=1):
    y = jax.lax.conv_general_dilated(
        x, w_oihw, window_strides=(stride, stride),
        padding=((pad, pad), (pad, pad)),
        dimension_numbers=("NCHW", "OIHW", "NCHW"),
        feature_group_count=groups)
    return y + b[None, :, None, None]


def mbconv_ref(x_nchw, params, *, size, s, layers):
    pad = size // 2
    C6 = params["w1"].shape[1]
    w1 = jnp.transpose(params["w1"], (1, 0))[:, :, None, None]
    wd = jnp.transpose(params["wd"], (2, 0, 1))[:, None, :, :]
    wd1 = jnp.transpose(params["wd1"], (2, 0, 1))[:, None, :, :]
    w3 = jnp.transpose(params["w3"], (1, 0))[:, :, None, None]
    r = jnp.maximum(_conv_ref(x_nchw, w1, params["b1"], 1, 0), 0.0)
    r = jnp.maximum(_conv_ref(r, wd, params["bd"], s, pad, groups=C6), 0.0)
    for _ in range(layers - 1):
        r = jnp.maximum(_conv_ref(r, wd1, params["bd1"], 1, pad, groups=C6), 0.0)
    r = _conv_ref(r, w3, params["b3"], 1, 0)
    return r


# ----------------------------------------------------------------------------
# Main
# ----------------------------------------------------------------------------
if __name__ == "__main__":
    # MBConv(size=3, s=2, channels=4, out_channels=8, layers=2), input (2, 4, 16, 16)
    size, s, channels, out_channels, layers = 3, 2, 4, 8, 2
    C6 = 6 * channels
    N, H, W = 2, 16, 16

    key = jax.random.PRNGKey(0)
    ks = jax.random.split(key, 9)
    params = {
        "w1": 0.1 * jax.random.normal(ks[0], (channels, C6), jnp.float32),
        "b1": 0.1 * jax.random.normal(ks[1], (C6,), jnp.float32),
        "wd": 0.1 * jax.random.normal(ks[2], (size, size, C6), jnp.float32),
        "bd": 0.1 * jax.random.normal(ks[3], (C6,), jnp.float32),
        "wd1": 0.1 * jax.random.normal(ks[4], (size, size, C6), jnp.float32),
        "bd1": 0.1 * jax.random.normal(ks[5], (C6,), jnp.float32),
        "w3": 0.1 * jax.random.normal(ks[6], (C6, out_channels), jnp.float32),
        "b3": 0.1 * jax.random.normal(ks[7], (out_channels,), jnp.float32),
    }
    x = jax.random.normal(ks[8], (N, channels, H, W), jnp.float32)

    fwd = jax.jit(partial(mbconv_forward, size=size, s=s, layers=layers))
    out = jax.block_until_ready(fwd(x, params))

    ref = jax.block_until_ready(mbconv_ref(x, params, size=size, s=s, layers=layers))
    assert out.shape == ref.shape, (out.shape, ref.shape)
    assert jnp.allclose(out, ref, atol=1e-3, rtol=1e-3), float(jnp.max(jnp.abs(out - ref)))

    print("KERNEL_OK")
</pallas_src>

<mosaic_0001>
module attributes {stable_mosaic.version = 11 : i64} {
  func.func @_mbconv_fused_kernel(%arg0: i32, %arg1: memref<1x324x4xf32, #tpu.memory_space<vmem>>, %arg2: memref<324x1xf32, #tpu.memory_space<vmem>>, %arg3: memref<4x24xf32, #tpu.memory_space<vmem>>, %arg4: memref<1x24xf32, #tpu.memory_space<vmem>>, %arg5: memref<9x24xf32, #tpu.memory_space<vmem>>, %arg6: memref<1x24xf32, #tpu.memory_space<vmem>>, %arg7: memref<9x24xf32, #tpu.memory_space<vmem>>, %arg8: memref<1x24xf32, #tpu.memory_space<vmem>>, %arg9: memref<24x8xf32, #tpu.memory_space<vmem>>, %arg10: memref<1x8xf32, #tpu.memory_space<vmem>>, %arg11: memref<1x8x8x8xf32, #tpu.memory_space<vmem>>, %arg12: memref<4x9x9x24xf32, #tpu.memory_space<vmem>>, %arg13: memref<10x10x24xf32, #tpu.memory_space<vmem>>) attributes {dimension_semantics = [#tpu.dimension_semantics<parallel>], iteration_bounds = array<i64: 2>, scalar_prefetch = 0 : i64, scratch_operands = 2 : i64, tpu.core_type = #tpu.core_type<tc>, window_params = [{transform_indices = @transform_0, window_bounds = array<i64: 1, 324, 4>}, {pipeline_mode = #tpu.pipeline_mode<synchronous>, transform_indices = @transform_1, window_bounds = array<i64: 324, 1>}, {pipeline_mode = #tpu.pipeline_mode<synchronous>, transform_indices = @transform_2, window_bounds = array<i64: 4, 24>}, {pipeline_mode = #tpu.pipeline_mode<synchronous>, transform_indices = @transform_3, window_bounds = array<i64: 1, 24>}, {pipeline_mode = #tpu.pipeline_mode<synchronous>, transform_indices = @transform_4, window_bounds = array<i64: 9, 24>}, {pipeline_mode = #tpu.pipeline_mode<synchronous>, transform_indices = @transform_5, window_bounds = array<i64: 1, 24>}, {pipeline_mode = #tpu.pipeline_mode<synchronous>, transform_indices = @transform_6, window_bounds = array<i64: 9, 24>}, {pipeline_mode = #tpu.pipeline_mode<synchronous>, transform_indices = @transform_7, window_bounds = array<i64: 1, 24>}, {pipeline_mode = #tpu.pipeline_mode<synchronous>, transform_indices = @transform_8, window_bounds = array<i64: 24, 8>}, {pipeline_mode = #tpu.pipeline_mode<synchronous>, transform_indices = @transform_9, window_bounds = array<i64: 1, 8>}, {transform_indices = @transform_10, window_bounds = array<i64: 1, 8, 8, 8>}]} {
    %c0 = arith.constant 0 : index
    %c0_0 = arith.constant 0 : index
    %c0_1 = arith.constant 0 : index
    %0 = vector.load %arg1[%c0, %c0_0, %c0_1] : memref<1x324x4xf32, #tpu.memory_space<vmem>>, vector<1x324x4xf32>
    %1 = vector.shape_cast %0 : vector<1x324x4xf32> to vector<324x4xf32>
    %c0_2 = arith.constant 0 : index
    %c0_3 = arith.constant 0 : index
    %2 = vector.load %arg3[%c0_2, %c0_3] : memref<4x24xf32, #tpu.memory_space<vmem>>, vector<4x24xf32>
    %cst = arith.constant dense<0.000000e+00> : vector<324x24xf32>
    %3 = tpu.matmul %1, %2, %cst {dimension_numbers = #tpu.dot_dimension_numbers<[1], [0], [0], [1], [0, 0, 1, 1], [], []>} : vector<324x4xf32>, vector<4x24xf32>, vector<324x24xf32> -> vector<324x24xf32>
    %c0_4 = arith.constant 0 : index
    %c0_5 = arith.constant 0 : index
    %4 = vector.load %arg4[%c0_4, %c0_5] : memref<1x24xf32, #tpu.memory_space<vmem>>, vector<1x24xf32>
    %5 = vector.broadcast %4 : vector<1x24xf32> to vector<324x24xf32>
    %6 = arith.addf %3, %5 : vector<324x24xf32>
    %cst_6 = arith.constant 0.000000e+00 : f32
    %7 = vector.broadcast %cst_6 : f32 to vector<324x24xf32>
    %8 = arith.maximumf %6, %7 : vector<324x24xf32>
    %c0_7 = arith.constant 0 : index
    %c0_8 = arith.constant 0 : index
    %9 = vector.load %arg2[%c0_7, %c0_8] : memref<324x1xf32, #tpu.memory_space<vmem>>, vector<324x1xf32>
    %10 = vector.broadcast %9 : vector<324x1xf32> to vector<324x24xf32>
    %11 = arith.mulf %8, %10 : vector<324x24xf32>
    %12 = vector.extract_strided_slice %11 {offsets = [0, 0], sizes = [9, 24], strides = [1, 1]} : vector<324x24xf32> to vector<9x24xf32>
    %c0_9 = arith.constant 0 : index
    %c0_10 = arith.constant 0 : index
    %c0_11 = arith.constant 0 : index
    %c0_12 = arith.constant 0 : index
    %13 = vector.load %arg12[%c0_9, %c0_10, %c0_11, %c0_12] : memref<4x9x9x24xf32, #tpu.memory_space<vmem>>, vector<1x1x9x24xf32>
    %14 = vector.shape_cast %13 : vector<1x1x9x24xf32> to vector<9x24xf32>
    %15 = vector.shape_cast %12 : vector<9x24xf32> to vector<1x1x9x24xf32>
    tpu.vector_store %arg12[%c0_9, %c0_10, %c0_11, %c0_12], %15 {strides = array<i32>} : memref<4x9x9x24xf32, #tpu.memory_space<vmem>>, vector<1x1x9x24xf32>,
    %16 = vector.extract_strided_slice %11 {offsets = [9, 0], sizes = [9, 24], strides = [1, 1]} : vector<324x24xf32> to vector<9x24xf32>
    %c0_13 = arith.constant 0 : index
    %c1 = arith.constant 1 : index
    %c0_14 = arith.constant 0 : index
    %c0_15 = arith.constant 0 : index
    %17 = vector.load %arg12[%c0_13, %c1, %c0_14, %c0_15] : memref<4x9x9x24xf32, #tpu.memory_space<vmem>>, vector<1x1x9x24xf32>
    %18 = vector.shape_cast %17 : vector<1x1x9x24xf32> to vector<9x24xf32>
    %19 = vector.shape_cast %16 : vector<9x24xf32> to vector<1x1x9x24xf32>
    tpu.vector_store %arg12[%c0_13, %c1, %c0_14, %c0_15], %19 {strides = array<i32>} : memref<4x9x9x24xf32, #tpu.memory_space<vmem>>, vector<1x1x9x24xf32>,
    %20 = vector.extract_strided_slice %11 {offsets = [18, 0], sizes = [9, 24], strides = [1, 1]} : vector<324x24xf32> to vector<9x24xf32>
    %c0_16 = arith.constant 0 : index
    %c2 = arith.constant 2 : index
    %c0_17 = arith.constant 0 : index
    %c0_18 = arith.constant 0 : index
    %21 = vector.load %arg12[%c0_16, %c2, %c0_17, %c0_18] : memref<4x9x9x24xf32, #tpu.memory_space<vmem>>, vector<1x1x9x24xf32>
    %22 = vector.shape_cast %21 : vector<1x1x9x24xf32> to vector<9x24xf32>
    %23 = vector.shape_cast %20 : vector<9x24xf32> to vector<1x1x9x24xf32>
    tpu.vector_store %arg12[%c0_16, %c2, %c0_17, %c0_18], %23 {strides = array<i32>} : memref<4x9x9x24xf32, #tpu.memory_space<vmem>>, vector<1x1x9x24xf32>,
    %24 = vector.extract_strided_slice %11 {offsets = [27, 0], sizes = [9, 24], strides = [1, 1]} : vector<324x24xf32> to vector<9x24xf32>
    %c0_19 = arith.constant 0 : index
    %c3 = arith.constant 3 : index
    %c0_20 = arith.constant 0 : index
    %c0_21 = arith.constant 0 : index
    %25 = vector.load %arg12[%c0_19, %c3, %c0_20, %c0_21] : memref<4x9x9x24xf32, #tpu.memory_space<vmem>>, vector<1x1x9x24xf32>
    %26 = vector.shape_cast %25 : vector<1x1x9x24xf32> to vector<9x24xf32>
    %27 = vector.shape_cast %24 : vector<9x24xf32> to vector<1x1x9x24xf32>
    tpu.vector_store %arg12[%c0_19, %c3, %c0_20, %c0_21], %27 {strides = array<i32>} : memref<4x9x9x24xf32, #tpu.memory_space<vmem>>, vector<1x1x9x24xf32>,
    %28 = vector.extract_strided_slice %11 {offsets = [36, 0], sizes = [9, 24], strides = [1, 1]} : vector<324x24xf32> to vector<9x24xf32>
    %c0_22 = arith.constant 0 : index
    %c4 = arith.constant 4 : index
    %c0_23 = arith.constant 0 : index
    %c0_24 = arith.constant 0 : index
    %29 = vector.load %arg12[%c0_22, %c4, %c0_23, %c0_24] : memref<4x9x9x24xf32, #tpu.memory_space<vmem>>, vector<1x1x9x24xf32>
    %30 = vector.shape_cast %29 : vector<1x1x9x24xf32> to vector<9x24xf32>
    %31 = vector.shape_cast %28 : vector<9x24xf32> to vector<1x1x9x24xf32>
    tpu.vector_store %arg12[%c0_22, %c4, %c0_23, %c0_24], %31 {strides = array<i32>} : memref<4x9x9x24xf32, #tpu.memory_space<vmem>>, vector<1x1x9x24xf32>,
    %32 = vector.extract_strided_slice %11 {offsets = [45, 0], sizes = [9, 24], strides = [1, 1]} : vector<324x24xf32> to vector<9x24xf32>
    %c0_25 = arith.constant 0 : index
    %c5 = arith.constant 5 : index
    %c0_26 = arith.constant 0 : index
    %c0_27 = arith.constant 0 : index
    %33 = vector.load %arg12[%c0_25, %c5, %c0_26, %c0_27] : memref<4x9x9x24xf32, #tpu.memory_space<vmem>>, vector<1x1x9x24xf32>
    %34 = vector.shape_cast %33 : vector<1x1x9x24xf32> to vector<9x24xf32>
    %35 = vector.shape_cast %32 : vector<9x24xf32> to vector<1x1x9x24xf32>
    tpu.vector_store %arg12[%c0_25, %c5, %c0_26, %c0_27], %35 {strides = array<i32>} : memref<4x9x9x24xf32, #tpu.memory_space<vmem>>, vector<1x1x9x24xf32>,
    %36 = vector.extract_strided_slice %11 {offsets = [54, 0], sizes = [9, 24], strides = [1, 1]} : vector<324x24xf32> to vector<9x24xf32>
    %c0_28 = arith.constant 0 : index
    %c6 = arith.constant 6 : index
    %c0_29 = arith.constant 0 : index
    %c0_30 = arith.constant 0 : index
    %37 = vector.load %arg12[%c0_28, %c6, %c0_29, %c0_30] : memref<4x9x9x24xf32, #tpu.memory_space<vmem>>, vector<1x1x9x24xf32>
    %38 = vector.shape_cast %37 : vector<1x1x9x24xf32> to vector<9x24xf32>
    %39 = vector.shape_cast %36 : vector<9x24xf32> to vector<1x1x9x24xf32>
    tpu.vector_store %arg12[%c0_28, %c6, %c0_29, %c0_30], %39 {strides = array<i32>} : memref<4x9x9x24xf32, #tpu.memory_space<vmem>>, vector<1x1x9x24xf32>,
    %40 = vector.extract_strided_slice %11 {offsets = [63, 0], sizes = [9, 24], strides = [1, 1]} : vector<324x24xf32> to vector<9x24xf32>
    %c0_31 = arith.constant 0 : index
    %c7 = arith.constant 7 : index
    %c0_32 = arith.constant 0 : index
    %c0_33 = arith.constant 0 : index
    %41 = vector.load %arg12[%c0_31, %c7, %c0_32, %c0_33] : memref<4x9x9x24xf32, #tpu.memory_space<vmem>>, vector<1x1x9x24xf32>
    %42 = vector.shape_cast %41 : vector<1x1x9x24xf32> to vector<9x24xf32>
    %43 = vector.shape_cast %40 : vector<9x24xf32> to vector<1x1x9x24xf32>
    tpu.vector_store %arg12[%c0_31, %c7, %c0_32, %c0_33], %43 {strides = array<i32>} : memref<4x9x9x24xf32, #tpu.memory_space<vmem>>, vector<1x1x9x24xf32>,
    %44 = vector.extract_strided_slice %11 {offsets = [72, 0], sizes = [9, 24], strides = [1, 1]} : vector<324x24xf32> to vector<9x24xf32>
    %c0_34 = arith.constant 0 : index
    %c8 = arith.constant 8 : index
    %c0_35 = arith.constant 0 : index
    %c0_36 = arith.constant 0 : index
    %45 = vector.load %arg12[%c0_34, %c8, %c0_35, %c0_36] : memref<4x9x9x24xf32, #tpu.memory_space<vmem>>, vector<1x1x9x24xf32>
    %46 = vector.shape_cast %45 : vector<1x1x9x24xf32> to vector<9x24xf32>
    %47 = vector.shape_cast %44 : vector<9x24xf32> to vector<1x1x9x24xf32>
    tpu.vector_store %arg12[%c0_34, %c8, %c0_35, %c0_36], %47 {strides = array<i32>} : memref<4x9x9x24xf32, #tpu.memory_space<vmem>>, vector<1x1x9x24xf32>,
    %48 = vector.extract_strided_slice %11 {offsets = [81, 0], sizes = [9, 24], strides = [1, 1]} : vector<324x24xf32> to vector<9x24xf32>
    %c1_37 = arith.constant 1 : index
    %c0_38 = arith.constant 0 : index
    %c0_39 = arith.constant 0 : index
    %c0_40 = arith.constant 0 : index
    %49 = vector.load %arg12[%c1_37, %c0_38, %c0_39, %c0_40] : memref<4x9x9x24xf32, #tpu.memory_space<vmem>>, vector<1x1x9x24xf32>
    %50 = vector.shape_cast %49 : vector<1x1x9x24xf32> to vector<9x24xf32>
    %51 = vector.shape_cast %48 : vector<9x24xf32> to vector<1x1x9x24xf32>
    tpu.vector_store %arg12[%c1_37, %c0_38, %c0_39, %c0_40], %51 {strides = array<i32>} : memref<4x9x9x24xf32, #tpu.memory_space<vmem>>, vector<1x1x9x24xf32>,
    %52 = vector.extract_strided_slice %11 {offsets = [90, 0], sizes = [9, 24], strides = [1, 1]} : vector<324x24xf32> to vector<9x24xf32>
    %c1_41 = arith.constant 1 : index
    %c1_42 = arith.constant 1 : index
    %c0_43 = arith.constant 0 : index
    %c0_44 = arith.constant 0 : index
    %53 = vector.load %arg12[%c1_41, %c1_42, %c0_43, %c0_44] : memref<4x9x9x24xf32, #tpu.memory_space<vmem>>, vector<1x1x9x24xf32>
    %54 = vector.shape_cast %53 : vector<1x1x9x24xf32> to vector<9x24xf32>
    %55 = vector.shape_cast %52 : vector<9x24xf32> to vector<1x1x9x24xf32>
    tpu.vector_store %arg12[%c1_41, %c1_42, %c0_43, %c0_44], %55 {strides = array<i32>} : memref<4x9x9x24xf32, #tpu.memory_space<vmem>>, vector<1x1x9x24xf32>,
    %56 = vector.extract_strided_slice %11 {offsets = [99, 0], sizes = [9, 24], strides = [1, 1]} : vector<324x24xf32> to vector<9x24xf32>
    %c1_45 = arith.constant 1 : index
    %c2_46 = arith.constant 2 : index
    %c0_47 = arith.constant 0 : index
    %c0_48 = arith.constant 0 : index
    %57 = vector.load %arg12[%c1_45, %c2_46, %c0_47, %c0_48] : memref<4x9x9x24xf32, #tpu.memory_space<vmem>>, vector<1x1x9x24xf32>
    %58 = vector.shape_cast %57 : vector<1x1x9x24xf32> to vector<9x24xf32>
    %59 = vector.shape_cast %56 : vector<9x24xf32> to vector<1x1x9x24xf32>
    tpu.vector_store %arg12[%c1_45, %c2_46, %c0_47, %c0_48], %59 {strides = array<i32>} : memref<4x9x9x24xf32, #tpu.memory_space<vmem>>, vector<1x1x9x24xf32>,
    %60 = vector.extract_strided_slice %11 {offsets = [108, 0], sizes = [9, 24], strides = [1, 1]} : vector<324x24xf32> to vector<9x24xf32>
    %c1_49 = arith.constant 1 : index
    %c3_50 = arith.constant 3 : index
    %c0_51 = arith.constant 0 : index
    %c0_52 = arith.constant 0 : index
    %61 = vector.load %arg12[%c1_49, %c3_50, %c0_51, %c0_52] : memref<4x9x9x24xf32, #tpu.memory_space<vmem>>, vector<1x1x9x24xf32>
    %62 = vector.shape_cast %61 : vector<1x1x9x24xf32> to vector<9x24xf32>
    %63 = vector.shape_cast %60 : vector<9x24xf32> to vector<1x1x9x24xf32>
    tpu.vector_store %arg12[%c1_49, %c3_50, %c0_51, %c0_52], %63 {strides = array<i32>} : memref<4x9x9x24xf32, #tpu.memory_space<vmem>>, vector<1x1x9x24xf32>,
    %64 = vector.extract_strided_slice %11 {offsets = [117, 0], sizes = [9, 24], strides = [1, 1]} : vector<324x24xf32> to vector<9x24xf32>
    %c1_53 = arith.constant 1 : index
    %c4_54 = arith.constant 4 : index
    %c0_55 = arith.constant 0 : index
    %c0_56 = arith.constant 0 : index
    %65 = vector.load %arg12[%c1_53, %c4_54, %c0_55, %c0_56] : memref<4x9x9x24xf32, #tpu.memory_space<vmem>>, vector<1x1x9x24xf32>
    %66 = vector.shape_cast %65 : vector<1x1x9x24xf32> to vector<9x24xf32>
    %67 = vector.shape_cast %64 : vector<9x24xf32> to vector<1x1x9x24xf32>
    tpu.vector_store %arg12[%c1_53, %c4_54, %c0_55, %c0_56], %67 {strides = array<i32>} : memref<4x9x9x24xf32, #tpu.memory_space<vmem>>, vector<1x1x9x24xf32>,
    %68 = vector.extract_strided_slice %11 {offsets = [126, 0], sizes = [9, 24], strides = [1, 1]} : vector<324x24xf32> to vector<9x24xf32>
    %c1_57 = arith.constant 1 : index
    %c5_58 = arith.constant 5 : index
    %c0_59 = arith.constant 0 : index
    %c0_60 = arith.constant 0 : index
    %69 = vector.load %arg12[%c1_57, %c5_58, %c0_59, %c0_60] : memref<4x9x9x24xf32, #tpu.memory_space<vmem>>, vector<1x1x9x24xf32>
    %70 = vector.shape_cast %69 : vector<1x1x9x24xf32> to vector<9x24xf32>
    %71 = vector.shape_cast %68 : vector<9x24xf32> to vector<1x1x9x24xf32>
    tpu.vector_store %arg12[%c1_57, %c5_58, %c0_59, %c0_60], %71 {strides = array<i32>} : memref<4x9x9x24xf32, #tpu.memory_space<vmem>>, vector<1x1x9x24xf32>,
    %72 = vector.extract_strided_slice %11 {offsets = [135, 0], sizes = [9, 24], strides = [1, 1]} : vector<324x24xf32> to vector<9x24xf32>
    %c1_61 = arith.constant 1 : index
    %c6_62 = arith.constant 6 : index
    %c0_63 = arith.constant 0 : index
    %c0_64 = arith.constant 0 : index
    %73 = vector.load %arg12[%c1_61, %c6_62, %c0_63, %c0_64] : memref<4x9x9x24xf32, #tpu.memory_space<vmem>>, vector<1x1x9x24xf32>
    %74 = vector.shape_cast %73 : vector<1x1x9x24xf32> to vector<9x24xf32>
    %75 = vector.shape_cast %72 : vector<9x24xf32> to vector<1x1x9x24xf32>
    tpu.vector_store %arg12[%c1_61, %c6_62, %c0_63, %c0_64], %75 {strides = array<i32>} : memref<4x9x9x24xf32, #tpu.memory_space<vmem>>, vector<1x1x9x24xf32>,
    %76 = vector.extract_strided_slice %11 {offsets = [144, 0], sizes = [9, 24], strides = [1, 1]} : vector<324x24xf32> to vector<9x24xf32>
    %c1_65 = arith.constant 1 : index
    %c7_66 = arith.constant 7 : index
    %c0_67 = arith.constant 0 : index
    %c0_68 = arith.constant 0 : index
    %77 = vector.load %arg12[%c1_65, %c7_66, %c0_67, %c0_68] : memref<4x9x9x24xf32, #tpu.memory_space<vmem>>, vector<1x1x9x24xf32>
    %78 = vector.shape_cast %77 : vector<1x1x9x24xf32> to vector<9x24xf32>
    %79 = vector.shape_cast %76 : vector<9x24xf32> to vector<1x1x9x24xf32>
    tpu.vector_store %arg12[%c1_65, %c7_66, %c0_67, %c0_68], %79 {strides = array<i32>} : memref<4x9x9x24xf32, #tpu.memory_space<vmem>>, vector<1x1x9x24xf32>,
    %80 = vector.extract_strided_slice %11 {offsets = [153, 0], sizes = [9, 24], strides = [1, 1]} : vector<324x24xf32> to vector<9x24xf32>
    %c1_69 = arith.constant 1 : index
    %c8_70 = arith.constant 8 : index
    %c0_71 = arith.constant 0 : index
    %c0_72 = arith.constant 0 : index
    %81 = vector.load %arg12[%c1_69, %c8_70, %c0_71, %c0_72] : memref<4x9x9x24xf32, #tpu.memory_space<vmem>>, vector<1x1x9x24xf32>
    %82 = vector.shape_cast %81 : vector<1x1x9x24xf32> to vector<9x24xf32>
    %83 = vector.shape_cast %80 : vector<9x24xf32> to vector<1x1x9x24xf32>
    tpu.vector_store %arg12[%c1_69, %c8_70, %c0_71, %c0_72], %83 {strides = array<i32>} : memref<4x9x9x24xf32, #tpu.memory_space<vmem>>, vector<1x1x9x24xf32>,
    %84 = vector.extract_strided_slice %11 {offsets = [162, 0], sizes = [9, 24], strides = [1, 1]} : vector<324x24xf32> to vector<9x24xf32>
    %c2_73 = arith.constant 2 : index
    %c0_74 = arith.constant 0 : index
    %c0_75 = arith.constant 0 : index
    %c0_76 = arith.constant 0 : index
    %85 = vector.load %arg12[%c2_73, %c0_74, %c0_75, %c0_76] : memref<4x9x9x24xf32, #tpu.memory_space<vmem>>, vector<1x1x9x24xf32>
    %86 = vector.shape_cast %85 : vector<1x1x9x24xf32> to vector<9x24xf32>
    %87 = vector.shape_cast %84 : vector<9x24xf32> to vector<1x1x9x24xf32>
    tpu.vector_store %arg12[%c2_73, %c0_74, %c0_75, %c0_76], %87 {strides = array<i32>} : memref<4x9x9x24xf32, #tpu.memory_space<vmem>>, vector<1x1x9x24xf32>,
    %88 = vector.extract_strided_slice %11 {offsets = [171, 0], sizes = [9, 24], strides = [1, 1]} : vector<324x24xf32> to vector<9x24xf32>
    %c2_77 = arith.constant 2 : index
    %c1_78 = arith.constant 1 : index
    %c0_79 = arith.constant 0 : index
    %c0_80 = arith.constant 0 : index
    %89 = vector.load %arg12[%c2_77, %c1_78, %c0_79, %c0_80] : memref<4x9x9x24xf32, #tpu.memory_space<vmem>>, vector<1x1x9x24xf32>
    %90 = vector.shape_cast %89 : vector<1x1x9x24xf32> to vector<9x24xf32>
    %91 = vector.shape_cast %88 : vector<9x24xf32> to vector<1x1x9x24xf32>
    tpu.vector_store %arg12[%c2_77, %c1_78, %c0_79, %c0_80], %91 {strides = array<i32>} : memref<4x9x9x24xf32, #tpu.memory_space<vmem>>, vector<1x1x9x24xf32>,
    %92 = vector.extract_strided_slice %11 {offsets = [180, 0], sizes = [9, 24], strides = [1, 1]} : vector<324x24xf32> to vector<9x24xf32>
    %c2_81 = arith.constant 2 : index
    %c2_82 = arith.constant 2 : index
    %c0_83 = arith.constant 0 : index
    %c0_84 = arith.constant 0 : index
    %93 = vector.load %arg12[%c2_81, %c2_82, %c0_83, %c0_84] : memref<4x9x9x24xf32, #tpu.memory_space<vmem>>, vector<1x1x9x24xf32>
    %94 = vector.shape_cast %93 : vector<1x1x9x24xf32> to vector<9x24xf32>
    %95 = vector.shape_cast %92 : vector<9x24xf32> to vector<1x1x9x24xf32>
    tpu.vector_store %arg12[%c2_81, %c2_82, %c0_83, %c0_84], %95 {strides = array<i32>} : memref<4x9x9x24xf32, #tpu.memory_space<vmem>>, vector<1x1x9x24xf32>,
    %96 = vector.extract_strided_slice %11 {offsets = [189, 0], sizes = [9, 24], strides = [1, 1]} : vector<324x24xf32> to vector<9x24xf32>
    %c2_85 = arith.constant 2 : index
    %c3_86 = arith.constant 3 : index
    %c0_87 = arith.constant 0 : index
    %c0_88 = arith.constant 0 : index
    %97 = vector.load %arg12[%c2_85, %c3_86, %c0_87, %c0_88] : memref<4x9x9x24xf32, #tpu.memory_space<vmem>>, vector<1x1x9x24xf32>
    %98 = vector.shape_cast %97 : vector<1x1x9x24xf32> to vector<9x24xf32>
    %99 = vector.shape_cast %96 : vector<9x24xf32> to vector<1x1x9x24xf32>
    tpu.vector_store %arg12[%c2_85, %c3_86, %c0_87, %c0_88], %99 {strides = array<i32>} : memref<4x9x9x24xf32, #tpu.memory_space<vmem>>, vector<1x1x9x24xf32>,
    %100 = vector.extract_strided_slice %11 {offsets = [198, 0], sizes = [9, 24], strides = [1, 1]} : vector<324x24xf32> to vector<9x24xf32>
    %c2_89 = arith.constant 2 : index
    %c4_90 = arith.constant 4 : index
    %c0_91 = arith.constant 0 : index
    %c0_92 = arith.constant 0 : index
    %101 = vector.load %arg12[%c2_89, %c4_90, %c0_91, %c0_92] : memref<4x9x9x24xf32, #tpu.memory_space<vmem>>, vector<1x1x9x24xf32>
    %102 = vector.shape_cast %101 : vector<1x1x9x24xf32> to vector<9x24xf32>
    %103 = vector.shape_cast %100 : vector<9x24xf32> to vector<1x1x9x24xf32>
    tpu.vector_store %arg12[%c2_89, %c4_90, %c0_91, %c0_92], %103 {strides = array<i32>} : memref<4x9x9x24xf32, #tpu.memory_space<vmem>>, vector<1x1x9x24xf32>,
    %104 = vector.extract_strided_slice %11 {offsets = [207, 0], sizes = [9, 24], strides = [1, 1]} : vector<324x24xf32> to vector<9x24xf32>
    %c2_93 = arith.constant 2 : index
    %c5_94 = arith.constant 5 : index
    %c0_95 = arith.constant 0 : index
    %c0_96 = arith.constant 0 : index
    %105 = vector.load %arg12[%c2_93, %c5_94, %c0_95, %c0_96] : memref<4x9x9x24xf32, #tpu.memory_space<vmem>>, vector<1x1x9x24xf32>
    %106 = vector.shape_cast %105 : vector<1x1x9x24xf32> to vector<9x24xf32>
    %107 = vector.shape_cast %104 : vector<9x24xf32> to vector<1x1x9x24xf32>
    tpu.vector_store %arg12[%c2_93, %c5_94, %c0_95, %c0_96], %107 {strides = array<i32>} : memref<4x9x9x24xf32, #tpu.memory_space<vmem>>, vector<1x1x9x24xf32>,
    %108 = vector.extract_strided_slice %11 {offsets = [216, 0], sizes = [9, 24], strides = [1, 1]} : vector<324x24xf32> to vector<9x24xf32>
    %c2_97 = arith.constant 2 : index
    %c6_98 = arith.constant 6 : index
    %c0_99 = arith.constant 0 : index
    %c0_100 = arith.constant 0 : index
    %109 = vector.load %arg12[%c2_97, %c6_98, %c0_99, %c0_100] : memref<4x9x9x24xf32, #tpu.memory_space<vmem>>, vector<1x1x9x24xf32>
    %110 = vector.shape_cast %109 : vector<1x1x9x24xf32> to vector<9x24xf32>
    %111 = vector.shape_cast %108 : vector<9x24xf32> to vector<1x1x9x24xf32>
    tpu.vector_store %arg12[%c2_97, %c6_98, %c0_99, %c0_100], %111 {strides = array<i32>} : memref<4x9x9x24xf32, #tpu.memory_space<vmem>>, vector<1x1x9x24xf32>,
    %112 = vector.extract_strided_slice %11 {offsets = [225, 0], sizes = [9, 24], strides = [1, 1]} : vector<324x24xf32> to vector<9x24xf32>
    %c2_101 = arith.constant 2 : index
    %c7_102 = arith.constant 7 : index
    %c0_103 = arith.constant 0 : index
    %c0_104 = arith.constant 0 : index
    %113 = vector.load %arg12[%c2_101, %c7_102, %c0_103, %c0_104] : memref<4x9x9x24xf32, #tpu.memory_space<vmem>>, vector<1x1x9x24xf32>
    %114 = vector.shape_cast %113 : vector<1x1x9x24xf32> to vector<9x24xf32>
    %115 = vector.shape_cast %112 : vector<9x24xf32> to vector<1x1x9x24xf32>
    tpu.vector_store %arg12[%c2_101, %c7_102, %c0_103, %c0_104], %115 {strides = array<i32>} : memref<4x9x9x24xf32, #tpu.memory_space<vmem>>, vector<1x1x9x24xf32>,
    %116 = vector.extract_strided_slice %11 {offsets = [234, 0], sizes = [9, 24], strides = [1, 1]} : vector<324x24xf32> to vector<9x24xf32>
    %c2_105 = arith.constant 2 : index
    %c8_106 = arith.constant 8 : index
    %c0_107 = arith.constant 0 : index
    %c0_108 = arith.constant 0 : index
    %117 = vector.load %arg12[%c2_105, %c8_106, %c0_107, %c0_108] : memref<4x9x9x24xf32, #tpu.memory_space<vmem>>, vector<1x1x9x24xf32>
    %118 = vector.shape_cast %117 : vector<1x1x9x24xf32> to vector<9x24xf32>
    %119 = vector.shape_cast %116 : vector<9x24xf32> to vector<1x1x9x24xf32>
    tpu.vector_store %arg12[%c2_105, %c8_106, %c0_107, %c0_108], %119 {strides = array<i32>} : memref<4x9x9x24xf32, #tpu.memory_space<vmem>>, vector<1x1x9x24xf32>,
    %120 = vector.extract_strided_slice %11 {offsets = [243, 0], sizes = [9, 24], strides = [1, 1]} : vector<324x24xf32> to vector<9x24xf32>
    %c3_109 = arith.constant 3 : index
    %c0_110 = arith.constant 0 : index
    %c0_111 = arith.constant 0 : index
    %c0_112 = arith.constant 0 : index
    %121 = vector.load %arg12[%c3_109, %c0_110, %c0_111, %c0_112] : memref<4x9x9x24xf32, #tpu.memory_space<vmem>>, vector<1x1x9x24xf32>
    %122 = vector.shape_cast %121 : vector<1x1x9x24xf32> to vector<9x24xf32>
    %123 = vector.shape_cast %120 : vector<9x24xf32> to vector<1x1x9x24xf32>
    tpu.vector_store %arg12[%c3_109, %c0_110, %c0_111, %c0_112], %123 {strides = array<i32>} : memref<4x9x9x24xf32, #tpu.memory_space<vmem>>, vector<1x1x9x24xf32>,
    %124 = vector.extract_strided_slice %11 {offsets = [252, 0], sizes = [9, 24], strides = [1, 1]} : vector<324x24xf32> to vector<9x24xf32>
    %c3_113 = arith.constant 3 : index
    %c1_114 = arith.constant 1 : index
    %c0_115 = arith.constant 0 : index
    %c0_116 = arith.constant 0 : index
    %125 = vector.load %arg12[%c3_113, %c1_114, %c0_115, %c0_116] : memref<4x9x9x24xf32, #tpu.memory_space<vmem>>, vector<1x1x9x24xf32>
    %126 = vector.shape_cast %125 : vector<1x1x9x24xf32> to vector<9x24xf32>
    %127 = vector.shape_cast %124 : vector<9x24xf32> to vector<1x1x9x24xf32>
    tpu.vector_store %arg12[%c3_113, %c1_114, %c0_115, %c0_116], %127 {strides = array<i32>} : memref<4x9x9x24xf32, #tpu.memory_space<vmem>>, vector<1x1x9x24xf32>,
    %128 = vector.extract_strided_slice %11 {offsets = [261, 0], sizes = [9, 24], strides = [1, 1]} : vector<324x24xf32> to vector<9x24xf32>
    %c3_117 = arith.constant 3 : index
    %c2_118 = arith.constant 2 : index
    %c0_119 = arith.constant 0 : index
    %c0_120 = arith.constant 0 : index
    %129 = vector.load %arg12[%c3_117, %c2_118, %c0_119, %c0_120] : memref<4x9x9x24xf32, #tpu.memory_space<vmem>>, vector<1x1x9x24xf32>
    %130 = vector.shape_cast %129 : vector<1x1x9x24xf32> to vector<9x24xf32>
    %131 = vector.shape_cast %128 : vector<9x24xf32> to vector<1x1x9x24xf32>
    tpu.vector_store %arg12[%c3_117, %c2_118, %c0_119, %c0_120], %131 {strides = array<i32>} : memref<4x9x9x24xf32, #tpu.memory_space<vmem>>, vector<1x1x9x24xf32>,
    %132 = vector.extract_strided_slice %11 {offsets = [270, 0], sizes = [9, 24], strides = [1, 1]} : vector<324x24xf32> to vector<9x24xf32>
    %c3_121 = arith.constant 3 : index
    %c3_122 = arith.constant 3 : index
    %c0_123 = arith.constant 0 : index
    %c0_124 = arith.constant 0 : index
    %133 = vector.load %arg12[%c3_121, %c3_122, %c0_123, %c0_124] : memref<4x9x9x24xf32, #tpu.memory_space<vmem>>, vector<1x1x9x24xf32>
    %134 = vector.shape_cast %133 : vector<1x1x9x24xf32> to vector<9x24xf32>
    %135 = vector.shape_cast %132 : vector<9x24xf32> to vector<1x1x9x24xf32>
    tpu.vector_store %arg12[%c3_121, %c3_122, %c0_123, %c0_124], %135 {strides = array<i32>} : memref<4x9x9x24xf32, #tpu.memory_space<vmem>>, vector<1x1x9x24xf32>,
    %136 = vector.extract_strided_slice %11 {offsets = [279, 0], sizes = [9, 24], strides = [1, 1]} : vector<324x24xf32> to vector<9x24xf32>
    %c3_125 = arith.constant 3 : index
    %c4_126 = arith.constant 4 : index
    %c0_127 = arith.constant 0 : index
    %c0_128 = arith.constant 0 : index
    %137 = vector.load %arg12[%c3_125, %c4_126, %c0_127, %c0_128] : memref<4x9x9x24xf32, #tpu.memory_space<vmem>>, vector<1x1x9x24xf32>
    %138 = vector.shape_cast %137 : vector<1x1x9x24xf32> to vector<9x24xf32>
    %139 = vector.shape_cast %136 : vector<9x24xf32> to vector<1x1x9x24xf32>
    tpu.vector_store %arg12[%c3_125, %c4_126, %c0_127, %c0_128], %139 {strides = array<i32>} : memref<4x9x9x24xf32, #tpu.memory_space<vmem>>, vector<1x1x9x24xf32>,
    %140 = vector.extract_strided_slice %11 {offsets = [288, 0], sizes = [9, 24], strides = [1, 1]} : vector<324x24xf32> to vector<9x24xf32>
    %c3_129 = arith.constant 3 : index
    %c5_130 = arith.constant 5 : index
    %c0_131 = arith.constant 0 : index
    %c0_132 = arith.constant 0 : index
    %141 = vector.load %arg12[%c3_129, %c5_130, %c0_131, %c0_132] : memref<4x9x9x24xf32, #tpu.memory_space<vmem>>, vector<1x1x9x24xf32>
    %142 = vector.shape_cast %141 : vector<1x1x9x24xf32> to vector<9x24xf32>
    %143 = vector.shape_cast %140 : vector<9x24xf32> to vector<1x1x9x24xf32>
    tpu.vector_store %arg12[%c3_129, %c5_130, %c0_131, %c0_132], %143 {strides = array<i32>} : memref<4x9x9x24xf32, #tpu.memory_space<vmem>>, vector<1x1x9x24xf32>,
    %144 = vector.extract_strided_slice %11 {offsets = [297, 0], sizes = [9, 24], strides = [1, 1]} : vector<324x24xf32> to vector<9x24xf32>
    %c3_133 = arith.constant 3 : index
    %c6_134 = arith.constant 6 : index
    %c0_135 = arith.constant 0 : index
    %c0_136 = arith.constant 0 : index
    %145 = vector.load %arg12[%c3_133, %c6_134, %c0_135, %c0_136] : memref<4x9x9x24xf32, #tpu.memory_space<vmem>>, vector<1x1x9x24xf32>
    %146 = vector.shape_cast %145 : vector<1x1x9x24xf32> to vector<9x24xf32>
    %147 = vector.shape_cast %144 : vector<9x24xf32> to vector<1x1x9x24xf32>
    tpu.vector_store %arg12[%c3_133, %c6_134, %c0_135, %c0_136], %147 {strides = array<i32>} : memref<4x9x9x24xf32, #tpu.memory_space<vmem>>, vector<1x1x9x24xf32>,
    %148 = vector.extract_strided_slice %11 {offsets = [306, 0], sizes = [9, 24], strides = [1, 1]} : vector<324x24xf32> to vector<9x24xf32>
    %c3_137 = arith.constant 3 : index
    %c7_138 = arith.constant 7 : index
    %c0_139 = arith.constant 0 : index
    %c0_140 = arith.constant 0 : index
    %149 = vector.load %arg12[%c3_137, %c7_138, %c0_139, %c0_140] : memref<4x9x9x24xf32, #tpu.memory_space<vmem>>, vector<1x1x9x24xf32>
    %150 = vector.shape_cast %149 : vector<1x1x9x24xf32> to vector<9x24xf32>
    %151 = vector.shape_cast %148 : vector<9x24xf32> to vector<1x1x9x24xf32>
    tpu.vector_store %arg12[%c3_137, %c7_138, %c0_139, %c0_140], %151 {strides = array<i32>} : memref<4x9x9x24xf32, #tpu.memory_space<vmem>>, vector<1x1x9x24xf32>,
    %152 = vector.extract_strided_slice %11 {offsets = [315, 0], sizes = [9, 24], strides = [1, 1]} : vector<324x24xf32> to vector<9x24xf32>
    %c3_141 = arith.constant 3 : index
    %c8_142 = arith.constant 8 : index
    %c0_143 = arith.constant 0 : index
    %c0_144 = arith.constant 0 : index
    %153 = vector.load %arg12[%c3_141, %c8_142, %c0_143, %c0_144] : memref<4x9x9x24xf32, #tpu.memory_space<vmem>>, vector<1x1x9x24xf32>
    %154 = vector.shape_cast %153 : vector<1x1x9x24xf32> to vector<9x24xf32>
    %155 = vector.shape_cast %152 : vector<9x24xf32> to vector<1x1x9x24xf32>
    tpu.vector_store %arg12[%c3_141, %c8_142, %c0_143, %c0_144], %155 {strides = array<i32>} : memref<4x9x9x24xf32, #tpu.memory_space<vmem>>, vector<1x1x9x24xf32>,
    %c0_145 = arith.constant 0 : index
    %c0_146 = arith.constant 0 : index
    %156 = vector.load %arg5[%c0_145, %c0_146] : memref<9x24xf32, #tpu.memory_space<vmem>>, vector<9x24xf32>
    %c0_147 = arith.constant 0 : index
    %c0_148 = arith.constant 0 : index
    %c0_149 = arith.constant 0 : index
    %c0_150 = arith.constant 0 : index
    %157 = vector.load %arg12[%c0_147, %c0_148, %c0_149, %c0_150] : memref<4x9x9x24xf32, #tpu.memory_space<vmem>>, vector<1x9x9x24xf32>
    %158 = vector.shape_cast %157 : vector<1x9x9x24xf32> to vector<9x9x24xf32>
    %c1_151 = arith.constant 1 : index
    %c0_152 = arith.constant 0 : index
    %c0_153 = arith.constant 0 : index
    %c0_154 = arith.constant 0 : index
    %159 = vector.load %arg12[%c1_151, %c0_152, %c0_153, %c0_154] : memref<4x9x9x24xf32, #tpu.memory_space<vmem>>, vector<1x9x9x24xf32>
    %160 = vector.shape_cast %159 : vector<1x9x9x24xf32> to vector<9x9x24xf32>
    %c2_155 = arith.constant 2 : index
    %c0_156 = arith.constant 0 : index
    %c0_157 = arith.constant 0 : index
    %c0_158 = arith.constant 0 : index
    %161 = vector.load %arg12[%c2_155, %c0_156, %c0_157, %c0_158] : memref<4x9x9x24xf32, #tpu.memory_space<vmem>>, vector<1x9x9x24xf32>
    %162 = vector.shape_cast %161 : vector<1x9x9x24xf32> to vector<9x9x24xf32>
    %c3_159 = arith.constant 3 : index
    %c0_160 = arith.constant 0 : index
    %c0_161 = arith.constant 0 : index
    %c0_162 = arith.constant 0 : index
    %163 = vector.load %arg12[%c3_159, %c0_160, %c0_161, %c0_162] : memref<4x9x9x24xf32, #tpu.memory_space<vmem>>, vector<1x9x9x24xf32>
    %164 = vector.shape_cast %163 : vector<1x9x9x24xf32> to vector<9x9x24xf32>
    %cst_163 = arith.constant 0.000000e+00 : f32
    %165 = vector.broadcast %cst_163 : f32 to vector<8x8x24xf32>
    %166 = vector.extract_strided_slice %158 {offsets = [0, 0, 0], sizes = [8, 8, 24], strides = [1, 1, 1]} : vector<9x9x24xf32> to vector<8x8x24xf32>
    %167 = vector.extract_strided_slice %156 {offsets = [0, 0], sizes = [1, 24], strides = [1, 1]} : vector<9x24xf32> to vector<1x24xf32>
    %168 = vector.shape_cast %167 : vector<1x24xf32> to vector<1x1x24xf32>
    %169 = vector.broadcast %168 : vector<1x1x24xf32> to vector<8x8x24xf32>
    %170 = arith.mulf %166, %169 : vector<8x8x24xf32>
    %171 = arith.addf %165, %170 : vector<8x8x24xf32>
    %172 = vector.extract_strided_slice %160 {offsets = [0, 0, 0], sizes = [8, 8, 24], strides = [1, 1, 1]} : vector<9x9x24xf32> to vector<8x8x24xf32>
    %173 = vector.extract_strided_slice %156 {offsets = [1, 0], sizes = [1, 24], strides = [1, 1]} : vector<9x24xf32> to vector<1x24xf32>
    %174 = vector.shape_cast %173 : vector<1x24xf32> to vector<1x1x24xf32>
    %175 = vector.broadcast %174 : vector<1x1x24xf32> to vector<8x8x24xf32>
    %176 = arith.mulf %172, %175 : vector<8x8x24xf32>
    %177 = arith.addf %171, %176 : vector<8x8x24xf32>
    %178 = vector.extract_strided_slice %158 {offsets = [0, 1, 0], sizes = [8, 8, 24], strides = [1, 1, 1]} : vector<9x9x24xf32> to vector<8x8x24xf32>
    %179 = vector.extract_strided_slice %156 {offsets = [2, 0], sizes = [1, 24], strides = [1, 1]} : vector<9x24xf32> to vector<1x24xf32>
    %180 = vector.shape_cast %179 : vector<1x24xf32> to vector<1x1x24xf32>
    %181 = vector.broadcast %180 : vector<1x1x24xf32> to vector<8x8x24xf32>
    %182 = arith.mulf %178, %181 : vector<8x8x24xf32>
    %183 = arith.addf %177, %182 : vector<8x8x24xf32>
    %184 = vector.extract_strided_slice %162 {offsets = [0, 0, 0], sizes = [8, 8, 24], strides = [1, 1, 1]} : vector<9x9x24xf32> to vector<8x8x24xf32>
    %185 = vector.extract_strided_slice %156 {offsets = [3, 0], sizes = [1, 24], strides = [1, 1]} : vector<9x24xf32> to vector<1x24xf32>
    %186 = vector.shape_cast %185 : vector<1x24xf32> to vector<1x1x24xf32>
    %187 = vector.broadcast %186 : vector<1x1x24xf32> to vector<8x8x24xf32>
    %188 = arith.mulf %184, %187 : vector<8x8x24xf32>
    %189 = arith.addf %183, %188 : vector<8x8x24xf32>
    %190 = vector.extract_strided_slice %164 {offsets = [0, 0, 0], sizes = [8, 8, 24], strides = [1, 1, 1]} : vector<9x9x24xf32> to vector<8x8x24xf32>
    %191 = vector.extract_strided_slice %156 {offsets = [4, 0], sizes = [1, 24], strides = [1, 1]} : vector<9x24xf32> to vector<1x24xf32>
    %192 = vector.shape_cast %191 : vector<1x24xf32> to vector<1x1x24xf32>
    %193 = vector.broadcast %192 : vector<1x1x24xf32> to vector<8x8x24xf32>
    %194 = arith.mulf %190, %193 : vector<8x8x24xf32>
    %195 = arith.addf %189, %194 : vector<8x8x24xf32>
    %196 = vector.extract_strided_slice %162 {offsets = [0, 1, 0], sizes = [8, 8, 24], strides = [1, 1, 1]} : vector<9x9x24xf32> to vector<8x8x24xf32>
    %197 = vector.extract_strided_slice %156 {offsets = [5, 0], sizes = [1, 24], strides = [1, 1]} : vector<9x24xf32> to vector<1x24xf32>
    %198 = vector.shape_cast %197 : vector<1x24xf32> to vector<1x1x24xf32>
    %199 = vector.broadcast %198 : vector<1x1x24xf32> to vector<8x8x24xf32>
    %200 = arith.mulf %196, %199 : vector<8x8x24xf32>
    %201 = arith.addf %195, %200 : vector<8x8x24xf32>
    %202 = vector.extract_strided_slice %158 {offsets = [1, 0, 0], sizes = [8, 8, 24], strides = [1, 1, 1]} : vector<9x9x24xf32> to vector<8x8x24xf32>
    %203 = vector.extract_strided_slice %156 {offsets = [6, 0], sizes = [1, 24], strides = [1, 1]} : vector<9x24xf32> to vector<1x24xf32>
    %204 = vector.shape_cast %203 : vector<1x24xf32> to vector<1x1x24xf32>
    %205 = vector.broadcast %204 : vector<1x1x24xf32> to vector<8x8x24xf32>
    %206 = arith.mulf %202, %205 : vector<8x8x24xf32>
    %207 = arith.addf %201, %206 : vector<8x8x24xf32>
    %208 = vector.extract_strided_slice %160 {offsets = [1, 0, 0], sizes = [8, 8, 24], strides = [1, 1, 1]} : vector<9x9x24xf32> to vector<8x8x24xf32>
    %209 = vector.extract_strided_slice %156 {offsets = [7, 0], sizes = [1, 24], strides = [1, 1]} : vector<9x24xf32> to vector<1x24xf32>
    %210 = vector.shape_cast %209 : vector<1x24xf32> to vector<1x1x24xf32>
    %211 = vector.broadcast %210 : vector<1x1x24xf32> to vector<8x8x24xf32>
    %212 = arith.mulf %208, %211 : vector<8x8x24xf32>
    %213 = arith.addf %207, %212 : vector<8x8x24xf32>
    %214 = vector.extract_strided_slice %158 {offsets = [1, 1, 0], sizes = [8, 8, 24], strides = [1, 1, 1]} : vector<9x9x24xf32> to vector<8x8x24xf32>
    %215 = vector.extract_strided_slice %156 {offsets = [8, 0], sizes = [1, 24], strides = [1, 1]} : vector<9x24xf32> to vector<1x24xf32>
    %216 = vector.shape_cast %215 : vector<1x24xf32> to vector<1x1x24xf32>
    %217 = vector.broadcast %216 : vector<1x1x24xf32> to vector<8x8x24xf32>
    %218 = arith.mulf %214, %217 : vector<8x8x24xf32>
    %219 = arith.addf %213, %218 : vector<8x8x24xf32>
    %c0_164 = arith.constant 0 : index
    %c0_165 = arith.constant 0 : index
    %220 = vector.load %arg6[%c0_164, %c0_165] : memref<1x24xf32, #tpu.memory_space<vmem>>, vector<1x24xf32>
    %221 = vector.shape_cast %220 : vector<1x24xf32> to vector<1x1x24xf32>
    %222 = vector.broadcast %221 : vector<1x1x24xf32> to vector<8x8x24xf32>
    %223 = arith.addf %219, %222 : vector<8x8x24xf32>
    %cst_166 = arith.constant 0.000000e+00 : f32
    %224 = vector.broadcast %cst_166 : f32 to vector<8x8x24xf32>
    %225 = arith.maximumf %223, %224 : vector<8x8x24xf32>
    %cst_167 = arith.constant 0.000000e+00 : f32
    %226 = vector.broadcast %cst_167 : f32 to vector<10x10x24xf32>
    %c0_168 = arith.constant 0 : index
    %c0_169 = arith.constant 0 : index
    %c0_170 = arith.constant 0 : index
    %227 = vector.load %arg13[%c0_168, %c0_169, %c0_170] : memref<10x10x24xf32, #tpu.memory_space<vmem>>, vector<10x10x24xf32>
    tpu.vector_store %arg13[%c0_168, %c0_169, %c0_170], %226 {strides = array<i32>} : memref<10x10x24xf32, #tpu.memory_space<vmem>>, vector<10x10x24xf32>,
    %c0_171 = arith.constant 0 : index
    %c0_172 = arith.constant 0 : index
    %228 = vector.load %arg7[%c0_171, %c0_172] : memref<9x24xf32, #tpu.memory_space<vmem>>, vector<9x24xf32>
    %c0_173 = arith.constant 0 : index
    %c0_174 = arith.constant 0 : index
    %229 = vector.load %arg8[%c0_173, %c0_174] : memref<1x24xf32, #tpu.memory_space<vmem>>, vector<1x24xf32>
    %c1_175 = arith.constant 1 : index
    %c1_176 = arith.constant 1 : index
    %c0_177 = arith.constant 0 : index
    %230 = vector.load %arg13[%c1_175, %c1_176, %c0_177] : memref<10x10x24xf32, #tpu.memory_space<vmem>>, vector<8x8x24xf32>
    tpu.vector_store %arg13[%c1_175, %c1_176, %c0_177], %225 {strides = array<i32>} : memref<10x10x24xf32, #tpu.memory_space<vmem>>, vector<8x8x24xf32>,
    %c0_178 = arith.constant 0 : index
    %c0_179 = arith.constant 0 : index
    %c0_180 = arith.constant 0 : index
    %231 = vector.load %arg13[%c0_178, %c0_179, %c0_180] : memref<10x10x24xf32, #tpu.memory_space<vmem>>, vector<10x10x24xf32>
    %cst_181 = arith.constant 0.000000e+00 : f32
    %232 = vector.broadcast %cst_181 : f32 to vector<8x8x24xf32>
    %233 = vector.extract_strided_slice %231 {offsets = [0, 0, 0], sizes = [8, 8, 24], strides = [1, 1, 1]} : vector<10x10x24xf32> to vector<8x8x24xf32>
    %234 = vector.extract_strided_slice %228 {offsets = [0, 0], sizes = [1, 24], strides = [1, 1]} : vector<9x24xf32> to vector<1x24xf32>
    %235 = vector.shape_cast %234 : vector<1x24xf32> to vector<1x1x24xf32>
    %236 = vector.broadcast %235 : vector<1x1x24xf32> to vector<8x8x24xf32>
    %237 = arith.mulf %233, %236 : vector<8x8x24xf32>
    %238 = arith.addf %232, %237 : vector<8x8x24xf32>
    %239 = vector.extract_strided_slice %231 {offsets = [0, 1, 0], sizes = [8, 8, 24], strides = [1, 1, 1]} : vector<10x10x24xf32> to vector<8x8x24xf32>
    %240 = vector.extract_strided_slice %228 {offsets = [1, 0], sizes = [1, 24], strides = [1, 1]} : vector<9x24xf32> to vector<1x24xf32>
    %241 = vector.shape_cast %240 : vector<1x24xf32> to vector<1x1x24xf32>
    %242 = vector.broadcast %241 : vector<1x1x24xf32> to vector<8x8x24xf32>
    %243 = arith.mulf %239, %242 : vector<8x8x24xf32>
    %244 = arith.addf %238, %243 : vector<8x8x24xf32>
    %245 = vector.extract_strided_slice %231 {offsets = [0, 2, 0], sizes = [8, 8, 24], strides = [1, 1, 1]} : vector<10x10x24xf32> to vector<8x8x24xf32>
    %246 = vector.extract_strided_slice %228 {offsets = [2, 0], sizes = [1, 24], strides = [1, 1]} : vector<9x24xf32> to vector<1x24xf32>
    %247 = vector.shape_cast %246 : vector<1x24xf32> to vector<1x1x24xf32>
    %248 = vector.broadcast %247 : vector<1x1x24xf32> to vector<8x8x24xf32>
    %249 = arith.mulf %245, %248 : vector<8x8x24xf32>
    %250 = arith.addf %244, %249 : vector<8x8x24xf32>
    %251 = vector.extract_strided_slice %231 {offsets = [1, 0, 0], sizes = [8, 8, 24], strides = [1, 1, 1]} : vector<10x10x24xf32> to vector<8x8x24xf32>
    %252 = vector.extract_strided_slice %228 {offsets = [3, 0], sizes = [1, 24], strides = [1, 1]} : vector<9x24xf32> to vector<1x24xf32>
    %253 = vector.shape_cast %252 : vector<1x24xf32> to vector<1x1x24xf32>
    %254 = vector.broadcast %253 : vector<1x1x24xf32> to vector<8x8x24xf32>
    %255 = arith.mulf %251, %254 : vector<8x8x24xf32>
    %256 = arith.addf %250, %255 : vector<8x8x24xf32>
    %257 = vector.extract_strided_slice %231 {offsets = [1, 1, 0], sizes = [8, 8, 24], strides = [1, 1, 1]} : vector<10x10x24xf32> to vector<8x8x24xf32>
    %258 = vector.extract_strided_slice %228 {offsets = [4, 0], sizes = [1, 24], strides = [1, 1]} : vector<9x24xf32> to vector<1x24xf32>
    %259 = vector.shape_cast %258 : vector<1x24xf32> to vector<1x1x24xf32>
    %260 = vector.broadcast %259 : vector<1x1x24xf32> to vector<8x8x24xf32>
    %261 = arith.mulf %257, %260 : vector<8x8x24xf32>
    %262 = arith.addf %256, %261 : vector<8x8x24xf32>
    %263 = vector.extract_strided_slice %231 {offsets = [1, 2, 0], sizes = [8, 8, 24], strides = [1, 1, 1]} : vector<10x10x24xf32> to vector<8x8x24xf32>
    %264 = vector.extract_strided_slice %228 {offsets = [5, 0], sizes = [1, 24], strides = [1, 1]} : vector<9x24xf32> to vector<1x24xf32>
    %265 = vector.shape_cast %264 : vector<1x24xf32> to vector<1x1x24xf32>
    %266 = vector.broadcast %265 : vector<1x1x24xf32> to vector<8x8x24xf32>
    %267 = arith.mulf %263, %266 : vector<8x8x24xf32>
    %268 = arith.addf %262, %267 : vector<8x8x24xf32>
    %269 = vector.extract_strided_slice %231 {offsets = [2, 0, 0], sizes = [8, 8, 24], strides = [1, 1, 1]} : vector<10x10x24xf32> to vector<8x8x24xf32>
    %270 = vector.extract_strided_slice %228 {offsets = [6, 0], sizes = [1, 24], strides = [1, 1]} : vector<9x24xf32> to vector<1x24xf32>
    %271 = vector.shape_cast %270 : vector<1x24xf32> to vector<1x1x24xf32>
    %272 = vector.broadcast %271 : vector<1x1x24xf32> to vector<8x8x24xf32>
    %273 = arith.mulf %269, %272 : vector<8x8x24xf32>
    %274 = arith.addf %268, %273 : vector<8x8x24xf32>
    %275 = vector.extract_strided_slice %231 {offsets = [2, 1, 0], sizes = [8, 8, 24], strides = [1, 1, 1]} : vector<10x10x24xf32> to vector<8x8x24xf32>
    %276 = vector.extract_strided_slice %228 {offsets = [7, 0], sizes = [1, 24], strides = [1, 1]} : vector<9x24xf32> to vector<1x24xf32>
    %277 = vector.shape_cast %276 : vector<1x24xf32> to vector<1x1x24xf32>
    %278 = vector.broadcast %277 : vector<1x1x24xf32> to vector<8x8x24xf32>
    %279 = arith.mulf %275, %278 : vector<8x8x24xf32>
    %280 = arith.addf %274, %279 : vector<8x8x24xf32>
    %281 = vector.extract_strided_slice %231 {offsets = [2, 2, 0], sizes = [8, 8, 24], strides = [1, 1, 1]} : vector<10x10x24xf32> to vector<8x8x24xf32>
    %282 = vector.extract_strided_slice %228 {offsets = [8, 0], sizes = [1, 24], strides = [1, 1]} : vector<9x24xf32> to vector<1x24xf32>
    %283 = vector.shape_cast %282 : vector<1x24xf32> to vector<1x1x24xf32>
    %284 = vector.broadcast %283 : vector<1x1x24xf32> to vector<8x8x24xf32>
    %285 = arith.mulf %281, %284 : vector<8x8x24xf32>
    %286 = arith.addf %280, %285 : vector<8x8x24xf32>
    %287 = vector.shape_cast %229 : vector<1x24xf32> to vector<1x1x24xf32>
    %288 = vector.broadcast %287 : vector<1x1x24xf32> to vector<8x8x24xf32>
    %289 = arith.addf %286, %288 : vector<8x8x24xf32>
    %cst_182 = arith.constant 0.000000e+00 : f32
    %290 = vector.broadcast %cst_182 : f32 to vector<8x8x24xf32>
    %291 = arith.maximumf %289, %290 : vector<8x8x24xf32>
    %c0_183 = arith.constant 0 : index
    %c0_184 = arith.constant 0 : index
    %292 = vector.load %arg9[%c0_183, %c0_184] : memref<24x8xf32, #tpu.memory_space<vmem>>, vector<24x8xf32>
    %c0_185 = arith.constant 0 : index
    %c0_186 = arith.constant 0 : index
    %293 = vector.load %arg10[%c0_185, %c0_186] : memref<1x8xf32, #tpu.memory_space<vmem>>, vector<1x8xf32>
    %294 = vector.extract_strided_slice %291 {offsets = [0, 0, 0], sizes = [1, 8, 24], strides = [1, 1, 1]} : vector<8x8x24xf32> to vector<1x8x24xf32>
    %295 = vector.shape_cast %294 : vector<1x8x24xf32> to vector<8x24xf32>
    %cst_187 = arith.constant dense<0.000000e+00> : vector<8x8xf32>
    %296 = tpu.matmul %295, %292, %cst_187 {dimension_numbers = #tpu.dot_dimension_numbers<[1], [0], [0], [1], [0, 0, 1, 1], [], []>} : vector<8x24xf32>, vector<24x8xf32>, vector<8x8xf32> -> vector<8x8xf32>
    %297 = vector.broadcast %293 : vector<1x8xf32> to vector<8x8xf32>
    %298 = arith.addf %296, %297 : vector<8x8xf32>
    %c0_188 = arith.constant 0 : index
    %c0_189 = arith.constant 0 : index
    %c0_190 = arith.constant 0 : index
    %c0_191 = arith.constant 0 : index
    %299 = vector.load %arg11[%c0_188, %c0_189, %c0_190, %c0_191] : memref<1x8x8x8xf32, #tpu.memory_space<vmem>>, vector<1x1x8x8xf32>
    %300 = vector.shape_cast %299 : vector<1x1x8x8xf32> to vector<8x8xf32>
    %301 = vector.shape_cast %298 : vector<8x8xf32> to vector<1x1x8x8xf32>
    tpu.vector_store %arg11[%c0_188, %c0_189, %c0_190, %c0_191], %301 {strides = array<i32>} : memref<1x8x8x8xf32, #tpu.memory_space<vmem>>, vector<1x1x8x8xf32>,
    %302 = vector.extract_strided_slice %291 {offsets = [1, 0, 0], sizes = [1, 8, 24], strides = [1, 1, 1]} : vector<8x8x24xf32> to vector<1x8x24xf32>
    %303 = vector.shape_cast %302 : vector<1x8x24xf32> to vector<8x24xf32>
    %cst_192 = arith.constant dense<0.000000e+00> : vector<8x8xf32>
    %304 = tpu.matmul %303, %292, %cst_192 {dimension_numbers = #tpu.dot_dimension_numbers<[1], [0], [0], [1], [0, 0, 1, 1], [], []>} : vector<8x24xf32>, vector<24x8xf32>, vector<8x8xf32> -> vector<8x8xf32>
    %305 = vector.broadcast %293 : vector<1x8xf32> to vector<8x8xf32>
    %306 = arith.addf %304, %305 : vector<8x8xf32>
    %c0_193 = arith.constant 0 : index
    %c1_194 = arith.constant 1 : index
    %c0_195 = arith.constant 0 : index
    %c0_196 = arith.constant 0 : index
    %307 = vector.load %arg11[%c0_193, %c1_194, %c0_195, %c0_196] : memref<1x8x8x8xf32, #tpu.memory_space<vmem>>, vector<1x1x8x8xf32>
    %308 = vector.shape_cast %307 : vector<1x1x8x8xf32> to vector<8x8xf32>
    %309 = vector.shape_cast %306 : vector<8x8xf32> to vector<1x1x8x8xf32>
    tpu.vector_store %arg11[%c0_193, %c1_194, %c0_195, %c0_196], %309 {strides = array<i32>} : memref<1x8x8x8xf32, #tpu.memory_space<vmem>>, vector<1x1x8x8xf32>,
    %310 = vector.extract_strided_slice %291 {offsets = [2, 0, 0], sizes = [1, 8, 24], strides = [1, 1, 1]} : vector<8x8x24xf32> to vector<1x8x24xf32>
    %311 = vector.shape_cast %310 : vector<1x8x24xf32> to vector<8x24xf32>
    %cst_197 = arith.constant dense<0.000000e+00> : vector<8x8xf32>
    %312 = tpu.matmul %311, %292, %cst_197 {dimension_numbers = #tpu.dot_dimension_numbers<[1], [0], [0], [1], [0, 0, 1, 1], [], []>} : vector<8x24xf32>, vector<24x8xf32>, vector<8x8xf32> -> vector<8x8xf32>
    %313 = vector.broadcast %293 : vector<1x8xf32> to vector<8x8xf32>
    %314 = arith.addf %312, %313 : vector<8x8xf32>
    %c0_198 = arith.constant 0 : index
    %c2_199 = arith.constant 2 : index
    %c0_200 = arith.constant 0 : index
    %c0_201 = arith.constant 0 : index
    %315 = vector.load %arg11[%c0_198, %c2_199, %c0_200, %c0_201] : memref<1x8x8x8xf32, #tpu.memory_space<vmem>>, vector<1x1x8x8xf32>
    %316 = vector.shape_cast %315 : vector<1x1x8x8xf32> to vector<8x8xf32>
    %317 = vector.shape_cast %314 : vector<8x8xf32> to vector<1x1x8x8xf32>
    tpu.vector_store %arg11[%c0_198, %c2_199, %c0_200, %c0_201], %317 {strides = array<i32>} : memref<1x8x8x8xf32, #tpu.memory_space<vmem>>, vector<1x1x8x8xf32>,
    %318 = vector.extract_strided_slice %291 {offsets = [3, 0, 0], sizes = [1, 8, 24], strides = [1, 1, 1]} : vector<8x8x24xf32> to vector<1x8x24xf32>
    %319 = vector.shape_cast %318 : vector<1x8x24xf32> to vector<8x24xf32>
    %cst_202 = arith.constant dense<0.000000e+00> : vector<8x8xf32>
    %320 = tpu.matmul %319, %292, %cst_202 {dimension_numbers = #tpu.dot_dimension_numbers<[1], [0], [0], [1], [0, 0, 1, 1], [], []>} : vector<8x24xf32>, vector<24x8xf32>, vector<8x8xf32> -> vector<8x8xf32>
    %321 = vector.broadcast %293 : vector<1x8xf32> to vector<8x8xf32>
    %322 = arith.addf %320, %321 : vector<8x8xf32>
    %c0_203 = arith.constant 0 : index
    %c3_204 = arith.constant 3 : index
    %c0_205 = arith.constant 0 : index
    %c0_206 = arith.constant 0 : index
    %323 = vector.load %arg11[%c0_203, %c3_204, %c0_205, %c0_206] : memref<1x8x8x8xf32, #tpu.memory_space<vmem>>, vector<1x1x8x8xf32>
    %324 = vector.shape_cast %323 : vector<1x1x8x8xf32> to vector<8x8xf32>
    %325 = vector.shape_cast %322 : vector<8x8xf32> to vector<1x1x8x8xf32>
    tpu.vector_store %arg11[%c0_203, %c3_204, %c0_205, %c0_206], %325 {strides = array<i32>} : memref<1x8x8x8xf32, #tpu.memory_space<vmem>>, vector<1x1x8x8xf32>,
    %326 = vector.extract_strided_slice %291 {offsets = [4, 0, 0], sizes = [1, 8, 24], strides = [1, 1, 1]} : vector<8x8x24xf32> to vector<1x8x24xf32>
    %327 = vector.shape_cast %326 : vector<1x8x24xf32> to vector<8x24xf32>
    %cst_207 = arith.constant dense<0.000000e+00> : vector<8x8xf32>
    %328 = tpu.matmul %327, %292, %cst_207 {dimension_numbers = #tpu.dot_dimension_numbers<[1], [0], [0], [1], [0, 0, 1, 1], [], []>} : vector<8x24xf32>, vector<24x8xf32>, vector<8x8xf32> -> vector<8x8xf32>
    %329 = vector.broadcast %293 : vector<1x8xf32> to vector<8x8xf32>
    %330 = arith.addf %328, %329 : vector<8x8xf32>
    %c0_208 = arith.constant 0 : index
    %c4_209 = arith.constant 4 : index
    %c0_210 = arith.constant 0 : index
    %c0_211 = arith.constant 0 : index
    %331 = vector.load %arg11[%c0_208, %c4_209, %c0_210, %c0_211] : memref<1x8x8x8xf32, #tpu.memory_space<vmem>>, vector<1x1x8x8xf32>
    %332 = vector.shape_cast %331 : vector<1x1x8x8xf32> to vector<8x8xf32>
    %333 = vector.shape_cast %330 : vector<8x8xf32> to vector<1x1x8x8xf32>
    tpu.vector_store %arg11[%c0_208, %c4_209, %c0_210, %c0_211], %333 {strides = array<i32>} : memref<1x8x8x8xf32, #tpu.memory_space<vmem>>, vector<1x1x8x8xf32>,
    %334 = vector.extract_strided_slice %291 {offsets = [5, 0, 0], sizes = [1, 8, 24], strides = [1, 1, 1]} : vector<8x8x24xf32> to vector<1x8x24xf32>
    %335 = vector.shape_cast %334 : vector<1x8x24xf32> to vector<8x24xf32>
    %cst_212 = arith.constant dense<0.000000e+00> : vector<8x8xf32>
    %336 = tpu.matmul %335, %292, %cst_212 {dimension_numbers = #tpu.dot_dimension_numbers<[1], [0], [0], [1], [0, 0, 1, 1], [], []>} : vector<8x24xf32>, vector<24x8xf32>, vector<8x8xf32> -> vector<8x8xf32>
    %337 = vector.broadcast %293 : vector<1x8xf32> to vector<8x8xf32>
    %338 = arith.addf %336, %337 : vector<8x8xf32>
    %c0_213 = arith.constant 0 : index
    %c5_214 = arith.constant 5 : index
    %c0_215 = arith.constant 0 : index
    %c0_216 = arith.constant 0 : index
    %339 = vector.load %arg11[%c0_213, %c5_214, %c0_215, %c0_216] : memref<1x8x8x8xf32, #tpu.memory_space<vmem>>, vector<1x1x8x8xf32>
    %340 = vector.shape_cast %339 : vector<1x1x8x8xf32> to vector<8x8xf32>
    %341 = vector.shape_cast %338 : vector<8x8xf32> to vector<1x1x8x8xf32>
    tpu.vector_store %arg11[%c0_213, %c5_214, %c0_215, %c0_216], %341 {strides = array<i32>} : memref<1x8x8x8xf32, #tpu.memory_space<vmem>>, vector<1x1x8x8xf32>,
    %342 = vector.extract_strided_slice %291 {offsets = [6, 0, 0], sizes = [1, 8, 24], strides = [1, 1, 1]} : vector<8x8x24xf32> to vector<1x8x24xf32>
    %343 = vector.shape_cast %342 : vector<1x8x24xf32> to vector<8x24xf32>
    %cst_217 = arith.constant dense<0.000000e+00> : vector<8x8xf32>
    %344 = tpu.matmul %343, %292, %cst_217 {dimension_numbers = #tpu.dot_dimension_numbers<[1], [0], [0], [1], [0, 0, 1, 1], [], []>} : vector<8x24xf32>, vector<24x8xf32>, vector<8x8xf32> -> vector<8x8xf32>
    %345 = vector.broadcast %293 : vector<1x8xf32> to vector<8x8xf32>
    %346 = arith.addf %344, %345 : vector<8x8xf32>
    %c0_218 = arith.constant 0 : index
    %c6_219 = arith.constant 6 : index
    %c0_220 = arith.constant 0 : index
    %c0_221 = arith.constant 0 : index
    %347 = vector.load %arg11[%c0_218, %c6_219, %c0_220, %c0_221] : memref<1x8x8x8xf32, #tpu.memory_space<vmem>>, vector<1x1x8x8xf32>
    %348 = vector.shape_cast %347 : vector<1x1x8x8xf32> to vector<8x8xf32>
    %349 = vector.shape_cast %346 : vector<8x8xf32> to vector<1x1x8x8xf32>
    tpu.vector_store %arg11[%c0_218, %c6_219, %c0_220, %c0_221], %349 {strides = array<i32>} : memref<1x8x8x8xf32, #tpu.memory_space<vmem>>, vector<1x1x8x8xf32>,
    %350 = vector.extract_strided_slice %291 {offsets = [7, 0, 0], sizes = [1, 8, 24], strides = [1, 1, 1]} : vector<8x8x24xf32> to vector<1x8x24xf32>
    %351 = vector.shape_cast %350 : vector<1x8x24xf32> to vector<8x24xf32>
    %cst_222 = arith.constant dense<0.000000e+00> : vector<8x8xf32>
    %352 = tpu.matmul %351, %292, %cst_222 {dimension_numbers = #tpu.dot_dimension_numbers<[1], [0], [0], [1], [0, 0, 1, 1], [], []>} : vector<8x24xf32>, vector<24x8xf32>, vector<8x8xf32> -> vector<8x8xf32>
    %353 = vector.broadcast %293 : vector<1x8xf32> to vector<8x8xf32>
    %354 = arith.addf %352, %353 : vector<8x8xf32>
    %c0_223 = arith.constant 0 : index
    %c7_224 = arith.constant 7 : index
    %c0_225 = arith.constant 0 : index
    %c0_226 = arith.constant 0 : index
    %355 = vector.load %arg11[%c0_223, %c7_224, %c0_225, %c0_226] : memref<1x8x8x8xf32, #tpu.memory_space<vmem>>, vector<1x1x8x8xf32>
    %356 = vector.shape_cast %355 : vector<1x1x8x8xf32> to vector<8x8xf32>
    %357 = vector.shape_cast %354 : vector<8x8xf32> to vector<1x1x8x8xf32>
    tpu.vector_store %arg11[%c0_223, %c7_224, %c0_225, %c0_226], %357 {strides = array<i32>} : memref<1x8x8x8xf32, #tpu.memory_space<vmem>>, vector<1x1x8x8xf32>,
    return
  }
  func.func @transform_0(%arg0: i32) -> (i32, i32, i32) {
    %c0_i32 = arith.constant 0 : i32
    %c0_i32_0 = arith.constant 0 : i32
    %c0_i32_1 = arith.constant 0 : i32
    return %arg0, %c0_i32, %c0_i32_0 : i32, i32, i32
  }
  func.func @transform_1(%arg0: i32) -> (i32, i32) {
    %c0_i32 = arith.constant 0 : i32
    %c0_i32_0 = arith.constant 0 : i32
    %c0_i32_1 = arith.constant 0 : i32
    return %c0_i32, %c0_i32_0 : i32, i32
  }
  func.func @transform_2(%arg0: i32) -> (i32, i32) {
    %c0_i32 = arith.constant 0 : i32
    %c0_i32_0 = arith.constant 0 : i32
    %c0_i32_1 = arith.constant 0 : i32
    return %c0_i32, %c0_i32_0 : i32, i32
  }
  func.func @transform_3(%arg0: i32) -> (i32, i32) {
    %c0_i32 = arith.constant 0 : i32
    %c0_i32_0 = arith.constant 0 : i32
    %c0_i32_1 = arith.constant 0 : i32
    return %c0_i32, %c0_i32_0 : i32, i32
  }
  func.func @transform_4(%arg0: i32) -> (i32, i32) {
    %c0_i32 = arith.constant 0 : i32
    %c0_i32_0 = arith.constant 0 : i32
    %c0_i32_1 = arith.constant 0 : i32
    return %c0_i32, %c0_i32_0 : i32, i32
  }
  func.func @transform_5(%arg0: i32) -> (i32, i32) {
    %c0_i32 = arith.constant 0 : i32
    %c0_i32_0 = arith.constant 0 : i32
    %c0_i32_1 = arith.constant 0 : i32
    return %c0_i32, %c0_i32_0 : i32, i32
  }
  func.func @transform_6(%arg0: i32) -> (i32, i32) {
    %c0_i32 = arith.constant 0 : i32
    %c0_i32_0 = arith.constant 0 : i32
    %c0_i32_1 = arith.constant 0 : i32
    return %c0_i32, %c0_i32_0 : i32, i32
  }
  func.func @transform_7(%arg0: i32) -> (i32, i32) {
    %c0_i32 = arith.constant 0 : i32
    %c0_i32_0 = arith.constant 0 : i32
    %c0_i32_1 = arith.constant 0 : i32
    return %c0_i32, %c0_i32_0 : i32, i32
  }
  func.func @transform_8(%arg0: i32) -> (i32, i32) {
    %c0_i32 = arith.constant 0 : i32
    %c0_i32_0 = arith.constant 0 : i32
    %c0_i32_1 = arith.constant 0 : i32
    return %c0_i32, %c0_i32_0 : i32, i32
  }
  func.func @transform_9(%arg0: i32) -> (i32, i32) {
    %c0_i32 = arith.constant 0 : i32
    %c0_i32_0 = arith.constant 0 : i32
    %c0_i32_1 = arith.constant 0 : i32
    return %c0_i32, %c0_i32_0 : i32, i32
  }
  func.func @transform_10(%arg0: i32) -> (i32, i32, i32, i32) {
    %c0_i32 = arith.constant 0 : i32
    %c0_i32_0 = arith.constant 0 : i32
    %c0_i32_1 = arith.constant 0 : i32
    %c0_i32_2 = arith.constant 0 : i32
    return %arg0, %c0_i32, %c0_i32_0, %c0_i32_1 : i32, i32, i32, i32
  }
}

</mosaic_0001>

<llo_original>
// kernel: mbconv_forward.1
$region0: #{mbconv_forward.1}
  #allocation0 [shape = 'u32[]', space=smem, size = 0x4, offset = 0x4, fixed_abs, tag = 'smem constant byte address 0x4 - core index']
  #allocation1 [shape = 'u32[144,128]{1,0:T(1,128)}', space=vmem, size = 0x12000, scoped, tag = 'internal scratch']
  #allocation2 [shape = 'f32[4,9,9,24]{3,2,1,0:T(8,128)}', space=vmem, size = 0x48000, scoped, tag = 'scratch operand']
  #allocation3 [shape = 'f32[10,10,24]{2,1,0:T(8,128)}', space=vmem, size = 0x14000, scoped, tag = 'scratch operand']
  %s0 = inlined_call_operand.vmem [shape: f32[2,324,4], index: 0, kind: input, shape index: {}]
  %s1 = inlined_call_operand.vmem [shape: f32[324,1], index: 1, kind: input, shape index: {}]
  %s2 = inlined_call_operand.vmem [shape: f32[4,24], index: 2, kind: input, shape index: {}]
  %s3 = inlined_call_operand.vmem [shape: f32[1,24], index: 3, kind: input, shape index: {}]
  %s4 = inlined_call_operand.vmem [shape: f32[9,24], index: 4, kind: input, shape index: {}]
  %s5 = inlined_call_operand.vmem [shape: f32[1,24], index: 5, kind: input, shape index: {}]
  %s6 = inlined_call_operand.vmem [shape: f32[9,24], index: 6, kind: input, shape index: {}]
  %s7 = inlined_call_operand.vmem [shape: f32[1,24], index: 7, kind: input, shape index: {}]
  %s8 = inlined_call_operand.vmem [shape: f32[24,8], index: 8, kind: input, shape index: {}]
  %s9 = inlined_call_operand.vmem [shape: f32[1,8], index: 9, kind: input, shape index: {}]
  %s10 = inlined_call_operand.vmem [shape: f32[2,8,8,8], index: 10, kind: output, shape index: {}]
  %s11 = sld [smem:[#allocation0]]
  $region73: #{mbconv_forward.1} parent=0
    _
  %s13 = ssub.s32 1, %s11
  %s14 = scalar_select 0, %s13, %s11
  loop: start=0, step=1, limit=4
  $region2: #{mbconv_forward.1} parent=0 // loop_pre_header
    _
  $region3: #{mbconv_forward.1} parent=0 // loop_header
    %s16 = sphi 0, %s20
    %p17 = scmp.ge.s32.totalorder %s16, 4
    %s26 = sphi 0, %s28
    %s29 = sphi 0, %s26
    %s30 = sphi 0, %s29
    %s46 = sphi 0, %s30
    %s50 = sphi 0, %s50
    %s52 = sphi 0, %s50
    %s53 = sphi 0, %s52
    %s67 = sphi 0, %s53
    %s71 = sphi 0, %s71
    %s73 = sphi 0, %s71
    %s74 = sphi 0, %s73
    %s88 = sphi 0, %s74
    %s92 = sphi 0, %s92
    %s94 = sphi 0, %s92
    %s95 = sphi 0, %s94
    %s109 = sphi 0, %s95
    %s113 = sphi 0, %s113
    %s115 = sphi 0, %s113
    %s116 = sphi 0, %s115
    %s130 = sphi 0, %s116
    %s134 = sphi 0, %s134
    %s136 = sphi 0, %s134
    %s137 = sphi 0, %s136
    %s151 = sphi 0, %s137
    %s155 = sphi 0, %s155
    %s157 = sphi 0, %s155
    %s158 = sphi 0, %s157
    %s172 = sphi 0, %s158
    %s176 = sphi 0, %s176
    %s178 = sphi 0, %s176
    %s179 = sphi 0, %s178
    %s193 = sphi 0, %s179
    %s197 = sphi 0, %s197
    %s199 = sphi 0, %s197
    %s200 = sphi 0, %s199
    %s214 = sphi 0, %s200
    %s218 = sphi 0, %s218
    %s220 = sphi 0, %s218
    %s221 = sphi 0, %s220
    %s235 = sphi 0, %s221
    %s241 = sphi 0, %s243
    %s244 = sphi 0, %s241
    %s245 = sphi 0, %s244
    %s261 = sphi 0, %s245
  $region4: #{mbconv_forward.1} parent=0 // loop_header_branch
    %19 = sbr.rel (%p17) target = $region8
  $region5: #{mbconv_forward.1} parent=0 // loop_body
    %s21 = ssub.s32 %s16, 1
    %s22 = ssub.s32 %s16, 2
    %s23 = sadd.s32 %s16, 1
    %s24 = ssub.s32 %s16, %s23
    %p25 = scmp.eq.s32.totalorder %s24, 0
    %s27 = sadd.s32 %s26, 1
    %s28 = scalar_select %p25, %s26, %s27
    %p31 = pneg %p25
    %p32 = scmp.eq.s32.totalorder %s16, 1
    %p33 = por %p31, %p32
    %p34 = scmp.ne.s32.totalorder %s26, %s29
    %p35 = scmp.eq.s32.totalorder %s16, 0
    %p36 = por %p34, %p35
    %p37 = scmp.ne.s32.totalorder %s26, %s29
    %p38 = scmp.eq.s32.totalorder %s21, 1
    %p39 = por %p37, %p38
    %p40 = scmp.ne.s32.totalorder %s29, %s30
    %p41 = scmp.eq.s32.totalorder %s21, 0
    %p42 = por %p40, %p41
    %p43 = scmp.ne.s32.totalorder %s29, %s30
    %p44 = scmp.eq.s32.totalorder %s22, 1
    %p45 = por %p43, %p44
    %p47 = scmp.ne.s32.totalorder %s30, %s46
    %p48 = scmp.eq.s32.totalorder %s22, 0
    %p49 = por %p47, %p48
    %s51 = sadd.s32 %s50, 1
    %p54 = scmp.eq.s32.totalorder %s16, 1
    %p55 = scmp.ne.s32.totalorder %s50, %s52
    %p56 = scmp.eq.s32.totalorder %s16, 0
    %p57 = por %p55, %p56
    %p58 = scmp.ne.s32.totalorder %s50, %s52
    %p59 = scmp.eq.s32.totalorder %s21, 1
    %p60 = por %p58, %p59
    %p61 = scmp.ne.s32.totalorder %s52, %s53
    %p62 = scmp.eq.s32.totalorder %s21, 0
    %p63 = por %p61, %p62
    %p64 = scmp.ne.s32.totalorder %s52, %s53
    %p65 = scmp.eq.s32.totalorder %s22, 1
    %p66 = por %p64, %p65
    %p68 = scmp.ne.s32.totalorder %s53, %s67
    %p69 = scmp.eq.s32.totalorder %s22, 0
    %p70 = por %p68, %p69
    %s72 = sadd.s32 %s71, 1
    %p75 = scmp.eq.s32.totalorder %s16, 1
    %p76 = scmp.ne.s32.totalorder %s71, %s73
    %p77 = scmp.eq.s32.totalorder %s16, 0
    %p78 = por %p76, %p77
    %p79 = scmp.ne.s32.totalorder %s71, %s73
    %p80 = scmp.eq.s32.totalorder %s21, 1
    %p81 = por %p79, %p80
    %p82 = scmp.ne.s32.totalorder %s73, %s74
    %p83 = scmp.eq.s32.totalorder %s21, 0
    %p84 = por %p82, %p83
    %p85 = scmp.ne.s32.totalorder %s73, %s74
    %p86 = scmp.eq.s32.totalorder %s22, 1
    %p87 = por %p85, %p86
    %p89 = scmp.ne.s32.totalorder %s74, %s88
    %p90 = scmp.eq.s32.totalorder %s22, 0
    %p91 = por %p89, %p90
    %s93 = sadd.s32 %s92, 1
    %p96 = scmp.eq.s32.totalorder %s16, 1
    %p97 = scmp.ne.s32.totalorder %s92, %s94
    %p98 = scmp.eq.s32.totalorder %s16, 0
    %p99 = por %p97, %p98
    %p100 = scmp.ne.s32.totalorder %s92, %s94
    %p101 = scmp.eq.s32.totalorder %s21, 1
    %p102 = por %p100, %p101
    %p103 = scmp.ne.s32.totalorder %s94, %s95
    %p104 = scmp.eq.s32.totalorder %s21, 0
    %p105 = por %p103, %p104
    %p106 = scmp.ne.s32.totalorder %s94, %s95
    %p107 = scmp.eq.s32.totalorder %s22, 1
    %p108 = por %p106, %p107
    %p110 = scmp.ne.s32.totalorder %s95, %s109
    %p111 = scmp.eq.s32.totalorder %s22, 0
    %p112 = por %p110, %p111
    %s114 = sadd.s32 %s113, 1
    %p117 = scmp.eq.s32.totalorder %s16, 1
    %p118 = scmp.ne.s32.totalorder %s113, %s115
    %p119 = scmp.eq.s32.totalorder %s16, 0
    %p120 = por %p118, %p119
    %p121 = scmp.ne.s32.totalorder %s113, %s115
    %p122 = scmp.eq.s32.totalorder %s21, 1
    %p123 = por %p121, %p122
    %p124 = scmp.ne.s32.totalorder %s115, %s116
    %p125 = scmp.eq.s32.totalorder %s21, 0
    %p126 = por %p124, %p125
    %p127 = scmp.ne.s32.totalorder %s115, %s116
    %p128 = scmp.eq.s32.totalorder %s22, 1
    %p129 = por %p127, %p128
    %p131 = scmp.ne.s32.totalorder %s116, %s130
    %p132 = scmp.eq.s32.totalorder %s22, 0
    %p133 = por %p131, %p132
    %s135 = sadd.s32 %s134, 1
    %p138 = scmp.eq.s32.totalorder %s16, 1
    %p139 = scmp.ne.s32.totalorder %s134, %s136
    %p140 = scmp.eq.s32.totalorder %s16, 0
    %p141 = por %p139, %p140
    %p142 = scmp.ne.s32.totalorder %s134, %s136
    %p143 = scmp.eq.s32.totalorder %s21, 1
    %p144 = por %p142, %p143
    %p145 = scmp.ne.s32.totalorder %s136, %s137
    %p146 = scmp.eq.s32.totalorder %s21, 0
    %p147 = por %p145, %p146
    %p148 = scmp.ne.s32.totalorder %s136, %s137
    %p149 = scmp.eq.s32.totalorder %s22, 1
    %p150 = por %p148, %p149
    %p152 = scmp.ne.s32.totalorder %s137, %s151
    %p153 = scmp.eq.s32.totalorder %s22, 0
    %p154 = por %p152, %p153
    %s156 = sadd.s32 %s155, 1
    %p159 = scmp.eq.s32.totalorder %s16, 1
    %p160 = scmp.ne.s32.totalorder %s155, %s157
    %p161 = scmp.eq.s32.totalorder %s16, 0
    %p162 = por %p160, %p161
    %p163 = scmp.ne.s32.totalorder %s155, %s157
    %p164 = scmp.eq.s32.totalorder %s21, 1
    %p165 = por %p163, %p164
    %p166 = scmp.ne.s32.totalorder %s157, %s158
    %p167 = scmp.eq.s32.totalorder %s21, 0
    %p168 = por %p166, %p167
    %p169 = scmp.ne.s32.totalorder %s157, %s158
    %p170 = scmp.eq.s32.totalorder %s22, 1
    %p171 = por %p169, %p170
    %p173 = scmp.ne.s32.totalorder %s158, %s172
    %p174 = scmp.eq.s32.totalorder %s22, 0
    %p175 = por %p173, %p174
    %s177 = sadd.s32 %s176, 1
    %p180 = scmp.eq.s32.totalorder %s16, 1
    %p181 = scmp.ne.s32.totalorder %s176, %s178
    %p182 = scmp.eq.s32.totalorder %s16, 0
    %p183 = por %p181, %p182
    %p184 = scmp.ne.s32.totalorder %s176, %s178
    %p185 = scmp.eq.s32.totalorder %s21, 1
    %p186 = por %p184, %p185
    %p187 = scmp.ne.s32.totalorder %s178, %s179
    %p188 = scmp.eq.s32.totalorder %s21, 0
    %p189 = por %p187, %p188
    %p190 = scmp.ne.s32.totalorder %s178, %s179
    %p191 = scmp.eq.s32.totalorder %s22, 1
    %p192 = por %p190, %p191
    %p194 = scmp.ne.s32.totalorder %s179, %s193
    %p195 = scmp.eq.s32.totalorder %s22, 0
    %p196 = por %p194, %p195
    %s198 = sadd.s32 %s197, 1
    %p201 = scmp.eq.s32.totalorder %s16, 1
    %p202 = scmp.ne.s32.totalorder %s197, %s199
    %p203 = scmp.eq.s32.totalorder %s16, 0
    %p204 = por %p202, %p203
    %p205 = scmp.ne.s32.totalorder %s197, %s199
    %p206 = scmp.eq.s32.totalorder %s21, 1
    %p207 = por %p205, %p206
    %p208 = scmp.ne.s32.totalorder %s199, %s200
    %p209 = scmp.eq.s32.totalorder %s21, 0
    %p210 = por %p208, %p209
    %p211 = scmp.ne.s32.totalorder %s199, %s200
    %p212 = scmp.eq.s32.totalorder %s22, 1
    %p213 = por %p211, %p212
    %p215 = scmp.ne.s32.totalorder %s200, %s214
    %p216 = scmp.eq.s32.totalorder %s22, 0
    %p217 = por %p215, %p216
    %s219 = sadd.s32 %s218, 1
    %p222 = scmp.eq.s32.totalorder %s16, 1
    %p223 = scmp.ne.s32.totalorder %s218, %s220
    %p224 = scmp.eq.s32.totalorder %s16, 0
    %p225 = por %p223, %p224
    %p226 = scmp.ne.s32.totalorder %s218, %s220
    %p227 = scmp.eq.s32.totalorder %s21, 1
    %p228 = por %p226, %p227
    %p229 = scmp.ne.s32.totalorder %s220, %s221
    %p230 = scmp.eq.s32.totalorder %s21, 0
    %p231 = por %p229, %p230
    %p232 = scmp.ne.s32.totalorder %s220, %s221
    %p233 = scmp.eq.s32.totalorder %s22, 1
    %p234 = por %p232, %p233
    %p236 = scmp.ne.s32.totalorder %s221, %s235
    %p237 = scmp.eq.s32.totalorder %s22, 0
    %p238 = por %p236, %p237
    %s239 = ssub.s32 %s16, %s23
    %p240 = scmp.eq.s32.totalorder %s239, 0
    %s242 = sadd.s32 %s241, 1
    %s243 = scalar_select %p240, %s241, %s242
    %p246 = pneg %p240
    %p247 = scmp.eq.s32.totalorder %s16, 1
    %p248 = por %p246, %p247
    %p249 = scmp.ne.s32.totalorder %s241, %s244
    %p250 = scmp.eq.s32.totalorder %s16, 0
    %p251 = por %p249, %p250
    %p252 = scmp.ne.s32.totalorder %s241, %s244
    %p253 = scmp.eq.s32.totalorder %s21, 1
    %p254 = por %p252, %p253
    %p255 = scmp.ne.s32.totalorder %s244, %s245
    %p256 = scmp.eq.s32.totalorder %s21, 0
    %p257 = por %p255, %p256
    %p258 = scmp.ne.s32.totalorder %s244, %s245
    %p259 = scmp.eq.s32.totalorder %s22, 1
    %p260 = por %p258, %p259
    %p262 = scmp.ne.s32.totalorder %s245, %s261
    %p263 = scmp.eq.s32.totalorder %s22, 0
    %p264 = por %p262, %p263
    %p265 = scmp.le.s32.totalorder 1, %s16
    %p266 = scmp.lt.s32.totalorder %s16, 3
    %p267 = pnand %p265, %p266
    %p268 = pneg %p267
    // Predicated region
    $region9: #{mbconv_forward.1} parent=5 // pred_check
      _
    $region10: #{mbconv_forward.1} parent=5 // pred_check_branch
      %270 = sbr.rel (%p267) target = $region12
    $region11: #{mbconv_forward.1} parent=5 // pred_region
      %s271 = ssub.s32 %s16, 1
      // Predicated region
      $region13: #{mbconv_forward.1} parent=11 // pred_check
        %p272 = pneg %p63
      $region14: #{mbconv_forward.1} parent=11 // pred_check_branch
        %274 = sbr.rel (%p272) target = $region16
      $region15: #{mbconv_forward.1} parent=11 // pred_region
        _
      $region16: #{mbconv_forward.1} parent=11 // pred_fallthru
        _
      // Predicated region
      $region17: #{mbconv_forward.1} parent=11 // pred_check
        %p275 = pneg %p84
      $region18: #{mbconv_forward.1} parent=11 // pred_check_branch
        %277 = sbr.rel (%p275) target = $region20
      $region19: #{mbconv_forward.1} parent=11 // pred_region
        _
      $region20: #{mbconv_forward.1} parent=11 // pred_fallthru
        _
      // Predicated region
      $region21: #{mbconv_forward.1} parent=11 // pred_check
        %p278 = pneg %p105
      $region22: #{mbconv_forward.1} parent=11 // pred_check_branch
        %280 = sbr.rel (%p278) target = $region24
      $region23: #{mbconv_forward.1} parent=11 // pred_region
        _
      $region24: #{mbconv_forward.1} parent=11 // pred_fallthru
        _
      // Predicated region
      $region25: #{mbconv_forward.1} parent=11 // pred_check
        %p281 = pneg %p126
      $region26: #{mbconv_forward.1} parent=11 // pred_check_branch
        %283 = sbr.rel (%p281) target = $region28
      $region27: #{mbconv_forward.1} parent=11 // pred_region
        _
      $region28: #{mbconv_forward.1} parent=11 // pred_fallthru
        _
      // Predicated region
      $region29: #{mbconv_forward.1} parent=11 // pred_check
        %p284 = pneg %p147
      $region30: #{mbconv_forward.1} parent=11 // pred_check_branch
        %286 = sbr.rel (%p284) target = $region32
      $region31: #{mbconv_forward.1} parent=11 // pred_region
        _
      $region32: #{mbconv_forward.1} parent=11 // pred_fallthru
        _
      // Predicated region
      $region33: #{mbconv_forward.1} parent=11 // pred_check
        %p287 = pneg %p168
      $region34: #{mbconv_forward.1} parent=11 // pred_check_branch
        %289 = sbr.rel (%p287) target = $region36
      $region35: #{mbconv_forward.1} parent=11 // pred_region
        _
      $region36: #{mbconv_forward.1} parent=11 // pred_fallthru
        _
      // Predicated region
      $region37: #{mbconv_forward.1} parent=11 // pred_check
        %p290 = pneg %p189
      $region38: #{mbconv_forward.1} parent=11 // pred_check_branch
        %292 = sbr.rel (%p290) target = $region40
      $region39: #{mbconv_forward.1} parent=11 // pred_region
        _
      $region40: #{mbconv_forward.1} parent=11 // pred_fallthru
        _
      // Predicated region
      $region41: #{mbconv_forward.1} parent=11 // pred_check
        %p293 = pneg %p210
      $region42: #{mbconv_forward.1} parent=11 // pred_check_branch
        %295 = sbr.rel (%p293) target = $region44
      $region43: #{mbconv_forward.1} parent=11 // pred_region
        _
      $region44: #{mbconv_forward.1} parent=11 // pred_fallthru
        _
      // Predicated region
      $region45: #{mbconv_forward.1} parent=11 // pred_check
        %p296 = pneg %p231
      $region46: #{mbconv_forward.1} parent=11 // pred_check_branch
        %298 = sbr.rel (%p296) target = $region48
      $region47: #{mbconv_forward.1} parent=11 // pred_region
        _
      $region48: #{mbconv_forward.1} parent=11 // pred_fallthru
        _
    $region12: #{mbconv_forward.1} parent=5 // pred_fallthru
      _
    %p299 = scmp.lt.s32.totalorder %s16, 2
    // Predicated region
    $region49: #{mbconv_forward.1} parent=5 // pred_check
      %p300 = pneg %p299
    $region50: #{mbconv_forward.1} parent=5 // pred_check_branch
      %302 = sbr.rel (%p300) target = $region52
    $region51: #{mbconv_forward.1} parent=5 // pred_region
      // Predicated region
      $region53: #{mbconv_forward.1} parent=51 // pred_check
        %p303 = pneg %p36
      $region54: #{mbconv_forward.1} parent=51 // pred_check_branch
        %305 = sbr.rel (%p303) target = $region56
      $region55: #{mbconv_forward.1} parent=51 // pred_region
        %p306 = scmp.lt.s32.totalorder %s16, 1
        %s307 = scalar_select %p306, %s16, 1
        %s308 = smul.addr %s307, 41
        %s309 = smul.addr %s308, 8
        %s310 = scalar_lea.vmem %s0, %s309
      $region56: #{mbconv_forward.1} parent=51 // pred_fallthru
        _
    $region52: #{mbconv_forward.1} parent=5 // pred_fallthru
      _
    %p311 = scmp.le.s32.totalorder 1, %s16
    %p312 = scmp.lt.s32.totalorder %s16, 3
    %p313 = pnand %p311, %p312
    %p314 = pneg %p313
    // Predicated region
    $region57: #{mbconv_forward.1} parent=5 // pred_check
      _
    $region58: #{mbconv_forward.1} parent=5 // pred_check_branch
      %316 = sbr.rel (%p313) target = $region60
    $region59: #{mbconv_forward.1} parent=5 // pred_region
      %s317 = ssub.s32 %s16, 1
      %p318 = scmp.lt.s32.totalorder %s21, 1
      %s319 = scalar_select %p318, %s21, 1
      %s320 = smul.addr %s319, 41
      %s321 = smul.addr %s320, 8
      %s322 = scalar_lea.vmem %s0, %s321
      %p323 = pneg %p42
      %p324 = pneg %p39
      %p325 = pneg %p63
      %p326 = pneg %p60
      %p327 = pneg %p84
      %p328 = pneg %p81
      %p329 = pneg %p105
      %p330 = pneg %p102
      %p331 = pneg %p126
      %p332 = pneg %p123
      %p333 = pneg %p147
      %p334 = pneg %p144
      %p335 = pneg %p168
      %p336 = pneg %p165
      %p337 = pneg %p189
      %p338 = pneg %p186
      %p339 = pneg %p210
      %p340 = pneg %p207
      %p341 = pneg %p231
      %p342 = pneg %p228
      %p343 = pneg %p257
      %p344 = pneg %p254
      %p345 = scmp.lt.s32.totalorder %s21, 1
      %s346 = scalar_select %p345, %s21, 1
      %s347 = smul.addr %s346, 8
      %s348 = smul.addr %s347, 8
      %s349 = scalar_lea.vmem %s10, %s348
      %p350 = scmp.lt.s32.totalorder %s21, 1
      %s351 = scalar_select %p350, %s21, 1
      %s352 = smul.addr %s351, 41
      %s353 = smul.addr %s352, 8
      %s354 = scalar_lea.vmem %s0, %s353
      %p355 = scmp.lt.s32.totalorder %s21, 1
      %s356 = scalar_select %p355, %s21, 1
      %s357 = smul.addr %s356, 8
      %s358 = smul.addr %s357, 8
      %s359 = scalar_lea.vmem %s10, %s358
      %v360 = vld [vmem:[%s354] sm:$0xff]
      %v361 = vld [vmem:[%s354 + $0x8] sm:$0xff]
      %v362 = vld [vmem:[%s354 + $0x10] sm:$0xff]
      %v363 = vld [vmem:[%s354 + $0x18] sm:$0xff]
      %v364 = vld [vmem:[%s354 + $0x20] sm:$0xff]
      %v365 = vld [vmem:[%s354 + $0x28] sm:$0xff]
      %v366 = vld [vmem:[%s354 + $0x30] sm:$0xff]
      %v367 = vld [vmem:[%s354 + $0x38] sm:$0xff]
      %v368 = vld [vmem:[%s354 + $0x40] sm:$0xff]
      %v369 = vld [vmem:[%s354 + $0x48] sm:$0xff]
      %v370 = vld [vmem:[%s354 + $0x50] sm:$0xff]
      %v371 = vld [vmem:[%s354 + $0x58] sm:$0xff]
      %v372 = vld [vmem:[%s354 + $0x60] sm:$0xff]
      %v373 = vld [vmem:[%s354 + $0x68] sm:$0xff]
      %v374 = vld [vmem:[%s354 + $0x70] sm:$0xff]
      %v375 = vld [vmem:[%s354 + $0x78] sm:$0xff]
      %v376 = vld [vmem:[%s354 + $0x80] sm:$0xff]
      %v377 = vld [vmem:[%s354 + $0x88] sm:$0xff]
      %v378 = vld [vmem:[%s354 + $0x90] sm:$0xff]
      %v379 = vld [vmem:[%s354 + $0x98] sm:$0xff]
      %v380 = vld [vmem:[%s354 + $0xa0] sm:$0xff]
      %v381 = vld [vmem:[%s354 + $0xa8] sm:$0xff]
      %v382 = vld [vmem:[%s354 + $0xb0] sm:$0xff]
      %v383 = vld [vmem:[%s354 + $0xb8] sm:$0xff]
      %v384 = vld [vmem:[%s354 + $0xc0] sm:$0xff]
      %v385 = vld [vmem:[%s354 + $0xc8] sm:$0xff]
      %v386 = vld [vmem:[%s354 + $0xd0] sm:$0xff]
      %v387 = vld [vmem:[%s354 + $0xd8] sm:$0xff]
      %v388 = vld [vmem:[%s354 + $0xe0] sm:$0xff]
      %v389 = vld [vmem:[%s354 + $0xe8] sm:$0xff]
      %v390 = vld [vmem:[%s354 + $0xf0] sm:$0xff]
      %v391 = vld [vmem:[%s354 + $0xf8] sm:$0xff]
      %v392 = vld [vmem:[%s354 + $0x100] sm:$0xff]
      %v393 = vld [vmem:[%s354 + $0x108] sm:$0xff]
      %v394 = vld [vmem:[%s354 + $0x110] sm:$0xff]
      %v395 = vld [vmem:[%s354 + $0x118] sm:$0xff]
      %v396 = vld [vmem:[%s354 + $0x120] sm:$0xff]
      %v397 = vld [vmem:[%s354 + $0x128] sm:$0xff]
      %v398 = vld [vmem:[%s354 + $0x130] sm:$0xff]
      %v399 = vld [vmem:[%s354 + $0x138] sm:$0xff]
      %v400 = vld [vmem:[%s354 + $0x140] sm:$0xf]
      %v401 = vld [vmem:[%s2] sm:$0xf]
      %v402 = vld [vmem:[%s3] sm:$0x1]
      %v404 = vlaneseq
      %v405 = vshrl.u32 %v404, 7
      %v406 = vsub.s32 0, %v405
      %v407 = vrot.slane %v402, %v406
      %vm409 = vcmask 31744
      %v411 = vsel %vm409, %v360, 0
      %v414 = vsel %vm409, %v361, 0
      %v417 = vsel %vm409, %v362, 0
      %v420 = vsel %vm409, %v363, 0
      %v423 = vsel %vm409, %v364, 0
      %v426 = vsel %vm409, %v365, 0
      %v429 = vsel %vm409, %v366, 0
      %v432 = vsel %vm409, %v367, 0
      %v435 = vsel %vm409, %v368, 0
      %v438 = vsel %vm409, %v369, 0
      %v441 = vsel %vm409, %v370, 0
      %v444 = vsel %vm409, %v371, 0
      %v447 = vsel %vm409, %v372, 0
      %v450 = vsel %vm409, %v373, 0
      %v453 = vsel %vm409, %v374, 0
      %v456 = vsel %vm409, %v375, 0
      %v459 = vsel %vm409, %v376, 0
      %v462 = vsel %vm409, %v377, 0
      %v465 = vsel %vm409, %v378, 0
      %v468 = vsel %vm409, %v379, 0
      %v471 = vsel %vm409, %v380, 0
      %v474 = vsel %vm409, %v381, 0
      %v477 = vsel %vm409, %v382, 0
      %v480 = vsel %vm409, %v383, 0
      %v483 = vsel %vm409, %v384, 0
      %v486 = vsel %vm409, %v385, 0
      %v489 = vsel %vm409, %v386, 0
      %v492 = vsel %vm409, %v387, 0
      %v495 = vsel %vm409, %v388, 0
      %v498 = vsel %vm409, %v389, 0
      %v501 = vsel %vm409, %v390, 0
      %v504 = vsel %vm409, %v391, 0
      %v507 = vsel %vm409, %v392, 0
      %v510 = vsel %vm409, %v393, 0
      %v513 = vsel %vm409, %v394, 0
      %v516 = vsel %vm409, %v395, 0
      %v519 = vsel %vm409, %v396, 0
      %v522 = vsel %vm409, %v397, 0
      %v525 = vsel %vm409, %v398, 0
      %v528 = vsel %vm409, %v399, 0
      %v531 = vsel %vm409, %v400, 0
      %vm533 = vcmask 1043456
      %v535 = vsel %vm533, %v401, 0
      %537 = vmatprep.subr.mxu0 0.0
      %538 = vmatpush1.msra.mxu0 %v535
      %539 = vmatprep.subr.mxu0 0.0
      %540 = vmatpush1.msra.mxu0 0.0
      %541 = vmatprep.subr.mxu0 0.0
      %542 = vmatpush1.msra.mxu0 0.0
      %543 = vmatprep.subr.mxu0 0.0
      %544 = vmatpush1.msra.mxu0 0.0
      %545 = vmatprep.subr.mxu0 0.0
      %546 = vmatpush1.msra.mxu0 0.0
      %547 = vmatprep.subr.mxu0 0.0
      %548 = vmatpush1.msra.mxu0 0.0
      %549 = vmatprep.subr.mxu0 0.0
      %550 = vmatpush1.msra.mxu0 0.0
      %551 = vmatprep.subr.mxu0 0.0
      %552 = vmatpush1.msra.mxu0 0.0
      %553 = vmatprep.subr.mxu0 0.0
      %554 = vmatpush1.msra.mxu0 0.0
      %555 = vmatprep.subr.mxu0 0.0
      %556 = vmatpush1.msra.mxu0 0.0
      %557 = vmatprep.subr.mxu0 0.0
      %558 = vmatpush1.msra.mxu0 0.0
      %559 = vmatprep.subr.mxu0 0.0
      %560 = vmatpush1.msra.mxu0 0.0
      %561 = vmatprep.subr.mxu0 0.0
      %562 = vmatpush1.msra.mxu0 0.0
      %563 = vmatprep.subr.mxu0 0.0
      %564 = vmatpush1.msra.mxu0 0.0
      %565 = vmatprep.subr.mxu0 0.0
      %566 = vmatpush1.msra.mxu0 0.0
      %567 = vmatprep.subr.mxu0 0.0
      %568 = vmatpush1.msra.mxu0 0.0
      %569 = vmatprep.subr.mxu0 0.0
      %570 = vmatpush1.msra.mxu0 0.0
      %571 = vmatprep.subr.mxu0 0.0
      %572 = vmatpush1.msra.mxu0 0.0
      %573 = vmatprep.subr.mxu0 0.0
      %574 = vmatpush1.msra.mxu0 0.0
      %575 = vmatprep.subr.mxu0 0.0
      %576 = vmatpush1.msra.mxu0 0.0
      %577 = vmatprep.subr.mxu0 0.0
      %578 = vmatpush1.msra.mxu0 0.0
      %579 = vmatprep.subr.mxu0 0.0
      %580 = vmatpush1.msra.mxu0 0.0
      %581 = vmatprep.subr.mxu0 0.0
      %582 = vmatpush1.msra.mxu0 0.0
      %583 = vmatprep.subr.mxu0 0.0
      %584 = vmatpush1.msra.mxu0 0.0
      %585 = vmatprep.subr.mxu0 0.0
      %586 = vmatpush1.msra.mxu0 0.0
      %587 = vmatprep.subr.mxu0 0.0
      %588 = vmatpush1.msra.mxu0 0.0
      %589 = vmatprep.subr.mxu0 0.0
      %590 = vmatpush1.msra.mxu0 0.0
      %591 = vmatprep.subr.mxu0 0.0
      %592 = vmatpush1.msra.mxu0 0.0
      %593 = vmatprep.subr.mxu0 0.0
      %594 = vmatpush1.msra.mxu0 0.0
      %595 = vmatprep.subr.mxu0 0.0
      %596 = vmatpush1.msra.mxu0 0.0
      %597 = vmatprep.subr.mxu0 0.0
      %598 = vmatpush1.msra.mxu0 0.0
      %599 = vmatprep.subr.mxu0 0.0
      %600 = vmatpush1.msra.mxu0 0.0
      %601 = vmatprep.mubr.f32.mxu0 0.0
      %602 = vmatmul.mubr.f32.gmra.mrb[0].mxu0 %v411
      %v603 = vpop.f32.mrb[0].mxu0
      %v604 = vadd.f32 %v407, %v603
      %v605 = vpop.f32.mrb[0].mxu0
      %606 = vmatprep.mubr.f32.mxu0 0.0
      %607 = vmatmul.mubr.f32.gmra.mrb[0].mxu0 %v414
      %v608 = vpop.f32.mrb[0].mxu0
      %v609 = vadd.f32 %v407, %v608
      %v610 = vpop.f32.mrb[0].mxu0
      %611 = vmatprep.mubr.f32.mxu0 0.0
      %612 = vmatmul.mubr.f32.gmra.mrb[0].mxu0 %v417
      %v613 = vpop.f32.mrb[0].mxu0
      %v614 = vadd.f32 %v407, %v613
      %v615 = vpop.f32.mrb[0].mxu0
      %616 = vmatprep.mubr.f32.mxu0 0.0
      %617 = vmatmul.mubr.f32.gmra.mrb[0].mxu0 %v420
      %v618 = vpop.f32.mrb[0].mxu0
      %v619 = vadd.f32 %v407, %v618
      %v620 = vpop.f32.mrb[0].mxu0
      %621 = vmatprep.mubr.f32.mxu0 0.0
      %622 = vmatmul.mubr.f32.gmra.mrb[0].mxu0 %v423
      %v623 = vpop.f32.mrb[0].mxu0
      %v624 = vadd.f32 %v407, %v623
      %v625 = vpop.f32.mrb[0].mxu0
      %626 = vmatprep.mubr.f32.mxu0 0.0
      %627 = vmatmul.mubr.f32.gmra.mrb[0].mxu0 %v426
      %v628 = vpop.f32.mrb[0].mxu0
      %v629 = vadd.f32 %v407, %v628
      %v630 = vpop.f32.mrb[0].mxu0
      %631 = vmatprep.mubr.f32.mxu0 0.0
      %632 = vmatmul.mubr.f32.gmra.mrb[0].mxu0 %v429
      %v633 = vpop.f32.mrb[0].mxu0
      %v634 = vadd.f32 %v407, %v633
      %v635 = vpop.f32.mrb[0].mxu0
      %636 = vmatprep.mubr.f32.mxu0 0.0
      %637 = vmatmul.mubr.f32.gmra.mrb[0].mxu0 %v432
      %v638 = vpop.f32.mrb[0].mxu0
      %v639 = vadd.f32 %v407, %v638
      %v640 = vpop.f32.mrb[0].mxu0
      %641 = vmatprep.mubr.f32.mxu0 0.0
      %642 = vmatmul.mubr.f32.gmra.mrb[0].mxu0 %v435
      %v643 = vpop.f32.mrb[0].mxu0
      %v644 = vadd.f32 %v407, %v643
      %v645 = vpop.f32.mrb[0].mxu0
      %646 = vmatprep.mubr.f32.mxu0 0.0
      %647 = vmatmul.mubr.f32.gmra.mrb[0].mxu0 %v438
      %v648 = vpop.f32.mrb[0].mxu0
      %v649 = vadd.f32 %v407, %v648
      %v650 = vpop.f32.mrb[0].mxu0
      %651 = vmatprep.mubr.f32.mxu0 0.0
      %652 = vmatmul.mubr.f32.gmra.mrb[0].mxu0 %v441
      %v653 = vpop.f32.mrb[0].mxu0
      %v654 = vadd.f32 %v407, %v653
      %v655 = vpop.f32.mrb[0].mxu0
      %656 = vmatprep.mubr.f32.mxu0 0.0
      %657 = vmatmul.mubr.f32.gmra.mrb[0].mxu0 %v444
      %v658 = vpop.f32.mrb[0].mxu0
      %v659 = vadd.f32 %v407, %v658
      %v660 = vpop.f32.mrb[0].mxu0
      %661 = vmatprep.mubr.f32.mxu0 0.0
      %662 = vmatmul.mubr.f32.gmra.mrb[0].mxu0 %v447
      %v663 = vpop.f32.mrb[0].mxu0
      %v664 = vadd.f32 %v407, %v663
      %v665 = vpop.f32.mrb[0].mxu0
      %666 = vmatprep.mubr.f32.mxu0 0.0
      %667 = vmatmul.mubr.f32.gmra.mrb[0].mxu0 %v450
      %v668 = vpop.f32.mrb[0].mxu0
      %v669 = vadd.f32 %v407, %v668
      %v670 = vpop.f32.mrb[0].mxu0
      %671 = vmatprep.mubr.f32.mxu0 0.0
      %672 = vmatmul.mubr.f32.gmra.mrb[0].mxu0 %v453
      %v673 = vpop.f32.mrb[0].mxu0
      %v674 = vadd.f32 %v407, %v673
      %v675 = vpop.f32.mrb[0].mxu0
      %676 = vmatprep.mubr.f32.mxu0 0.0
      %677 = vmatmul.mubr.f32.gmra.mrb[0].mxu0 %v456
      %v678 = vpop.f32.mrb[0].mxu0
      %v679 = vadd.f32 %v407, %v678
      %v680 = vpop.f32.mrb[0].mxu0
      %681 = vmatprep.mubr.f32.mxu0 0.0
      %682 = vmatmul.mubr.f32.gmra.mrb[0].mxu0 %v459
      %v683 = vpop.f32.mrb[0].mxu0
      %v684 = vadd.f32 %v407, %v683
      %v685 = vpop.f32.mrb[0].mxu0
      %686 = vmatprep.mubr.f32.mxu0 0.0
      %687 = vmatmul.mubr.f32.gmra.mrb[0].mxu0 %v462
      %v688 = vpop.f32.mrb[0].mxu0
      %v689 = vadd.f32 %v407, %v688
      %v690 = vpop.f32.mrb[0].mxu0
      %691 = vmatprep.mubr.f32.mxu0 0.0
      %692 = vmatmul.mubr.f32.gmra.mrb[0].mxu0 %v465
      %v693 = vpop.f32.mrb[0].mxu0
      %v694 = vadd.f32 %v407, %v693
      %v695 = vpop.f32.mrb[0].mxu0
      %696 = vmatprep.mubr.f32.mxu0 0.0
      %697 = vmatmul.mubr.f32.gmra.mrb[0].mxu0 %v468
      %v698 = vpop.f32.mrb[0].mxu0
      %v699 = vadd.f32 %v407, %v698
      %v700 = vpop.f32.mrb[0].mxu0
      %701 = vmatprep.mubr.f32.mxu0 0.0
      %702 = vmatmul.mubr.f32.gmra.mrb[0].mxu0 %v471
      %v703 = vpop.f32.mrb[0].mxu0
      %v704 = vadd.f32 %v407, %v703
      %v705 = vpop.f32.mrb[0].mxu0
      %706 = vmatprep.mubr.f32.mxu0 0.0
      %707 = vmatmul.mubr.f32.gmra.mrb[0].mxu0 %v474
      %v708 = vpop.f32.mrb[0].mxu0
      %v709 = vadd.f32 %v407, %v708
      %v710 = vpop.f32.mrb[0].mxu0
      %711 = vmatprep.mubr.f32.mxu0 0.0
      %712 = vmatmul.mubr.f32.gmra.mrb[0].mxu0 %v477
      %v713 = vpop.f32.mrb[0].mxu0
      %v714 = vadd.f32 %v407, %v713
      %v715 = vpop.f32.mrb[0].mxu0
      %716 = vmatprep.mubr.f32.mxu0 0.0
      %717 = vmatmul.mubr.f32.gmra.mrb[0].mxu0 %v480
      %v718 = vpop.f32.mrb[0].mxu0
      %v719 = vadd.f32 %v407, %v718
      %v720 = vpop.f32.mrb[0].mxu0
      %721 = vmatprep.mubr.f32.mxu0 0.0
      %722 = vmatmul.mubr.f32.gmra.mrb[0].mxu0 %v483
      %v723 = vpop.f32.mrb[0].mxu0
      %v724 = vadd.f32 %v407, %v723
      %v725 = vpop.f32.mrb[0].mxu0
      %726 = vmatprep.mubr.f32.mxu0 0.0
      %727 = vmatmul.mubr.f32.gmra.mrb[0].mxu0 %v486
      %v728 = vpop.f32.mrb[0].mxu0
      %v729 = vadd.f32 %v407, %v728
      %v730 = vpop.f32.mrb[0].mxu0
      %731 = vmatprep.mubr.f32.mxu0 0.0
      %732 = vmatmul.mubr.f32.gmra.mrb[0].mxu0 %v489
      %v733 = vpop.f32.mrb[0].mxu0
      %v734 = vadd.f32 %v407, %v733
      %v735 = vpop.f32.mrb[0].mxu0
      %736 = vmatprep.mubr.f32.mxu0 0.0
      %737 = vmatmul.mubr.f32.gmra.mrb[0].mxu0 %v492
      %v738 = vpop.f32.mrb[0].mxu0
      %v739 = vadd.f32 %v407, %v738
      %v740 = vpop.f32.mrb[0].mxu0
      %741 = vmatprep.mubr.f32.mxu0 0.0
      %742 = vmatmul.mubr.f32.gmra.mrb[0].mxu0 %v495
      %v743 = vpop.f32.mrb[0].mxu0
      %v744 = vadd.f32 %v407, %v743
      %v745 = vpop.f32.mrb[0].mxu0
      %746 = vmatprep.mubr.f32.mxu0 0.0
      %747 = vmatmul.mubr.f32.gmra.mrb[0].mxu0 %v498
      %v748 = vpop.f32.mrb[0].mxu0
      %v749 = vadd.f32 %v407, %v748
      %v750 = vpop.f32.mrb[0].mxu0
      %751 = vmatprep.mubr.f32.mxu0 0.0
      %752 = vmatmul.mubr.f32.gmra.mrb[0].mxu0 %v501
      %v753 = vpop.f32.mrb[0].mxu0
      %v754 = vadd.f32 %v407, %v753
      %v755 = vpop.f32.mrb[0].mxu0
      %756 = vmatprep.mubr.f32.mxu0 0.0
      %757 = vmatmul.mubr.f32.gmra.mrb[0].mxu0 %v504
      %v758 = vpop.f32.mrb[0].mxu0
      %v759 = vadd.f32 %v407, %v758
      %v760 = vpop.f32.mrb[0].mxu0
      %761 = vmatprep.mubr.f32.mxu0 0.0
      %762 = vmatmul.mubr.f32.gmra.mrb[0].mxu0 %v507
      %v763 = vpop.f32.mrb[0].mxu0
      %v764 = vadd.f32 %v407, %v763
      %v765 = vpop.f32.mrb[0].mxu0
      %766 = vmatprep.mubr.f32.mxu0 0.0
      %767 = vmatmul.mubr.f32.gmra.mrb[0].mxu0 %v510
      %v768 = vpop.f32.mrb[0].mxu0
      %v769 = vadd.f32 %v407, %v768
      %v770 = vpop.f32.mrb[0].mxu0
      %771 = vmatprep.mubr.f32.mxu0 0.0
      %772 = vmatmul.mubr.f32.gmra.mrb[0].mxu0 %v513
      %v773 = vpop.f32.mrb[0].mxu0
      %v774 = vadd.f32 %v407, %v773
      %v775 = vpop.f32.mrb[0].mxu0
      %776 = vmatprep.mubr.f32.mxu0 0.0
      %777 = vmatmul.mubr.f32.gmra.mrb[0].mxu0 %v516
      %v778 = vpop.f32.mrb[0].mxu0
      %v779 = vadd.f32 %v407, %v778
      %v780 = vpop.f32.mrb[0].mxu0
      %781 = vmatprep.mubr.f32.mxu0 0.0
      %782 = vmatmul.mubr.f32.gmra.mrb[0].mxu0 %v519
      %v783 = vpop.f32.mrb[0].mxu0
      %v784 = vadd.f32 %v407, %v783
      %v785 = vpop.f32.mrb[0].mxu0
      %786 = vmatprep.mubr.f32.mxu0 0.0
      %787 = vmatmul.mubr.f32.gmra.mrb[0].mxu0 %v522
      %v788 = vpop.f32.mrb[0].mxu0
      %v789 = vadd.f32 %v407, %v788
      %v790 = vpop.f32.mrb[0].mxu0
      %791 = vmatprep.mubr.f32.mxu0 0.0
      %792 = vmatmul.mubr.f32.gmra.mrb[0].mxu0 %v525
      %v793 = vpop.f32.mrb[0].mxu0
      %v794 = vadd.f32 %v407, %v793
      %v795 = vpop.f32.mrb[0].mxu0
      %796 = vmatprep.mubr.f32.mxu0 0.0
      %797 = vmatmul.mubr.f32.gmra.mrb[0].mxu0 %v528
      %v798 = vpop.f32.mrb[0].mxu0
      %v799 = vadd.f32 %v407, %v798
      %v800 = vpop.f32.mrb[0].mxu0
      %801 = vmatprep.mubr.f32.mxu0 0.0
      %802 = vmatmul.mubr.f32.gmra.mrb[0].mxu0 %v531
      %v803 = vpop.f32.mrb[0].mxu0
      %v804 = vadd.f32 %v407, %v803
      %v805 = vpop.f32.mrb[0].mxu0
      %806 = vdwg.mxu0
      %v807 = vmax.f32 %v604, 0.0
      %v808 = vmax.f32 %v609, 0.0
      %v809 = vmax.f32 %v614, 0.0
      %v810 = vmax.f32 %v619, 0.0
      %v811 = vmax.f32 %v624, 0.0
      %v812 = vmax.f32 %v629, 0.0
      %v813 = vmax.f32 %v634, 0.0
      %v814 = vmax.f32 %v639, 0.0
      %v815 = vmax.f32 %v644, 0.0
      %v816 = vmax.f32 %v649, 0.0
      %v817 = vmax.f32 %v654, 0.0
      %v818 = vmax.f32 %v659, 0.0
      %v819 = vmax.f32 %v664, 0.0
      %v820 = vmax.f32 %v669, 0.0
      %v821 = vmax.f32 %v674, 0.0
      %v822 = vmax.f32 %v679, 0.0
      %v823 = vmax.f32 %v684, 0.0
      %v824 = vmax.f32 %v689, 0.0
      %v825 = vmax.f32 %v694, 0.0
      %v826 = vmax.f32 %v699, 0.0
      %v827 = vmax.f32 %v704, 0.0
      %v828 = vmax.f32 %v709, 0.0
      %v829 = vmax.f32 %v714, 0.0
      %v830 = vmax.f32 %v719, 0.0
      %v831 = vmax.f32 %v724, 0.0
      %v832 = vmax.f32 %v729, 0.0
      %v833 = vmax.f32 %v734, 0.0
      %v834 = vmax.f32 %v739, 0.0
      %v835 = vmax.f32 %v744, 0.0
      %v836 = vmax.f32 %v749, 0.0
      %v837 = vmax.f32 %v754, 0.0
      %v838 = vmax.f32 %v759, 0.0
      %v839 = vmax.f32 %v764, 0.0
      %v840 = vmax.f32 %v769, 0.0
      %v841 = vmax.f32 %v774, 0.0
      %v842 = vmax.f32 %v779, 0.0
      %v843 = vmax.f32 %v784, 0.0
      %v844 = vmax.f32 %v789, 0.0
      %v845 = vmax.f32 %v794, 0.0
      %v846 = vmax.f32 %v799, 0.0
      %v847 = vmax.f32 %v804, 0.0
      %v848 = vld [vmem:[%s1] sm:$0xff]
      %v849 = vld [vmem:[%s1 + $0x8] sm:$0xff]
      %v850 = vld [vmem:[%s1 + $0x10] sm:$0xff]
      %v851 = vld [vmem:[%s1 + $0x18] sm:$0xff]
      %v852 = vld [vmem:[%s1 + $0x20] sm:$0xff]
      %v853 = vld [vmem:[%s1 + $0x28] sm:$0xff]
      %v854 = vld [vmem:[%s1 + $0x30] sm:$0xff]
      %v855 = vld [vmem:[%s1 + $0x38] sm:$0xff]
      %v856 = vld [vmem:[%s1 + $0x40] sm:$0xff]
      %v857 = vld [vmem:[%s1 + $0x48] sm:$0xff]
      %v858 = vld [vmem:[%s1 + $0x50] sm:$0xff]
      %v859 = vld [vmem:[%s1 + $0x58] sm:$0xff]
      %v860 = vld [vmem:[%s1 + $0x60] sm:$0xff]
      %v861 = vld [vmem:[%s1 + $0x68] sm:$0xff]
      %v862 = vld [vmem:[%s1 + $0x70] sm:$0xff]
      %v863 = vld [vmem:[%s1 + $0x78] sm:$0xff]
      %v864 = vld [vmem:[%s1 + $0x80] sm:$0xff]
      %v865 = vld [vmem:[%s1 + $0x88] sm:$0xff]
      %v866 = vld [vmem:[%s1 + $0x90] sm:$0xff]
      %v867 = vld [vmem:[%s1 + $0x98] sm:$0xff]
      %v868 = vld [vmem:[%s1 + $0xa0] sm:$0xff]
      %v869 = vld [vmem:[%s1 + $0xa8] sm:$0xff]
      %v870 = vld [vmem:[%s1 + $0xb0] sm:$0xff]
      %v871 = vld [vmem:[%s1 + $0xb8] sm:$0xff]
      %v872 = vld [vmem:[%s1 + $0xc0] sm:$0xff]
      %v873 = vld [vmem:[%s1 + $0xc8] sm:$0xff]
      %v874 = vld [vmem:[%s1 + $0xd0] sm:$0xff]
      %v875 = vld [vmem:[%s1 + $0xd8] sm:$0xff]
      %v876 = vld [vmem:[%s1 + $0xe0] sm:$0xff]
      %v877 = vld [vmem:[%s1 + $0xe8] sm:$0xff]
      %v878 = vld [vmem:[%s1 + $0xf0] sm:$0xff]
      %v879 = vld [vmem:[%s1 + $0xf8] sm:$0xff]
      %v880 = vld [vmem:[%s1 + $0x100] sm:$0xff]
      %v881 = vld [vmem:[%s1 + $0x108] sm:$0xff]
      %v882 = vld [vmem:[%s1 + $0x110] sm:$0xff]
      %v883 = vld [vmem:[%s1 + $0x118] sm:$0xff]
      %v884 = vld [vmem:[%s1 + $0x120] sm:$0xff]
      %v885 = vld [vmem:[%s1 + $0x128] sm:$0xff]
      %v886 = vld [vmem:[%s1 + $0x130] sm:$0xff]
      %v887 = vld [vmem:[%s1 + $0x138] sm:$0xff]
      %v888 = vld [vmem:[%s1 + $0x140] sm:$0xf]
      %890 = vset.pattern.permute.xlu0 0
      %891 = vperm.xlu0 %890, %v848
      %v892 = vpop.permute.xlu0 %891
      %895 = vset.pattern.permute.xlu0 0
      %896 = vperm.xlu0 %895, %v849
      %v897 = vpop.permute.xlu0 %896
      %900 = vset.pattern.permute.xlu0 0
      %901 = vperm.xlu0 %900, %v850
      %v902 = vpop.permute.xlu0 %901
      %905 = vset.pattern.permute.xlu0 0
      %906 = vperm.xlu0 %905, %v851
      %v907 = vpop.permute.xlu0 %906
      %910 = vset.pattern.permute.xlu0 0
      %911 = vperm.xlu0 %910, %v852
      %v912 = vpop.permute.xlu0 %911
      %915 = vset.pattern.permute.xlu0 0
      %916 = vperm.xlu0 %915, %v853
      %v917 = vpop.permute.xlu0 %916
      %920 = vset.pattern.permute.xlu0 0
      %921 = vperm.xlu0 %920, %v854
      %v922 = vpop.permute.xlu0 %921
      %925 = vset.pattern.permute.xlu0 0
      %926 = vperm.xlu0 %925, %v855
      %v927 = vpop.permute.xlu0 %926
      %930 = vset.pattern.permute.xlu0 0
      %931 = vperm.xlu0 %930, %v856
      %v932 = vpop.permute.xlu0 %931
      %935 = vset.pattern.permute.xlu0 0
      %936 = vperm.xlu0 %935, %v857
      %v937 = vpop.permute.xlu0 %936
      %940 = vset.pattern.permute.xlu0 0
      %941 = vperm.xlu0 %940, %v858
      %v942 = vpop.permute.xlu0 %941
      %945 = vset.pattern.permute.xlu0 0
      %946 = vperm.xlu0 %945, %v859
      %v947 = vpop.permute.xlu0 %946
      %950 = vset.pattern.permute.xlu0 0
      %951 = vperm.xlu0 %950, %v860
      %v952 = vpop.permute.xlu0 %951
      %955 = vset.pattern.permute.xlu0 0
      %956 = vperm.xlu0 %955, %v861
      %v957 = vpop.permute.xlu0 %956
      %960 = vset.pattern.permute.xlu0 0
      %961 = vperm.xlu0 %960, %v862
      %v962 = vpop.permute.xlu0 %961
      %965 = vset.pattern.permute.xlu0 0
      %966 = vperm.xlu0 %965, %v863
      %v967 = vpop.permute.xlu0 %966
      %970 = vset.pattern.permute.xlu0 0
      %971 = vperm.xlu0 %970, %v864
      %v972 = vpop.permute.xlu0 %971
      %975 = vset.pattern.permute.xlu0 0
      %976 = vperm.xlu0 %975, %v865
      %v977 = vpop.permute.xlu0 %976
      %980 = vset.pattern.permute.xlu0 0
      %981 = vperm.xlu0 %980, %v866
      %v982 = vpop.permute.xlu0 %981
      %985 = vset.pattern.permute.xlu0 0
      %986 = vperm.xlu0 %985, %v867
      %v987 = vpop.permute.xlu0 %986
      %990 = vset.pattern.permute.xlu0 0
      %991 = vperm.xlu0 %990, %v868
      %v992 = vpop.permute.xlu0 %991
      %995 = vset.pattern.permute.xlu0 0
      %996 = vperm.xlu0 %995, %v869
      %v997 = vpop.permute.xlu0 %996
      %1000 = vset.pattern.permute.xlu0 0
      %1001 = vperm.xlu0 %1000, %v870
      %v1002 = vpop.permute.xlu0 %1001
      %1005 = vset.pattern.permute.xlu0 0
      %1006 = vperm.xlu0 %1005, %v871
      %v1007 = vpop.permute.xlu0 %1006
      %1010 = vset.pattern.permute.xlu0 0
      %1011 = vperm.xlu0 %1010, %v872
      %v1012 = vpop.permute.xlu0 %1011
      %1015 = vset.pattern.permute.xlu0 0
      %1016 = vperm.xlu0 %1015, %v873
      %v1017 = vpop.permute.xlu0 %1016
      %1020 = vset.pattern.permute.xlu0 0
      %1021 = vperm.xlu0 %1020, %v874
      %v1022 = vpop.permute.xlu0 %1021
      %1025 = vset.pattern.permute.xlu0 0
      %1026 = vperm.xlu0 %1025, %v875
      %v1027 = vpop.permute.xlu0 %1026
      %1030 = vset.pattern.permute.xlu0 0
      %1031 = vperm.xlu0 %1030, %v876
      %v1032 = vpop.permute.xlu0 %1031
      %1035 = vset.pattern.permute.xlu0 0
      %1036 = vperm.xlu0 %1035, %v877
      %v1037 = vpop.permute.xlu0 %1036
      %1040 = vset.pattern.permute.xlu0 0
      %1041 = vperm.xlu0 %1040, %v878
      %v1042 = vpop.permute.xlu0 %1041
      %1045 = vset.pattern.permute.xlu0 0
      %1046 = vperm.xlu0 %1045, %v879
      %v1047 = vpop.permute.xlu0 %1046
      %1050 = vset.pattern.permute.xlu0 0
      %1051 = vperm.xlu0 %1050, %v880
      %v1052 = vpop.permute.xlu0 %1051
      %1055 = vset.pattern.permute.xlu0 0
      %1056 = vperm.xlu0 %1055, %v881
      %v1057 = vpop.permute.xlu0 %1056
      %1060 = vset.pattern.permute.xlu0 0
      %1061 = vperm.xlu0 %1060, %v882
      %v1062 = vpop.permute.xlu0 %1061
      %1065 = vset.pattern.permute.xlu0 0
      %1066 = vperm.xlu0 %1065, %v883
      %v1067 = vpop.permute.xlu0 %1066
      %1070 = vset.pattern.permute.xlu0 0
      %1071 = vperm.xlu0 %1070, %v884
      %v1072 = vpop.permute.xlu0 %1071
      %1075 = vset.pattern.permute.xlu0 0
      %1076 = vperm.xlu0 %1075, %v885
      %v1077 = vpop.permute.xlu0 %1076
      %1080 = vset.pattern.permute.xlu0 0
      %1081 = vperm.xlu0 %1080, %v886
      %v1082 = vpop.permute.xlu0 %1081
      %1085 = vset.pattern.permute.xlu0 0
      %1086 = vperm.xlu0 %1085, %v887
      %v1087 = vpop.permute.xlu0 %1086
      %1090 = vset.pattern.permute.xlu0 0
      %1091 = vperm.xlu0 %1090, %v888
      %v1092 = vpop.permute.xlu0 %1091
      %v1094 = vmul.f32 %v807, %v892
      %v1095 = vmul.f32 %v808, %v897
      %v1096 = vmul.f32 %v809, %v902
      %v1097 = vmul.f32 %v810, %v907
      %v1098 = vmul.f32 %v811, %v912
      %v1099 = vmul.f32 %v812, %v917
      %v1100 = vmul.f32 %v813, %v922
      %v1101 = vmul.f32 %v814, %v927
      %v1102 = vmul.f32 %v815, %v932
      %v1103 = vmul.f32 %v816, %v937
      %v1104 = vmul.f32 %v817, %v942
      %v1105 = vmul.f32 %v818, %v947
      %v1106 = vmul.f32 %v819, %v952
      %v1107 = vmul.f32 %v820, %v957
      %v1108 = vmul.f32 %v821, %v962
      %v1109 = vmul.f32 %v822, %v967
      %v1110 = vmul.f32 %v823, %v972
      %v1111 = vmul.f32 %v824, %v977
      %v1112 = vmul.f32 %v825, %v982
      %v1113 = vmul.f32 %v826, %v987
      %v1114 = vmul.f32 %v827, %v992
      %v1115 = vmul.f32 %v828, %v997
      %v1116 = vmul.f32 %v829, %v1002
      %v1117 = vmul.f32 %v830, %v1007
      %v1118 = vmul.f32 %v831, %v1012
      %v1119 = vmul.f32 %v832, %v1017
      %v1120 = vmul.f32 %v833, %v1022
      %v1121 = vmul.f32 %v834, %v1027
      %v1122 = vmul.f32 %v835, %v1032
      %v1123 = vmul.f32 %v836, %v1037
      %v1124 = vmul.f32 %v837, %v1042
      %v1125 = vmul.f32 %v838, %v1047
      %v1126 = vmul.f32 %v839, %v1052
      %v1127 = vmul.f32 %v840, %v1057
      %v1128 = vmul.f32 %v841, %v1062
      %v1129 = vmul.f32 %v842, %v1067
      %v1130 = vmul.f32 %v843, %v1072
      %v1131 = vmul.f32 %v844, %v1077
      %v1132 = vmul.f32 %v845, %v1082
      %v1133 = vmul.f32 %v846, %v1087
      %v1134 = vmul.f32 %v847, %v1092
      %vm1135 = vcmask 195584
      %1136 = vst.msk [vmem:[#allocation2] sm:$0xff] %vm1135, %v1094
      %vm1137 = vcmask 188416
      %1138 = vst.msk [vmem:[#allocation2 + $0x8] sm:$0x1] %vm1137, %v1095
      %s1139 = scalar_lea.vmem [#allocation2], 16
      %vm1140 = vcmask 195585
      %1141 = vst.msk [vmem:[%s1139 - $0x1] sm:$0xfe] %vm1140, %v1095
      %vm1142 = vcmask 189440
      %1143 = vst.msk [vmem:[%s1139 + $0x7] sm:$0x3] %vm1142, %v1096
      %s1144 = scalar_lea.vmem [#allocation2], 32
      %vm1145 = vcmask 195586
      %1146 = vst.msk [vmem:[%s1144 - $0x2] sm:$0xfc] %vm1145, %v1096
      %vm1147 = vcmask 190464
      %1148 = vst.msk [vmem:[%s1144 + $0x6] sm:$0x7] %vm1147, %v1097
      %s1149 = scalar_lea.vmem [#allocation2], 48
      %vm1150 = vcmask 195587
      %1151 = vst.msk [vmem:[%s1149 - $0x3] sm:$0xf8] %vm1150, %v1097
      %vm1152 = vcmask 191488
      %1153 = vst.msk [vmem:[%s1149 + $0x5] sm:$0xf] %vm1152, %v1098
      %s1154 = scalar_lea.vmem [#allocation2], 64
      %vm1155 = vcmask 195588
      %1156 = vst.msk [vmem:[%s1154 - $0x4] sm:$0xf0] %vm1155, %v1098
      %vm1157 = vcmask 192512
      %1158 = vst.msk [vmem:[%s1154 + $0x4] sm:$0x1f] %vm1157, %v1099
      %s1159 = scalar_lea.vmem [#allocation2], 80
      %vm1160 = vcmask 195589
      %1161 = vst.msk [vmem:[%s1159 - $0x5] sm:$0xe0] %vm1160, %v1099
      %vm1162 = vcmask 193536
      %1163 = vst.msk [vmem:[%s1159 + $0x3] sm:$0x3f] %vm1162, %v1100
      %s1164 = scalar_lea.vmem [#allocation2], 96
      %vm1165 = vcmask 195590
      %1166 = vst.msk [vmem:[%s1164 - $0x6] sm:$0xc0] %vm1165, %v1100
      %vm1167 = vcmask 194560
      %1168 = vst.msk [vmem:[%s1164 + $0x2] sm:$0x7f] %vm1167, %v1101
      %s1169 = scalar_lea.vmem [#allocation2], 112
      %vm1170 = vcmask 195591
      %1171 = vst.msk [vmem:[%s1169 - $0x7] sm:$0x80] %vm1170, %v1101
      %1172 = vst.msk [vmem:[%s1169 + $0x1] sm:$0xff] %vm1135, %v1102
      %s1173 = scalar_lea.vmem [#allocation2], 128
      %1174 = vst.msk [vmem:[%s1173] sm:$0xff] %vm1135, %v1103
      %1175 = vst.msk [vmem:[%s1173 + $0x8] sm:$0x1] %vm1137, %v1104
      %s1176 = scalar_lea.vmem [#allocation2], 144
      %1177 = vst.msk [vmem:[%s1176 - $0x1] sm:$0xfe] %vm1140, %v1104
      %1178 = vst.msk [vmem:[%s1176 + $0x7] sm:$0x3] %vm1142, %v1105
      %s1179 = scalar_lea.vmem [#allocation2], 160
      %1180 = vst.msk [vmem:[%s1179 - $0x2] sm:$0xfc] %vm1145, %v1105
      %1181 = vst.msk [vmem:[%s1179 + $0x6] sm:$0x7] %vm1147, %v1106
      %s1182 = scalar_lea.vmem [#allocation2], 176
      %1183 = vst.msk [vmem:[%s1182 - $0x3] sm:$0xf8] %vm1150, %v1106
      %1184 = vst.msk [vmem:[%s1182 + $0x5] sm:$0xf] %vm1152, %v1107
      %s1185 = scalar_lea.vmem [#allocation2], 192
      %1186 = vst.msk [vmem:[%s1185 - $0x4] sm:$0xf0] %vm1155, %v1107
      %1187 = vst.msk [vmem:[%s1185 + $0x4] sm:$0x1f] %vm1157, %v1108
      %s1188 = scalar_lea.vmem [#allocation2], 208
      %1189 = vst.msk [vmem:[%s1188 - $0x5] sm:$0xe0] %vm1160, %v1108
      %1190 = vst.msk [vmem:[%s1188 + $0x3] sm:$0x3f] %vm1162, %v1109
      %s1191 = scalar_lea.vmem [#allocation2], 224
      %1192 = vst.msk [vmem:[%s1191 - $0x6] sm:$0xc0] %vm1165, %v1109
      %1193 = vst.msk [vmem:[%s1191 + $0x2] sm:$0x7f] %vm1167, %v1110
      %s1194 = scalar_lea.vmem [#allocation2], 240
      %1195 = vst.msk [vmem:[%s1194 - $0x7] sm:$0x80] %vm1170, %v1110
      %1196 = vst.msk [vmem:[%s1194 + $0x1] sm:$0xff] %vm1135, %v1111
      %s1197 = scalar_lea.vmem [#allocation2], 256
      %1198 = vst.msk [vmem:[%s1197] sm:$0xff] %vm1135, %v1112
      %1199 = vst.msk [vmem:[%s1197 + $0x8] sm:$0x1] %vm1137, %v1113
      %s1200 = scalar_lea.vmem [#allocation2], 272
      %1201 = vst.msk [vmem:[%s1200 - $0x1] sm:$0xfe] %vm1140, %v1113
      %1202 = vst.msk [vmem:[%s1200 + $0x7] sm:$0x3] %vm1142, %v1114
      %s1203 = scalar_lea.vmem [#allocation2], 288
      %1204 = vst.msk [vmem:[%s1203 - $0x2] sm:$0xfc] %vm1145, %v1114
      %1205 = vst.msk [vmem:[%s1203 + $0x6] sm:$0x7] %vm1147, %v1115
      %s1206 = scalar_lea.vmem [#allocation2], 304
      %1207 = vst.msk [vmem:[%s1206 - $0x3] sm:$0xf8] %vm1150, %v1115
      %1208 = vst.msk [vmem:[%s1206 + $0x5] sm:$0xf] %vm1152, %v1116
      %s1209 = scalar_lea.vmem [#allocation2], 320
      %1210 = vst.msk [vmem:[%s1209 - $0x4] sm:$0xf0] %vm1155, %v1116
      %1211 = vst.msk [vmem:[%s1209 + $0x4] sm:$0x1f] %vm1157, %v1117
      %s1212 = scalar_lea.vmem [#allocation2], 336
      %1213 = vst.msk [vmem:[%s1212 - $0x5] sm:$0xe0] %vm1160, %v1117
      %1214 = vst.msk [vmem:[%s1212 + $0x3] sm:$0x3f] %vm1162, %v1118
      %s1215 = scalar_lea.vmem [#allocation2], 352
      %1216 = vst.msk [vmem:[%s1215 - $0x6] sm:$0xc0] %vm1165, %v1118
      %1217 = vst.msk [vmem:[%s1215 + $0x2] sm:$0x7f] %vm1167, %v1119
      %s1218 = scalar_lea.vmem [#allocation2], 368
      %1219 = vst.msk [vmem:[%s1218 - $0x7] sm:$0x80] %vm1170, %v1119
      %1220 = vst.msk [vmem:[%s1218 + $0x1] sm:$0xff] %vm1135, %v1120
      %s1221 = scalar_lea.vmem [#allocation2], 384
      %1222 = vst.msk [vmem:[%s1221] sm:$0xff] %vm1135, %v1121
      %1223 = vst.msk [vmem:[%s1221 + $0x8] sm:$0x1] %vm1137, %v1122
      %s1224 = scalar_lea.vmem [#allocation2], 400
      %1225 = vst.msk [vmem:[%s1224 - $0x1] sm:$0xfe] %vm1140, %v1122
      %1226 = vst.msk [vmem:[%s1224 + $0x7] sm:$0x3] %vm1142, %v1123
      %s1227 = scalar_lea.vmem [#allocation2], 416
      %1228 = vst.msk [vmem:[%s1227 - $0x2] sm:$0xfc] %vm1145, %v1123
      %1229 = vst.msk [vmem:[%s1227 + $0x6] sm:$0x7] %vm1147, %v1124
      %s1230 = scalar_lea.vmem [#allocation2], 432
      %1231 = vst.msk [vmem:[%s1230 - $0x3] sm:$0xf8] %vm1150, %v1124
      %1232 = vst.msk [vmem:[%s1230 + $0x5] sm:$0xf] %vm1152, %v1125
      %s1233 = scalar_lea.vmem [#allocation2], 448
      %1234 = vst.msk [vmem:[%s1233 - $0x4] sm:$0xf0] %vm1155, %v1125
      %1235 = vst.msk [vmem:[%s1233 + $0x4] sm:$0x1f] %vm1157, %v1126
      %s1236 = scalar_lea.vmem [#allocation2], 464
      %1237 = vst.msk [vmem:[%s1236 - $0x5] sm:$0xe0] %vm1160, %v1126
      %1238 = vst.msk [vmem:[%s1236 + $0x3] sm:$0x3f] %vm1162, %v1127
      %s1239 = scalar_lea.vmem [#allocation2], 480
      %1240 = vst.msk [vmem:[%s1239 - $0x6] sm:$0xc0] %vm1165, %v1127
      %1241 = vst.msk [vmem:[%s1239 + $0x2] sm:$0x7f] %vm1167, %v1128
      %s1242 = scalar_lea.vmem [#allocation2], 496
      %1243 = vst.msk [vmem:[%s1242 - $0x7] sm:$0x80] %vm1170, %v1128
      %1244 = vst.msk [vmem:[%s1242 + $0x1] sm:$0xff] %vm1135, %v1129
      %s1245 = scalar_lea.vmem [#allocation2], 512
      %1246 = vst.msk [vmem:[%s1245] sm:$0xff] %vm1135, %v1130
      %1247 = vst.msk [vmem:[%s1245 + $0x8] sm:$0x1] %vm1137, %v1131
      %s1248 = scalar_lea.vmem [#allocation2], 528
      %1249 = vst.msk [vmem:[%s1248 - $0x1] sm:$0xfe] %vm1140, %v1131
      %1250 = vst.msk [vmem:[%s1248 + $0x7] sm:$0x3] %vm1142, %v1132
      %s1251 = scalar_lea.vmem [#allocation2], 544
      %1252 = vst.msk [vmem:[%s1251 - $0x2] sm:$0xfc] %vm1145, %v1132
      %1253 = vst.msk [vmem:[%s1251 + $0x6] sm:$0x7] %vm1147, %v1133
      %s1254 = scalar_lea.vmem [#allocation2], 560
      %1255 = vst.msk [vmem:[%s1254 - $0x3] sm:$0xf8] %vm1150, %v1133
      %1256 = vst.msk [vmem:[%s1254 + $0x5] sm:$0xf] %vm1152, %v1134
      %v1257 = vld [vmem:[%s4] sm:$0xff]
      %v1258 = vld [vmem:[%s4 + $0x8] sm:$0x1]
      %v1259 = vld [vmem:[#allocation2] sm:$0xff]
      %v1260 = vld [vmem:[#allocation2 + $0x8] sm:$0x1]
      %v1261 = vld [vmem:[#allocation2 + $0x10] sm:$0xff]
      %v1262 = vld [vmem:[#allocation2 + $0x18] sm:$0x1]
      %v1263 = vld [vmem:[#allocation2 + $0x20] sm:$0xff]
      %v1264 = vld [vmem:[#allocation2 + $0x28] sm:$0x1]
      %v1265 = vld [vmem:[#allocation2 + $0x30] sm:$0xff]
      %v1266 = vld [vmem:[#allocation2 + $0x38] sm:$0x1]
      %v1267 = vld [vmem:[#allocation2 + $0x40] sm:$0xff]
      %v1268 = vld [vmem:[#allocation2 + $0x48] sm:$0x1]
      %v1269 = vld [vmem:[#allocation2 + $0x50] sm:$0xff]
      %v1270 = vld [vmem:[#allocation2 + $0x58] sm:$0x1]
      %v1271 = vld [vmem:[#allocation2 + $0x60] sm:$0xff]
      %v1272 = vld [vmem:[#allocation2 + $0x68] sm:$0x1]
      %v1273 = vld [vmem:[#allocation2 + $0x70] sm:$0xff]
      %v1274 = vld [vmem:[#allocation2 + $0x78] sm:$0x1]
      %v1275 = vld [vmem:[#allocation2 + $0x80] sm:$0xff]
      %v1276 = vld [vmem:[#allocation2 + $0x88] sm:$0x1]
      %v1277 = vld [vmem:[%s1176] sm:$0xff]
      %v1278 = vld [vmem:[%s1176 + $0x10] sm:$0xff]
      %v1279 = vld [vmem:[%s1176 + $0x20] sm:$0xff]
      %v1280 = vld [vmem:[%s1176 + $0x30] sm:$0xff]
      %v1281 = vld [vmem:[%s1176 + $0x40] sm:$0xff]
      %v1282 = vld [vmem:[%s1176 + $0x50] sm:$0xff]
      %v1283 = vld [vmem:[%s1176 + $0x60] sm:$0xff]
      %v1284 = vld [vmem:[%s1176 + $0x70] sm:$0xff]
      %v1285 = vld [vmem:[%s1176 + $0x80] sm:$0xff]
      %v1286 = vld [vmem:[%s1203] sm:$0xff]
      %v1287 = vld [vmem:[%s1203 + $0x8] sm:$0x1]
      %v1288 = vld [vmem:[%s1203 + $0x10] sm:$0xff]
      %v1289 = vld [vmem:[%s1203 + $0x18] sm:$0x1]
      %v1290 = vld [vmem:[%s1203 + $0x20] sm:$0xff]
      %v1291 = vld [vmem:[%s1203 + $0x28] sm:$0x1]
      %v1292 = vld [vmem:[%s1203 + $0x30] sm:$0xff]
      %v1293 = vld [vmem:[%s1203 + $0x38] sm:$0x1]
      %v1294 = vld [vmem:[%s1203 + $0x40] sm:$0xff]
      %v1295 = vld [vmem:[%s1203 + $0x48] sm:$0x1]
      %v1296 = vld [vmem:[%s1203 + $0x50] sm:$0xff]
      %v1297 = vld [vmem:[%s1203 + $0x58] sm:$0x1]
      %v1298 = vld [vmem:[%s1203 + $0x60] sm:$0xff]
      %v1299 = vld [vmem:[%s1203 + $0x68] sm:$0x1]
      %v1300 = vld [vmem:[%s1203 + $0x70] sm:$0xff]
      %v1301 = vld [vmem:[%s1203 + $0x78] sm:$0x1]
      %v1302 = vld [vmem:[%s1230] sm:$0xff]
      %v1303 = vld [vmem:[%s1230 + $0x10] sm:$0xff]
      %v1304 = vld [vmem:[%s1230 + $0x20] sm:$0xff]
      %v1305 = vld [vmem:[%s1230 + $0x30] sm:$0xff]
      %v1306 = vld [vmem:[%s1230 + $0x40] sm:$0xff]
      %v1307 = vld [vmem:[%s1230 + $0x50] sm:$0xff]
      %v1308 = vld [vmem:[%s1230 + $0x60] sm:$0xff]
      %v1309 = vld [vmem:[%s1230 + $0x70] sm:$0xff]
      %v1310 = vlaneseq
      %v1311 = vshrl.u32 %v1310, 7
      %v1312 = vsub.s32 0, %v1311
      %v1313 = vrot.slane %v1257, %v1312
      %v1314 = vmul.f32 %v1259, %v1313
      %v1315 = vmul.f32 %v1261, %v1313
      %v1316 = vmul.f32 %v1263, %v1313
      %v1317 = vmul.f32 %v1265, %v1313
      %v1318 = vmul.f32 %v1267, %v1313
      %v1319 = vmul.f32 %v1269, %v1313
      %v1320 = vmul.f32 %v1271, %v1313
      %v1321 = vmul.f32 %v1273, %v1313
      %v1322 = vadd.f32 %v1314, 0.0
      %v1323 = vadd.f32 %v1315, 0.0
      %v1324 = vadd.f32 %v1316, 0.0
      %v1325 = vadd.f32 %v1317, 0.0
      %v1326 = vadd.f32 %v1318, 0.0
      %v1327 = vadd.f32 %v1319, 0.0
      %v1328 = vadd.f32 %v1320, 0.0
      %v1329 = vadd.f32 %v1321, 0.0
      %v1330 = vlaneseq
      %v1331 = vshrl.u32 %v1330, 7
      %v1332 = vsub.s32 1, %v1331
      %v1333 = vrot.slane %v1257, %v1332
      %v1334 = vmul.f32 %v1277, %v1333
      %v1335 = vmul.f32 %v1278, %v1333
      %v1336 = vmul.f32 %v1279, %v1333
      %v1337 = vmul.f32 %v1280, %v1333
      %v1338 = vmul.f32 %v1281, %v1333
      %v1339 = vmul.f32 %v1282, %v1333
      %v1340 = vmul.f32 %v1283, %v1333
      %v1341 = vmul.f32 %v1284, %v1333
      %v1342 = vadd.f32 %v1322, %v1334
      %v1343 = vadd.f32 %v1323, %v1335
      %v1344 = vadd.f32 %v1324, %v1336
      %v1345 = vadd.f32 %v1325, %v1337
      %v1346 = vadd.f32 %v1326, %v1338
      %v1347 = vadd.f32 %v1327, %v1339
      %v1348 = vadd.f32 %v1328, %v1340
      %v1349 = vadd.f32 %v1329, %v1341
      %v1350 = vlaneseq
      %v1351 = vshrl.u32 %v1350, 7
      %v1352 = vsub.s32 2, %v1351
      %v1353 = vrot.slane %v1257, %v1352
      %v1354 = vmul.f32 %v1259, %v1353
      %v1355 = vmul.f32 %v1260, %v1353
      %v1356 = vmul.f32 %v1261, %v1353
      %v1357 = vmul.f32 %v1262, %v1353
      %v1358 = vmul.f32 %v1263, %v1353
      %v1359 = vmul.f32 %v1264, %v1353
      %v1360 = vmul.f32 %v1265, %v1353
      %v1361 = vmul.f32 %v1266, %v1353
      %v1362 = vmul.f32 %v1267, %v1353
      %v1363 = vmul.f32 %v1268, %v1353
      %v1364 = vmul.f32 %v1269, %v1353
      %v1365 = vmul.f32 %v1270, %v1353
      %v1366 = vmul.f32 %v1271, %v1353
      %v1367 = vmul.f32 %v1272, %v1353
      %v1368 = vmul.f32 %v1273, %v1353
      %v1369 = vmul.f32 %v1274, %v1353
      %vm1386 = vcmask 1046528
      %v1387 = vrot.slane %v1354, 1
      %v1388 = vrot.slane %v1355, 1
      %v1389 = vsel %vm1386, %v1387, %v1388
      %v1390 = vrot.slane %v1356, 1
      %v1391 = vrot.slane %v1357, 1
      %v1392 = vsel %vm1386, %v1390, %v1391
      %v1393 = vrot.slane %v1358, 1
      %v1394 = vrot.slane %v1359, 1
      %v1395 = vsel %vm1386, %v1393, %v1394
      %v1396 = vrot.slane %v1360, 1
      %v1397 = vrot.slane %v1361, 1
      %v1398 = vsel %vm1386, %v1396, %v1397
      %v1399 = vrot.slane %v1362, 1
      %v1400 = vrot.slane %v1363, 1
      %v1401 = vsel %vm1386, %v1399, %v1400
      %v1402 = vrot.slane %v1364, 1
      %v1403 = vrot.slane %v1365, 1
      %v1404 = vsel %vm1386, %v1402, %v1403
      %v1405 = vrot.slane %v1366, 1
      %v1406 = vrot.slane %v1367, 1
      %v1407 = vsel %vm1386, %v1405, %v1406
      %v1408 = vrot.slane %v1368, 1
      %v1409 = vrot.slane %v1369, 1
      %v1410 = vsel %vm1386, %v1408, %v1409
      %v1419 = vadd.f32 %v1342, %v1389
      %v1420 = vadd.f32 %v1343, %v1392
      %v1421 = vadd.f32 %v1344, %v1395
      %v1422 = vadd.f32 %v1345, %v1398
      %v1423 = vadd.f32 %v1346, %v1401
      %v1424 = vadd.f32 %v1347, %v1404
      %v1425 = vadd.f32 %v1348, %v1407
      %v1426 = vadd.f32 %v1349, %v1410
      %v1427 = vlaneseq
      %v1428 = vshrl.u32 %v1427, 7
      %v1429 = vsub.s32 3, %v1428
      %v1430 = vrot.slane %v1257, %v1429
      %v1431 = vmul.f32 %v1286, %v1430
      %v1432 = vmul.f32 %v1288, %v1430
      %v1433 = vmul.f32 %v1290, %v1430
      %v1434 = vmul.f32 %v1292, %v1430
      %v1435 = vmul.f32 %v1294, %v1430
      %v1436 = vmul.f32 %v1296, %v1430
      %v1437 = vmul.f32 %v1298, %v1430
      %v1438 = vmul.f32 %v1300, %v1430
      %v1439 = vadd.f32 %v1419, %v1431
      %v1440 = vadd.f32 %v1420, %v1432
      %v1441 = vadd.f32 %v1421, %v1433
      %v1442 = vadd.f32 %v1422, %v1434
      %v1443 = vadd.f32 %v1423, %v1435
      %v1444 = vadd.f32 %v1424, %v1436
      %v1445 = vadd.f32 %v1425, %v1437
      %v1446 = vadd.f32 %v1426, %v1438
      %v1447 = vlaneseq
      %v1448 = vshrl.u32 %v1447, 7
      %v1449 = vsub.s32 4, %v1448
      %v1450 = vrot.slane %v1257, %v1449
      %v1451 = vmul.f32 %v1302, %v1450
      %v1452 = vmul.f32 %v1303, %v1450
      %v1453 = vmul.f32 %v1304, %v1450
      %v1454 = vmul.f32 %v1305, %v1450
      %v1455 = vmul.f32 %v1306, %v1450
      %v1456 = vmul.f32 %v1307, %v1450
      %v1457 = vmul.f32 %v1308, %v1450
      %v1458 = vmul.f32 %v1309, %v1450
      %v1459 = vadd.f32 %v1439, %v1451
      %v1460 = vadd.f32 %v1440, %v1452
      %v1461 = vadd.f32 %v1441, %v1453
      %v1462 = vadd.f32 %v1442, %v1454
      %v1463 = vadd.f32 %v1443, %v1455
      %v1464 = vadd.f32 %v1444, %v1456
      %v1465 = vadd.f32 %v1445, %v1457
      %v1466 = vadd.f32 %v1446, %v1458
      %v1467 = vlaneseq
      %v1468 = vshrl.u32 %v1467, 7
      %v1469 = vsub.s32 5, %v1468
      %v1470 = vrot.slane %v1257, %v1469
      %v1471 = vmul.f32 %v1286, %v1470
      %v1472 = vmul.f32 %v1287, %v1470
      %v1473 = vmul.f32 %v1288, %v1470
      %v1474 = vmul.f32 %v1289, %v1470
      %v1475 = vmul.f32 %v1290, %v1470
      %v1476 = vmul.f32 %v1291, %v1470
      %v1477 = vmul.f32 %v1292, %v1470
      %v1478 = vmul.f32 %v1293, %v1470
      %v1479 = vmul.f32 %v1294, %v1470
      %v1480 = vmul.f32 %v1295, %v1470
      %v1481 = vmul.f32 %v1296, %v1470
      %v1482 = vmul.f32 %v1297, %v1470
      %v1483 = vmul.f32 %v1298, %v1470
      %v1484 = vmul.f32 %v1299, %v1470
      %v1485 = vmul.f32 %v1300, %v1470
      %v1486 = vmul.f32 %v1301, %v1470
      %v1503 = vrot.slane %v1471, 1
      %v1504 = vrot.slane %v1472, 1
      %v1505 = vsel %vm1386, %v1503, %v1504
      %v1506 = vrot.slane %v1473, 1
      %v1507 = vrot.slane %v1474, 1
      %v1508 = vsel %vm1386, %v1506, %v1507
      %v1509 = vrot.slane %v1475, 1
      %v1510 = vrot.slane %v1476, 1
      %v1511 = vsel %vm1386, %v1509, %v1510
      %v1512 = vrot.slane %v1477, 1
      %v1513 = vrot.slane %v1478, 1
      %v1514 = vsel %vm1386, %v1512, %v1513
      %v1515 = vrot.slane %v1479, 1
      %v1516 = vrot.slane %v1480, 1
      %v1517 = vsel %vm1386, %v1515, %v1516
      %v1518 = vrot.slane %v1481, 1
      %v1519 = vrot.slane %v1482, 1
      %v1520 = vsel %vm1386, %v1518, %v1519
      %v1521 = vrot.slane %v1483, 1
      %v1522 = vrot.slane %v1484, 1
      %v1523 = vsel %vm1386, %v1521, %v1522
      %v1524 = vrot.slane %v1485, 1
      %v1525 = vrot.slane %v1486, 1
      %v1526 = vsel %vm1386, %v1524, %v1525
      %v1535 = vadd.f32 %v1459, %v1505
      %v1536 = vadd.f32 %v1460, %v1508
      %v1537 = vadd.f32 %v1461, %v1511
      %v1538 = vadd.f32 %v1462, %v1514
      %v1539 = vadd.f32 %v1463, %v1517
      %v1540 = vadd.f32 %v1464, %v1520
      %v1541 = vadd.f32 %v1465, %v1523
      %v1542 = vadd.f32 %v1466, %v1526
      %v1543 = vlaneseq
      %v1544 = vshrl.u32 %v1543, 7
      %v1545 = vsub.s32 6, %v1544
      %v1546 = vrot.slane %v1257, %v1545
      %v1547 = vmul.f32 %v1261, %v1546
      %v1548 = vmul.f32 %v1263, %v1546
      %v1549 = vmul.f32 %v1265, %v1546
      %v1550 = vmul.f32 %v1267, %v1546
      %v1551 = vmul.f32 %v1269, %v1546
      %v1552 = vmul.f32 %v1271, %v1546
      %v1553 = vmul.f32 %v1273, %v1546
      %v1554 = vmul.f32 %v1275, %v1546
      %v1555 = vadd.f32 %v1535, %v1547
      %v1556 = vadd.f32 %v1536, %v1548
      %v1557 = vadd.f32 %v1537, %v1549
      %v1558 = vadd.f32 %v1538, %v1550
      %v1559 = vadd.f32 %v1539, %v1551
      %v1560 = vadd.f32 %v1540, %v1552
      %v1561 = vadd.f32 %v1541, %v1553
      %v1562 = vadd.f32 %v1542, %v1554
      %v1563 = vlaneseq
      %v1564 = vshrl.u32 %v1563, 7
      %v1565 = vsub.s32 7, %v1564
      %v1566 = vrot.slane %v1257, %v1565
      %v1567 = vmul.f32 %v1278, %v1566
      %v1568 = vmul.f32 %v1279, %v1566
      %v1569 = vmul.f32 %v1280, %v1566
      %v1570 = vmul.f32 %v1281, %v1566
      %v1571 = vmul.f32 %v1282, %v1566
      %v1572 = vmul.f32 %v1283, %v1566
      %v1573 = vmul.f32 %v1284, %v1566
      %v1574 = vmul.f32 %v1285, %v1566
      %v1575 = vadd.f32 %v1555, %v1567
      %v1576 = vadd.f32 %v1556, %v1568
      %v1577 = vadd.f32 %v1557, %v1569
      %v1578 = vadd.f32 %v1558, %v1570
      %v1579 = vadd.f32 %v1559, %v1571
      %v1580 = vadd.f32 %v1560, %v1572
      %v1581 = vadd.f32 %v1561, %v1573
      %v1582 = vadd.f32 %v1562, %v1574
      %v1583 = vlaneseq
      %v1584 = vshrl.u32 %v1583, 7
      %v1585 = vsub.s32 0, %v1584
      %v1586 = vrot.slane %v1258, %v1585
      %v1587 = vmul.f32 %v1261, %v1586
      %v1588 = vmul.f32 %v1262, %v1586
      %v1589 = vmul.f32 %v1263, %v1586
      %v1590 = vmul.f32 %v1264, %v1586
      %v1591 = vmul.f32 %v1265, %v1586
      %v1592 = vmul.f32 %v1266, %v1586
      %v1593 = vmul.f32 %v1267, %v1586
      %v1594 = vmul.f32 %v1268, %v1586
      %v1595 = vmul.f32 %v1269, %v1586
      %v1596 = vmul.f32 %v1270, %v1586
      %v1597 = vmul.f32 %v1271, %v1586
      %v1598 = vmul.f32 %v1272, %v1586
      %v1599 = vmul.f32 %v1273, %v1586
      %v1600 = vmul.f32 %v1274, %v1586
      %v1601 = vmul.f32 %v1275, %v1586
      %v1602 = vmul.f32 %v1276, %v1586
      %v1619 = vrot.slane %v1587, 1
      %v1620 = vrot.slane %v1588, 1
      %v1621 = vsel %vm1386, %v1619, %v1620
      %v1622 = vrot.slane %v1589, 1
      %v1623 = vrot.slane %v1590, 1
      %v1624 = vsel %vm1386, %v1622, %v1623
      %v1625 = vrot.slane %v1591, 1
      %v1626 = vrot.slane %v1592, 1
      %v1627 = vsel %vm1386, %v1625, %v1626
      %v1628 = vrot.slane %v1593, 1
      %v1629 = vrot.slane %v1594, 1
      %v1630 = vsel %vm1386, %v1628, %v1629
      %v1631 = vrot.slane %v1595, 1
      %v1632 = vrot.slane %v1596, 1
      %v1633 = vsel %vm1386, %v1631, %v1632
      %v1634 = vrot.slane %v1597, 1
      %v1635 = vrot.slane %v1598, 1
      %v1636 = vsel %vm1386, %v1634, %v1635
      %v1637 = vrot.slane %v1599, 1
      %v1638 = vrot.slane %v1600, 1
      %v1639 = vsel %vm1386, %v1637, %v1638
      %v1640 = vrot.slane %v1601, 1
      %v1641 = vrot.slane %v1602, 1
      %v1642 = vsel %vm1386, %v1640, %v1641
      %v1651 = vadd.f32 %v1575, %v1621
      %v1652 = vadd.f32 %v1576, %v1624
      %v1653 = vadd.f32 %v1577, %v1627
      %v1654 = vadd.f32 %v1578, %v1630
      %v1655 = vadd.f32 %v1579, %v1633
      %v1656 = vadd.f32 %v1580, %v1636
      %v1657 = vadd.f32 %v1581, %v1639
      %v1658 = vadd.f32 %v1582, %v1642
      %v1659 = vld [vmem:[%s5] sm:$0x1]
      %v1661 = vlaneseq
      %v1662 = vshrl.u32 %v1661, 7
      %v1663 = vsub.s32 0, %v1662
      %v1664 = vrot.slane %v1659, %v1663
      %v1666 = vadd.f32 %v1651, %v1664
      %v1667 = vadd.f32 %v1652, %v1664
      %v1668 = vadd.f32 %v1653, %v1664
      %v1669 = vadd.f32 %v1654, %v1664
      %v1670 = vadd.f32 %v1655, %v1664
      %v1671 = vadd.f32 %v1656, %v1664
      %v1672 = vadd.f32 %v1657, %v1664
      %v1673 = vadd.f32 %v1658, %v1664
      %v1674 = vmax.f32 %v1666, 0.0
      %v1675 = vmax.f32 %v1667, 0.0
      %v1676 = vmax.f32 %v1668, 0.0
      %v1677 = vmax.f32 %v1669, 0.0
      %v1678 = vmax.f32 %v1670, 0.0
      %v1679 = vmax.f32 %v1671, 0.0
      %v1680 = vmax.f32 %v1672, 0.0
      %v1681 = vmax.f32 %v1673, 0.0
      %1682 = vst.msk [vmem:[#allocation3] sm:$0xff] %vm1135, 0.0
      %1683 = vst.msk [vmem:[#allocation3 + $0x8] sm:$0x3] %vm1142, 0.0
      %1684 = vst.msk [vmem:[#allocation3 + $0x10] sm:$0xff] %vm1135, 0.0
      %1685 = vst.msk [vmem:[#allocation3 + $0x18] sm:$0x3] %vm1142, 0.0
      %1686 = vst.msk [vmem:[#allocation3 + $0x20] sm:$0xff] %vm1135, 0.0
      %1687 = vst.msk [vmem:[#allocation3 + $0x28] sm:$0x3] %vm1142, 0.0
      %1688 = vst.msk [vmem:[#allocation3 + $0x30] sm:$0xff] %vm1135, 0.0
      %1689 = vst.msk [vmem:[#allocation3 + $0x38] sm:$0x3] %vm1142, 0.0
      %1690 = vst.msk [vmem:[#allocation3 + $0x40] sm:$0xff] %vm1135, 0.0
      %1691 = vst.msk [vmem:[#allocation3 + $0x48] sm:$0x3] %vm1142, 0.0
      %1692 = vst.msk [vmem:[#allocation3 + $0x50] sm:$0xff] %vm1135, 0.0
      %1693 = vst.msk [vmem:[#allocation3 + $0x58] sm:$0x3] %vm1142, 0.0
      %1694 = vst.msk [vmem:[#allocation3 + $0x60] sm:$0xff] %vm1135, 0.0
      %1695 = vst.msk [vmem:[#allocation3 + $0x68] sm:$0x3] %vm1142, 0.0
      %1696 = vst.msk [vmem:[#allocation3 + $0x70] sm:$0xff] %vm1135, 0.0
      %1697 = vst.msk [vmem:[#allocation3 + $0x78] sm:$0x3] %vm1142, 0.0
      %1698 = vst.msk [vmem:[#allocation3 + $0x80] sm:$0xff] %vm1135, 0.0
      %1699 = vst.msk [vmem:[#allocation3 + $0x88] sm:$0x3] %vm1142, 0.0
      %1700 = vst.msk [vmem:[#allocation3 + $0x90] sm:$0xff] %vm1135, 0.0
      %1701 = vst.msk [vmem:[#allocation3 + $0x98] sm:$0x3] %vm1142, 0.0
      %v1702 = vld [vmem:[%s6] sm:$0xff]
      %v1703 = vld [vmem:[%s6 + $0x8] sm:$0x1]
      %v1704 = vld [vmem:[%s7] sm:$0x1]
      %s1705 = scalar_lea.vmem [#allocation3], 16
      %1706 = vst.msk [vmem:[%s1705 + $0x1] sm:$0xff] %vm1135, %v1674
      %1707 = vst.msk [vmem:[%s1705 + $0x11] sm:$0xff] %vm1135, %v1675
      %1708 = vst.msk [vmem:[%s1705 + $0x21] sm:$0xff] %vm1135, %v1676
      %1709 = vst.msk [vmem:[%s1705 + $0x31] sm:$0xff] %vm1135, %v1677
      %1710 = vst.msk [vmem:[%s1705 + $0x41] sm:$0xff] %vm1135, %v1678
      %1711 = vst.msk [vmem:[%s1705 + $0x51] sm:$0xff] %vm1135, %v1679
      %1712 = vst.msk [vmem:[%s1705 + $0x61] sm:$0xff] %vm1135, %v1680
      %1713 = vst.msk [vmem:[%s1705 + $0x71] sm:$0xff] %vm1135, %v1681
      %v1714 = vld [vmem:[#allocation3] sm:$0xff]
      %v1715 = vld [vmem:[#allocation3 + $0x8] sm:$0x3]
      %v1716 = vld [vmem:[#allocation3 + $0x10] sm:$0xff]
      %v1717 = vld [vmem:[#allocation3 + $0x18] sm:$0x3]
      %v1718 = vld [vmem:[#allocation3 + $0x20] sm:$0xff]
      %v1719 = vld [vmem:[#allocation3 + $0x28] sm:$0x3]
      %v1720 = vld [vmem:[#allocation3 + $0x30] sm:$0xff]
      %v1721 = vld [vmem:[#allocation3 + $0x38] sm:$0x3]
      %v1722 = vld [vmem:[#allocation3 + $0x40] sm:$0xff]
      %v1723 = vld [vmem:[#allocation3 + $0x48] sm:$0x3]
      %v1724 = vld [vmem:[#allocation3 + $0x50] sm:$0xff]
      %v1725 = vld [vmem:[#allocation3 + $0x58] sm:$0x3]
      %v1726 = vld [vmem:[#allocation3 + $0x60] sm:$0xff]
      %v1727 = vld [vmem:[#allocation3 + $0x68] sm:$0x3]
      %v1728 = vld [vmem:[#allocation3 + $0x70] sm:$0xff]
      %v1729 = vld [vmem:[#allocation3 + $0x78] sm:$0x3]
      %v1730 = vld [vmem:[#allocation3 + $0x80] sm:$0xff]
      %v1731 = vld [vmem:[#allocation3 + $0x88] sm:$0x3]
      %v1732 = vld [vmem:[#allocation3 + $0x90] sm:$0xff]
      %v1733 = vld [vmem:[#allocation3 + $0x98] sm:$0x3]
      %v1734 = vlaneseq
      %v1735 = vshrl.u32 %v1734, 7
      %v1736 = vsub.s32 0, %v1735
      %v1737 = vrot.slane %v1702, %v1736
      %v1738 = vmul.f32 %v1714, %v1737
      %v1739 = vmul.f32 %v1716, %v1737
      %v1740 = vmul.f32 %v1718, %v1737
      %v1741 = vmul.f32 %v1720, %v1737
      %v1742 = vmul.f32 %v1722, %v1737
      %v1743 = vmul.f32 %v1724, %v1737
      %v1744 = vmul.f32 %v1726, %v1737
      %v1745 = vmul.f32 %v1728, %v1737
      %v1746 = vadd.f32 %v1738, 0.0
      %v1747 = vadd.f32 %v1739, 0.0
      %v1748 = vadd.f32 %v1740, 0.0
      %v1749 = vadd.f32 %v1741, 0.0
      %v1750 = vadd.f32 %v1742, 0.0
      %v1751 = vadd.f32 %v1743, 0.0
      %v1752 = vadd.f32 %v1744, 0.0
      %v1753 = vadd.f32 %v1745, 0.0
      %v1754 = vlaneseq
      %v1755 = vshrl.u32 %v1754, 7
      %v1756 = vsub.s32 1, %v1755
      %v1757 = vrot.slane %v1702, %v1756
      %v1758 = vmul.f32 %v1714, %v1757
      %v1759 = vmul.f32 %v1715, %v1757
      %v1760 = vmul.f32 %v1716, %v1757
      %v1761 = vmul.f32 %v1717, %v1757
      %v1762 = vmul.f32 %v1718, %v1757
      %v1763 = vmul.f32 %v1719, %v1757
      %v1764 = vmul.f32 %v1720, %v1757
      %v1765 = vmul.f32 %v1721, %v1757
      %v1766 = vmul.f32 %v1722, %v1757
      %v1767 = vmul.f32 %v1723, %v1757
      %v1768 = vmul.f32 %v1724, %v1757
      %v1769 = vmul.f32 %v1725, %v1757
      %v1770 = vmul.f32 %v1726, %v1757
      %v1771 = vmul.f32 %v1727, %v1757
      %v1772 = vmul.f32 %v1728, %v1757
      %v1773 = vmul.f32 %v1729, %v1757
      %v1790 = vrot.slane %v1758, 1
      %v1791 = vrot.slane %v1759, 1
      %v1792 = vsel %vm1386, %v1790, %v1791
      %v1793 = vrot.slane %v1760, 1
      %v1794 = vrot.slane %v1761, 1
      %v1795 = vsel %vm1386, %v1793, %v1794
      %v1796 = vrot.slane %v1762, 1
      %v1797 = vrot.slane %v1763, 1
      %v1798 = vsel %vm1386, %v1796, %v1797
      %v1799 = vrot.slane %v1764, 1
      %v1800 = vrot.slane %v1765, 1
      %v1801 = vsel %vm1386, %v1799, %v1800
      %v1802 = vrot.slane %v1766, 1
      %v1803 = vrot.slane %v1767, 1
      %v1804 = vsel %vm1386, %v1802, %v1803
      %v1805 = vrot.slane %v1768, 1
      %v1806 = vrot.slane %v1769, 1
      %v1807 = vsel %vm1386, %v1805, %v1806
      %v1808 = vrot.slane %v1770, 1
      %v1809 = vrot.slane %v1771, 1
      %v1810 = vsel %vm1386, %v1808, %v1809
      %v1811 = vrot.slane %v1772, 1
      %v1812 = vrot.slane %v1773, 1
      %v1813 = vsel %vm1386, %v1811, %v1812
      %v1822 = vadd.f32 %v1746, %v1792
      %v1823 = vadd.f32 %v1747, %v1795
      %v1824 = vadd.f32 %v1748, %v1798
      %v1825 = vadd.f32 %v1749, %v1801
      %v1826 = vadd.f32 %v1750, %v1804
      %v1827 = vadd.f32 %v1751, %v1807
      %v1828 = vadd.f32 %v1752, %v1810
      %v1829 = vadd.f32 %v1753, %v1813
      %v1830 = vlaneseq
      %v1831 = vshrl.u32 %v1830, 7
      %v1832 = vsub.s32 2, %v1831
      %v1833 = vrot.slane %v1702, %v1832
      %v1834 = vmul.f32 %v1714, %v1833
      %v1835 = vmul.f32 %v1715, %v1833
      %v1836 = vmul.f32 %v1716, %v1833
      %v1837 = vmul.f32 %v1717, %v1833
      %v1838 = vmul.f32 %v1718, %v1833
      %v1839 = vmul.f32 %v1719, %v1833
      %v1840 = vmul.f32 %v1720, %v1833
      %v1841 = vmul.f32 %v1721, %v1833
      %v1842 = vmul.f32 %v1722, %v1833
      %v1843 = vmul.f32 %v1723, %v1833
      %v1844 = vmul.f32 %v1724, %v1833
      %v1845 = vmul.f32 %v1725, %v1833
      %v1846 = vmul.f32 %v1726, %v1833
      %v1847 = vmul.f32 %v1727, %v1833
      %v1848 = vmul.f32 %v1728, %v1833
      %v1849 = vmul.f32 %v1729, %v1833
      %vm1866 = vcmask 1045504
      %v1867 = vrot.slane %v1834, 2
      %v1868 = vrot.slane %v1835, 2
      %v1869 = vsel %vm1866, %v1867, %v1868
      %v1870 = vrot.slane %v1836, 2
      %v1871 = vrot.slane %v1837, 2
      %v1872 = vsel %vm1866, %v1870, %v1871
      %v1873 = vrot.slane %v1838, 2
      %v1874 = vrot.slane %v1839, 2
      %v1875 = vsel %vm1866, %v1873, %v1874
      %v1876 = vrot.slane %v1840, 2
      %v1877 = vrot.slane %v1841, 2
      %v1878 = vsel %vm1866, %v1876, %v1877
      %v1879 = vrot.slane %v1842, 2
      %v1880 = vrot.slane %v1843, 2
      %v1881 = vsel %vm1866, %v1879, %v1880
      %v1882 = vrot.slane %v1844, 2
      %v1883 = vrot.slane %v1845, 2
      %v1884 = vsel %vm1866, %v1882, %v1883
      %v1885 = vrot.slane %v1846, 2
      %v1886 = vrot.slane %v1847, 2
      %v1887 = vsel %vm1866, %v1885, %v1886
      %v1888 = vrot.slane %v1848, 2
      %v1889 = vrot.slane %v1849, 2
      %v1890 = vsel %vm1866, %v1888, %v1889
      %v1899 = vadd.f32 %v1822, %v1869
      %v1900 = vadd.f32 %v1823, %v1872
      %v1901 = vadd.f32 %v1824, %v1875
      %v1902 = vadd.f32 %v1825, %v1878
      %v1903 = vadd.f32 %v1826, %v1881
      %v1904 = vadd.f32 %v1827, %v1884
      %v1905 = vadd.f32 %v1828, %v1887
      %v1906 = vadd.f32 %v1829, %v1890
      %v1907 = vlaneseq
      %v1908 = vshrl.u32 %v1907, 7
      %v1909 = vsub.s32 3, %v1908
      %v1910 = vrot.slane %v1702, %v1909
      %v1911 = vmul.f32 %v1716, %v1910
      %v1912 = vmul.f32 %v1718, %v1910
      %v1913 = vmul.f32 %v1720, %v1910
      %v1914 = vmul.f32 %v1722, %v1910
      %v1915 = vmul.f32 %v1724, %v1910
      %v1916 = vmul.f32 %v1726, %v1910
      %v1917 = vmul.f32 %v1728, %v1910
      %v1918 = vmul.f32 %v1730, %v1910
      %v1919 = vadd.f32 %v1899, %v1911
      %v1920 = vadd.f32 %v1900, %v1912
      %v1921 = vadd.f32 %v1901, %v1913
      %v1922 = vadd.f32 %v1902, %v1914
      %v1923 = vadd.f32 %v1903, %v1915
      %v1924 = vadd.f32 %v1904, %v1916
      %v1925 = vadd.f32 %v1905, %v1917
      %v1926 = vadd.f32 %v1906, %v1918
      %v1927 = vlaneseq
      %v1928 = vshrl.u32 %v1927, 7
      %v1929 = vsub.s32 4, %v1928
      %v1930 = vrot.slane %v1702, %v1929
      %v1931 = vmul.f32 %v1716, %v1930
      %v1932 = vmul.f32 %v1717, %v1930
      %v1933 = vmul.f32 %v1718, %v1930
      %v1934 = vmul.f32 %v1719, %v1930
      %v1935 = vmul.f32 %v1720, %v1930
      %v1936 = vmul.f32 %v1721, %v1930
      %v1937 = vmul.f32 %v1722, %v1930
      %v1938 = vmul.f32 %v1723, %v1930
      %v1939 = vmul.f32 %v1724, %v1930
      %v1940 = vmul.f32 %v1725, %v1930
      %v1941 = vmul.f32 %v1726, %v1930
      %v1942 = vmul.f32 %v1727, %v1930
      %v1943 = vmul.f32 %v1728, %v1930
      %v1944 = vmul.f32 %v1729, %v1930
      %v1945 = vmul.f32 %v1730, %v1930
      %v1946 = vmul.f32 %v1731, %v1930
      %v1963 = vrot.slane %v1931, 1
      %v1964 = vrot.slane %v1932, 1
      %v1965 = vsel %vm1386, %v1963, %v1964
      %v1966 = vrot.slane %v1933, 1
      %v1967 = vrot.slane %v1934, 1
      %v1968 = vsel %vm1386, %v1966, %v1967
      %v1969 = vrot.slane %v1935, 1
      %v1970 = vrot.slane %v1936, 1
      %v1971 = vsel %vm1386, %v1969, %v1970
      %v1972 = vrot.slane %v1937, 1
      %v1973 = vrot.slane %v1938, 1
      %v1974 = vsel %vm1386, %v1972, %v1973
      %v1975 = vrot.slane %v1939, 1
      %v1976 = vrot.slane %v1940, 1
      %v1977 = vsel %vm1386, %v1975, %v1976
      %v1978 = vrot.slane %v1941, 1
      %v1979 = vrot.slane %v1942, 1
      %v1980 = vsel %vm1386, %v1978, %v1979
      %v1981 = vrot.slane %v1943, 1
      %v1982 = vrot.slane %v1944, 1
      %v1983 = vsel %vm1386, %v1981, %v1982
      %v1984 = vrot.slane %v1945, 1
      %v1985 = vrot.slane %v1946, 1
      %v1986 = vsel %vm1386, %v1984, %v1985
      %v1995 = vadd.f32 %v1919, %v1965
      %v1996 = vadd.f32 %v1920, %v1968
      %v1997 = vadd.f32 %v1921, %v1971
      %v1998 = vadd.f32 %v1922, %v1974
      %v1999 = vadd.f32 %v1923, %v1977
      %v2000 = vadd.f32 %v1924, %v1980
      %v2001 = vadd.f32 %v1925, %v1983
      %v2002 = vadd.f32 %v1926, %v1986
      %v2003 = vlaneseq
      %v2004 = vshrl.u32 %v2003, 7
      %v2005 = vsub.s32 5, %v2004
      %v2006 = vrot.slane %v1702, %v2005
      %v2007 = vmul.f32 %v1716, %v2006
      %v2008 = vmul.f32 %v1717, %v2006
      %v2009 = vmul.f32 %v1718, %v2006
      %v2010 = vmul.f32 %v1719, %v2006
      %v2011 = vmul.f32 %v1720, %v2006
      %v2012 = vmul.f32 %v1721, %v2006
      %v2013 = vmul.f32 %v1722, %v2006
      %v2014 = vmul.f32 %v1723, %v2006
      %v2015 = vmul.f32 %v1724, %v2006
      %v2016 = vmul.f32 %v1725, %v2006
      %v2017 = vmul.f32 %v1726, %v2006
      %v2018 = vmul.f32 %v1727, %v2006
      %v2019 = vmul.f32 %v1728, %v2006
      %v2020 = vmul.f32 %v1729, %v2006
      %v2021 = vmul.f32 %v1730, %v2006
      %v2022 = vmul.f32 %v1731, %v2006
      %v2039 = vrot.slane %v2007, 2
      %v2040 = vrot.slane %v2008, 2
      %v2041 = vsel %vm1866, %v2039, %v2040
      %v2042 = vrot.slane %v2009, 2
      %v2043 = vrot.slane %v2010, 2
      %v2044 = vsel %vm1866, %v2042, %v2043
      %v2045 = vrot.slane %v2011, 2
      %v2046 = vrot.slane %v2012, 2
      %v2047 = vsel %vm1866, %v2045, %v2046
      %v2048 = vrot.slane %v2013, 2
      %v2049 = vrot.slane %v2014, 2
      %v2050 = vsel %vm1866, %v2048, %v2049
      %v2051 = vrot.slane %v2015, 2
      %v2052 = vrot.slane %v2016, 2
      %v2053 = vsel %vm1866, %v2051, %v2052
      %v2054 = vrot.slane %v2017, 2
      %v2055 = vrot.slane %v2018, 2
      %v2056 = vsel %vm1866, %v2054, %v2055
      %v2057 = vrot.slane %v2019, 2
      %v2058 = vrot.slane %v2020, 2
      %v2059 = vsel %vm1866, %v2057, %v2058
      %v2060 = vrot.slane %v2021, 2
      %v2061 = vrot.slane %v2022, 2
      %v2062 = vsel %vm1866, %v2060, %v2061
      %v2071 = vadd.f32 %v1995, %v2041
      %v2072 = vadd.f32 %v1996, %v2044
      %v2073 = vadd.f32 %v1997, %v2047
      %v2074 = vadd.f32 %v1998, %v2050
      %v2075 = vadd.f32 %v1999, %v2053
      %v2076 = vadd.f32 %v2000, %v2056
      %v2077 = vadd.f32 %v2001, %v2059
      %v2078 = vadd.f32 %v2002, %v2062
      %v2079 = vlaneseq
      %v2080 = vshrl.u32 %v2079, 7
      %v2081 = vsub.s32 6, %v2080
      %v2082 = vrot.slane %v1702, %v2081
      %v2083 = vmul.f32 %v1718, %v2082
      %v2084 = vmul.f32 %v1720, %v2082
      %v2085 = vmul.f32 %v1722, %v2082
      %v2086 = vmul.f32 %v1724, %v2082
      %v2087 = vmul.f32 %v1726, %v2082
      %v2088 = vmul.f32 %v1728, %v2082
      %v2089 = vmul.f32 %v1730, %v2082
      %v2090 = vmul.f32 %v1732, %v2082
      %v2091 = vadd.f32 %v2071, %v2083
      %v2092 = vadd.f32 %v2072, %v2084
      %v2093 = vadd.f32 %v2073, %v2085
      %v2094 = vadd.f32 %v2074, %v2086
      %v2095 = vadd.f32 %v2075, %v2087
      %v2096 = vadd.f32 %v2076, %v2088
      %v2097 = vadd.f32 %v2077, %v2089
      %v2098 = vadd.f32 %v2078, %v2090
      %v2099 = vlaneseq
      %v2100 = vshrl.u32 %v2099, 7
      %v2101 = vsub.s32 7, %v2100
      %v2102 = vrot.slane %v1702, %v2101
      %v2103 = vmul.f32 %v1718, %v2102
      %v2104 = vmul.f32 %v1719, %v2102
      %v2105 = vmul.f32 %v1720, %v2102
      %v2106 = vmul.f32 %v1721, %v2102
      %v2107 = vmul.f32 %v1722, %v2102
      %v2108 = vmul.f32 %v1723, %v2102
      %v2109 = vmul.f32 %v1724, %v2102
      %v2110 = vmul.f32 %v1725, %v2102
      %v2111 = vmul.f32 %v1726, %v2102
      %v2112 = vmul.f32 %v1727, %v2102
      %v2113 = vmul.f32 %v1728, %v2102
      %v2114 = vmul.f32 %v1729, %v2102
      %v2115 = vmul.f32 %v1730, %v2102
      %v2116 = vmul.f32 %v1731, %v2102
      %v2117 = vmul.f32 %v1732, %v2102
      %v2118 = vmul.f32 %v1733, %v2102
      %v2135 = vrot.slane %v2103, 1
      %v2136 = vrot.slane %v2104, 1
      %v2137 = vsel %vm1386, %v2135, %v2136
      %v2138 = vrot.slane %v2105, 1
      %v2139 = vrot.slane %v2106, 1
      %v2140 = vsel %vm1386, %v2138, %v2139
      %v2141 = vrot.slane %v2107, 1
      %v2142 = vrot.slane %v2108, 1
      %v2143 = vsel %vm1386, %v2141, %v2142
      %v2144 = vrot.slane %v2109, 1
      %v2145 = vrot.slane %v2110, 1
      %v2146 = vsel %vm1386, %v2144, %v2145
      %v2147 = vrot.slane %v2111, 1
      %v2148 = vrot.slane %v2112, 1
      %v2149 = vsel %vm1386, %v2147, %v2148
      %v2150 = vrot.slane %v2113, 1
      %v2151 = vrot.slane %v2114, 1
      %v2152 = vsel %vm1386, %v2150, %v2151
      %v2153 = vrot.slane %v2115, 1
      %v2154 = vrot.slane %v2116, 1
      %v2155 = vsel %vm1386, %v2153, %v2154
      %v2156 = vrot.slane %v2117, 1
      %v2157 = vrot.slane %v2118, 1
      %v2158 = vsel %vm1386, %v2156, %v2157
      %v2167 = vadd.f32 %v2091, %v2137
      %v2168 = vadd.f32 %v2092, %v2140
      %v2169 = vadd.f32 %v2093, %v2143
      %v2170 = vadd.f32 %v2094, %v2146
      %v2171 = vadd.f32 %v2095, %v2149
      %v2172 = vadd.f32 %v2096, %v2152
      %v2173 = vadd.f32 %v2097, %v2155
      %v2174 = vadd.f32 %v2098, %v2158
      %v2175 = vlaneseq
      %v2176 = vshrl.u32 %v2175, 7
      %v2177 = vsub.s32 0, %v2176
      %v2178 = vrot.slane %v1703, %v2177
      %v2179 = vmul.f32 %v1718, %v2178
      %v2180 = vmul.f32 %v1719, %v2178
      %v2181 = vmul.f32 %v1720, %v2178
      %v2182 = vmul.f32 %v1721, %v2178
      %v2183 = vmul.f32 %v1722, %v2178
      %v2184 = vmul.f32 %v1723, %v2178
      %v2185 = vmul.f32 %v1724, %v2178
      %v2186 = vmul.f32 %v1725, %v2178
      %v2187 = vmul.f32 %v1726, %v2178
      %v2188 = vmul.f32 %v1727, %v2178
      %v2189 = vmul.f32 %v1728, %v2178
      %v2190 = vmul.f32 %v1729, %v2178
      %v2191 = vmul.f32 %v1730, %v2178
      %v2192 = vmul.f32 %v1731, %v2178
      %v2193 = vmul.f32 %v1732, %v2178
      %v2194 = vmul.f32 %v1733, %v2178
      %v2211 = vrot.slane %v2179, 2
      %v2212 = vrot.slane %v2180, 2
      %v2213 = vsel %vm1866, %v2211, %v2212
      %v2214 = vrot.slane %v2181, 2
      %v2215 = vrot.slane %v2182, 2
      %v2216 = vsel %vm1866, %v2214, %v2215
      %v2217 = vrot.slane %v2183, 2
      %v2218 = vrot.slane %v2184, 2
      %v2219 = vsel %vm1866, %v2217, %v2218
      %v2220 = vrot.slane %v2185, 2
      %v2221 = vrot.slane %v2186, 2
      %v2222 = vsel %vm1866, %v2220, %v2221
      %v2223 = vrot.slane %v2187, 2
      %v2224 = vrot.slane %v2188, 2
      %v2225 = vsel %vm1866, %v2223, %v2224
      %v2226 = vrot.slane %v2189, 2
      %v2227 = vrot.slane %v2190, 2
      %v2228 = vsel %vm1866, %v2226, %v2227
      %v2229 = vrot.slane %v2191, 2
      %v2230 = vrot.slane %v2192, 2
      %v2231 = vsel %vm1866, %v2229, %v2230
      %v2232 = vrot.slane %v2193, 2
      %v2233 = vrot.slane %v2194, 2
      %v2234 = vsel %vm1866, %v2232, %v2233
      %v2243 = vadd.f32 %v2167, %v2213
      %v2244 = vadd.f32 %v2168, %v2216
      %v2245 = vadd.f32 %v2169, %v2219
      %v2246 = vadd.f32 %v2170, %v2222
      %v2247 = vadd.f32 %v2171, %v2225
      %v2248 = vadd.f32 %v2172, %v2228
      %v2249 = vadd.f32 %v2173, %v2231
      %v2250 = vadd.f32 %v2174, %v2234
      %v2252 = vlaneseq
      %v2253 = vshrl.u32 %v2252, 7
      %v2254 = vsub.s32 0, %v2253
      %v2255 = vrot.slane %v1704, %v2254
      %v2257 = vadd.f32 %v2243, %v2255
      %v2258 = vadd.f32 %v2244, %v2255
      %v2259 = vadd.f32 %v2245, %v2255
      %v2260 = vadd.f32 %v2246, %v2255
      %v2261 = vadd.f32 %v2247, %v2255
      %v2262 = vadd.f32 %v2248, %v2255
      %v2263 = vadd.f32 %v2249, %v2255
      %v2264 = vadd.f32 %v2250, %v2255
      %v2265 = vmax.f32 %v2257, 0.0
      %v2266 = vmax.f32 %v2258, 0.0
      %v2267 = vmax.f32 %v2259, 0.0
      %v2268 = vmax.f32 %v2260, 0.0
      %v2269 = vmax.f32 %v2261, 0.0
      %v2270 = vmax.f32 %v2262, 0.0
      %v2271 = vmax.f32 %v2263, 0.0
      %v2272 = vmax.f32 %v2264, 0.0
      %v2273 = vld [vmem:[%s8] sm:$0xff]
      %v2274 = vld [vmem:[%s8 + $0x8] sm:$0xff]
      %v2275 = vld [vmem:[%s8 + $0x10] sm:$0xff]
      %v2276 = vld [vmem:[%s9] sm:$0x1]
      %v2278 = vlaneseq
      %v2279 = vshrl.u32 %v2278, 7
      %v2280 = vsub.s32 0, %v2279
      %v2281 = vrot.slane %v2276, %v2280
      %v2284 = vsel %vm1135, %v2265, 0
      %2286 = vmatprep.subr.mxu0 0.0
      %2287 = vmatpush1.msra.mxu0 %v2273
      %2288 = vmatprep.subr.mxu0 0.0
      %2289 = vmatpush1.msra.mxu0 %v2274
      %2290 = vmatprep.subr.mxu0 0.0
      %2291 = vmatpush1.msra.mxu0 %v2275
      %2292 = vmatprep.subr.mxu0 0.0
      %2293 = vmatpush1.msra.mxu0 0.0
      %2294 = vmatprep.subr.mxu0 0.0
      %2295 = vmatpush1.msra.mxu0 0.0
      %2296 = vmatprep.subr.mxu0 0.0
      %2297 = vmatpush1.msra.mxu0 0.0
      %2298 = vmatprep.subr.mxu0 0.0
      %2299 = vmatpush1.msra.mxu0 0.0
      %2300 = vmatprep.subr.mxu0 0.0
      %2301 = vmatpush1.msra.mxu0 0.0
      %2302 = vmatprep.subr.mxu0 0.0
      %2303 = vmatpush1.msra.mxu0 0.0
      %2304 = vmatprep.subr.mxu0 0.0
      %2305 = vmatpush1.msra.mxu0 0.0
      %2306 = vmatprep.subr.mxu0 0.0
      %2307 = vmatpush1.msra.mxu0 0.0
      %2308 = vmatprep.subr.mxu0 0.0
      %2309 = vmatpush1.msra.mxu0 0.0
      %2310 = vmatprep.subr.mxu0 0.0
      %2311 = vmatpush1.msra.mxu0 0.0
      %2312 = vmatprep.subr.mxu0 0.0
      %2313 = vmatpush1.msra.mxu0 0.0
      %2314 = vmatprep.subr.mxu0 0.0
      %2315 = vmatpush1.msra.mxu0 0.0
      %2316 = vmatprep.subr.mxu0 0.0
      %2317 = vmatpush1.msra.mxu0 0.0
      %2318 = vmatprep.subr.mxu0 0.0
      %2319 = vmatpush1.msra.mxu0 0.0
      %2320 = vmatprep.subr.mxu0 0.0
      %2321 = vmatpush1.msra.mxu0 0.0
      %2322 = vmatprep.subr.mxu0 0.0
      %2323 = vmatpush1.msra.mxu0 0.0
      %2324 = vmatprep.subr.mxu0 0.0
      %2325 = vmatpush1.msra.mxu0 0.0
      %2326 = vmatprep.subr.mxu0 0.0
      %2327 = vmatpush1.msra.mxu0 0.0
      %2328 = vmatprep.subr.mxu0 0.0
      %2329 = vmatpush1.msra.mxu0 0.0
      %2330 = vmatprep.subr.mxu0 0.0
      %2331 = vmatpush1.msra.mxu0 0.0
      %2332 = vmatprep.subr.mxu0 0.0
      %2333 = vmatpush1.msra.mxu0 0.0
      %2334 = vmatprep.subr.mxu0 0.0
      %2335 = vmatpush1.msra.mxu0 0.0
      %2336 = vmatprep.subr.mxu0 0.0
      %2337 = vmatpush1.msra.mxu0 0.0
      %2338 = vmatprep.subr.mxu0 0.0
      %2339 = vmatpush1.msra.mxu0 0.0
      %2340 = vmatprep.subr.mxu0 0.0
      %2341 = vmatpush1.msra.mxu0 0.0
      %2342 = vmatprep.subr.mxu0 0.0
      %2343 = vmatpush1.msra.mxu0 0.0
      %2344 = vmatprep.subr.mxu0 0.0
      %2345 = vmatpush1.msra.mxu0 0.0
      %2346 = vmatprep.subr.mxu0 0.0
      %2347 = vmatpush1.msra.mxu0 0.0
      %2348 = vmatprep.subr.mxu0 0.0
      %2349 = vmatpush1.msra.mxu0 0.0
      %2350 = vmatprep.mubr.f32.mxu0 0.0
      %2351 = vmatmul.mubr.f32.gmra.mrb[0].mxu0 %v2284
      %v2352 = vpop.f32.mrb[0].mxu0
      %v2353 = vadd.f32 %v2281, %v2352
      %v2354 = vpop.f32.mrb[0].mxu0
      %2355 = vdwg.mxu0
      %vm2356 = vcmask 64512
      %2357 = vst.msk [vmem:[%s359] sm:$0xff] %vm2356, %v2353
      %v2359 = vsel %vm1135, %v2266, 0
      %2361 = vmatprep.subr.mxu0 0.0
      %2362 = vmatpush1.msra.mxu0 %v2273
      %2363 = vmatprep.subr.mxu0 0.0
      %2364 = vmatpush1.msra.mxu0 %v2274
      %2365 = vmatprep.subr.mxu0 0.0
      %2366 = vmatpush1.msra.mxu0 %v2275
      %2367 = vmatprep.subr.mxu0 0.0
      %2368 = vmatpush1.msra.mxu0 0.0
      %2369 = vmatprep.subr.mxu0 0.0
      %2370 = vmatpush1.msra.mxu0 0.0
      %2371 = vmatprep.subr.mxu0 0.0
      %2372 = vmatpush1.msra.mxu0 0.0
      %2373 = vmatprep.subr.mxu0 0.0
      %2374 = vmatpush1.msra.mxu0 0.0
      %2375 = vmatprep.subr.mxu0 0.0
      %2376 = vmatpush1.msra.mxu0 0.0
      %2377 = vmatprep.subr.mxu0 0.0
      %2378 = vmatpush1.msra.mxu0 0.0
      %2379 = vmatprep.subr.mxu0 0.0
      %2380 = vmatpush1.msra.mxu0 0.0
      %2381 = vmatprep.subr.mxu0 0.0
      %2382 = vmatpush1.msra.mxu0 0.0
      %2383 = vmatprep.subr.mxu0 0.0
      %2384 = vmatpush1.msra.mxu0 0.0
      %2385 = vmatprep.subr.mxu0 0.0
      %2386 = vmatpush1.msra.mxu0 0.0
      %2387 = vmatprep.subr.mxu0 0.0
      %2388 = vmatpush1.msra.mxu0 0.0
      %2389 = vmatprep.subr.mxu0 0.0
      %2390 = vmatpush1.msra.mxu0 0.0
      %2391 = vmatprep.subr.mxu0 0.0
      %2392 = vmatpush1.msra.mxu0 0.0
      %2393 = vmatprep.subr.mxu0 0.0
      %2394 = vmatpush1.msra.mxu0 0.0
      %2395 = vmatprep.subr.mxu0 0.0
      %2396 = vmatpush1.msra.mxu0 0.0
      %2397 = vmatprep.subr.mxu0 0.0
      %2398 = vmatpush1.msra.mxu0 0.0
      %2399 = vmatprep.subr.mxu0 0.0
      %2400 = vmatpush1.msra.mxu0 0.0
      %2401 = vmatprep.subr.mxu0 0.0
      %2402 = vmatpush1.msra.mxu0 0.0
      %2403 = vmatprep.subr.mxu0 0.0
      %2404 = vmatpush1.msra.mxu0 0.0
      %2405 = vmatprep.subr.mxu0 0.0
      %2406 = vmatpush1.msra.mxu0 0.0
      %2407 = vmatprep.subr.mxu0 0.0
      %2408 = vmatpush1.msra.mxu0 0.0
      %2409 = vmatprep.subr.mxu0 0.0
      %2410 = vmatpush1.msra.mxu0 0.0
      %2411 = vmatprep.subr.mxu0 0.0
      %2412 = vmatpush1.msra.mxu0 0.0
      %2413 = vmatprep.subr.mxu0 0.0
      %2414 = vmatpush1.msra.mxu0 0.0
      %2415 = vmatprep.subr.mxu0 0.0
      %2416 = vmatpush1.msra.mxu0 0.0
      %2417 = vmatprep.subr.mxu0 0.0
      %2418 = vmatpush1.msra.mxu0 0.0
      %2419 = vmatprep.subr.mxu0 0.0
      %2420 = vmatpush1.msra.mxu0 0.0
      %2421 = vmatprep.subr.mxu0 0.0
      %2422 = vmatpush1.msra.mxu0 0.0
      %2423 = vmatprep.subr.mxu0 0.0
      %2424 = vmatpush1.msra.mxu0 0.0
      %2425 = vmatprep.mubr.f32.mxu0 0.0
      %2426 = vmatmul.mubr.f32.gmra.mrb[0].mxu0 %v2359
      %v2427 = vpop.f32.mrb[0].mxu0
      %v2428 = vadd.f32 %v2281, %v2427
      %v2429 = vpop.f32.mrb[0].mxu0
      %2430 = vdwg.mxu0
      %s2431 = scalar_lea.vmem %s359, 8
      %2432 = vst.msk [vmem:[%s2431] sm:$0xff] %vm2356, %v2428
      %v2434 = vsel %vm1135, %v2267, 0
      %2436 = vmatprep.subr.mxu0 0.0
      %2437 = vmatpush1.msra.mxu0 %v2273
      %2438 = vmatprep.subr.mxu0 0.0
      %2439 = vmatpush1.msra.mxu0 %v2274
      %2440 = vmatprep.subr.mxu0 0.0
      %2441 = vmatpush1.msra.mxu0 %v2275
      %2442 = vmatprep.subr.mxu0 0.0
      %2443 = vmatpush1.msra.mxu0 0.0
      %2444 = vmatprep.subr.mxu0 0.0
      %2445 = vmatpush1.msra.mxu0 0.0
      %2446 = vmatprep.subr.mxu0 0.0
      %2447 = vmatpush1.msra.mxu0 0.0
      %2448 = vmatprep.subr.mxu0 0.0
      %2449 = vmatpush1.msra.mxu0 0.0
      %2450 = vmatprep.subr.mxu0 0.0
      %2451 = vmatpush1.msra.mxu0 0.0
      %2452 = vmatprep.subr.mxu0 0.0
      %2453 = vmatpush1.msra.mxu0 0.0
      %2454 = vmatprep.subr.mxu0 0.0
      %2455 = vmatpush1.msra.mxu0 0.0
      %2456 = vmatprep.subr.mxu0 0.0
      %2457 = vmatpush1.msra.mxu0 0.0
      %2458 = vmatprep.subr.mxu0 0.0
      %2459 = vmatpush1.msra.mxu0 0.0
      %2460 = vmatprep.subr.mxu0 0.0
      %2461 = vmatpush1.msra.mxu0 0.0
      %2462 = vmatprep.subr.mxu0 0.0
      %2463 = vmatpush1.msra.mxu0 0.0
      %2464 = vmatprep.subr.mxu0 0.0
      %2465 = vmatpush1.msra.mxu0 0.0
      %2466 = vmatprep.subr.mxu0 0.0
      %2467 = vmatpush1.msra.mxu0 0.0
      %2468 = vmatprep.subr.mxu0 0.0
      %2469 = vmatpush1.msra.mxu0 0.0
      %2470 = vmatprep.subr.mxu0 0.0
      %2471 = vmatpush1.msra.mxu0 0.0
      %2472 = vmatprep.subr.mxu0 0.0
      %2473 = vmatpush1.msra.mxu0 0.0
      %2474 = vmatprep.subr.mxu0 0.0
      %2475 = vmatpush1.msra.mxu0 0.0
      %2476 = vmatprep.subr.mxu0 0.0
      %2477 = vmatpush1.msra.mxu0 0.0
      %2478 = vmatprep.subr.mxu0 0.0
      %2479 = vmatpush1.msra.mxu0 0.0
      %2480 = vmatprep.subr.mxu0 0.0
      %2481 = vmatpush1.msra.mxu0 0.0
      %2482 = vmatprep.subr.mxu0 0.0
      %2483 = vmatpush1.msra.mxu0 0.0
      %2484 = vmatprep.subr.mxu0 0.0
      %2485 = vmatpush1.msra.mxu0 0.0
      %2486 = vmatprep.subr.mxu0 0.0
      %2487 = vmatpush1.msra.mxu0 0.0
      %2488 = vmatprep.subr.mxu0 0.0
      %2489 = vmatpush1.msra.mxu0 0.0
      %2490 = vmatprep.subr.mxu0 0.0
      %2491 = vmatpush1.msra.mxu0 0.0
      %2492 = vmatprep.subr.mxu0 0.0
      %2493 = vmatpush1.msra.mxu0 0.0
      %2494 = vmatprep.subr.mxu0 0.0
      %2495 = vmatpush1.msra.mxu0 0.0
      %2496 = vmatprep.subr.mxu0 0.0
      %2497 = vmatpush1.msra.mxu0 0.0
      %2498 = vmatprep.subr.mxu0 0.0
      %2499 = vmatpush1.msra.mxu0 0.0
      %2500 = vmatprep.mubr.f32.mxu0 0.0
      %2501 = vmatmul.mubr.f32.gmra.mrb[0].mxu0 %v2434
      %v2502 = vpop.f32.mrb[0].mxu0
      %v2503 = vadd.f32 %v2281, %v2502
      %v2504 = vpop.f32.mrb[0].mxu0
      %2505 = vdwg.mxu0
      %s2506 = scalar_lea.vmem %s359, 16
      %2507 = vst.msk [vmem:[%s2506] sm:$0xff] %vm2356, %v2503
      %v2509 = vsel %vm1135, %v2268, 0
      %2511 = vmatprep.subr.mxu0 0.0
      %2512 = vmatpush1.msra.mxu0 %v2273
      %2513 = vmatprep.subr.mxu0 0.0
      %2514 = vmatpush1.msra.mxu0 %v2274
      %2515 = vmatprep.subr.mxu0 0.0
      %2516 = vmatpush1.msra.mxu0 %v2275
      %2517 = vmatprep.subr.mxu0 0.0
      %2518 = vmatpush1.msra.mxu0 0.0
      %2519 = vmatprep.subr.mxu0 0.0
      %2520 = vmatpush1.msra.mxu0 0.0
      %2521 = vmatprep.subr.mxu0 0.0
      %2522 = vmatpush1.msra.mxu0 0.0
      %2523 = vmatprep.subr.mxu0 0.0
      %2524 = vmatpush1.msra.mxu0 0.0
      %2525 = vmatprep.subr.mxu0 0.0
      %2526 = vmatpush1.msra.mxu0 0.0
      %2527 = vmatprep.subr.mxu0 0.0
      %2528 = vmatpush1.msra.mxu0 0.0
      %2529 = vmatprep.subr.mxu0 0.0
      %2530 = vmatpush1.msra.mxu0 0.0
      %2531 = vmatprep.subr.mxu0 0.0
      %2532 = vmatpush1.msra.mxu0 0.0
      %2533 = vmatprep.subr.mxu0 0.0
      %2534 = vmatpush1.msra.mxu0 0.0
      %2535 = vmatprep.subr.mxu0 0.0
      %2536 = vmatpush1.msra.mxu0 0.0
      %2537 = vmatprep.subr.mxu0 0.0
      %2538 = vmatpush1.msra.mxu0 0.0
      %2539 = vmatprep.subr.mxu0 0.0
      %2540 = vmatpush1.msra.mxu0 0.0
      %2541 = vmatprep.subr.mxu0 0.0
      %2542 = vmatpush1.msra.mxu0 0.0
      %2543 = vmatprep.subr.mxu0 0.0
      %2544 = vmatpush1.msra.mxu0 0.0
      %2545 = vmatprep.subr.mxu0 0.0
      %2546 = vmatpush1.msra.mxu0 0.0
      %2547 = vmatprep.subr.mxu0 0.0
      %2548 = vmatpush1.msra.mxu0 0.0
      %2549 = vmatprep.subr.mxu0 0.0
      %2550 = vmatpush1.msra.mxu0 0.0
      %2551 = vmatprep.subr.mxu0 0.0
      %2552 = vmatpush1.msra.mxu0 0.0
      %2553 = vmatprep.subr.mxu0 0.0
      %2554 = vmatpush1.msra.mxu0 0.0
      %2555 = vmatprep.subr.mxu0 0.0
      %2556 = vmatpush1.msra.mxu0 0.0
      %2557 = vmatprep.subr.mxu0 0.0
      %2558 = vmatpush1.msra.mxu0 0.0
      %2559 = vmatprep.subr.mxu0 0.0
      %2560 = vmatpush1.msra.mxu0 0.0
      %2561 = vmatprep.subr.mxu0 0.0
      %2562 = vmatpush1.msra.mxu0 0.0
      %2563 = vmatprep.subr.mxu0 0.0
      %2564 = vmatpush1.msra.mxu0 0.0
      %2565 = vmatprep.subr.mxu0 0.0
      %2566 = vmatpush1.msra.mxu0 0.0
      %2567 = vmatprep.subr.mxu0 0.0
      %2568 = vmatpush1.msra.mxu0 0.0
      %2569 = vmatprep.subr.mxu0 0.0
      %2570 = vmatpush1.msra.mxu0 0.0
      %2571 = vmatprep.subr.mxu0 0.0
      %2572 = vmatpush1.msra.mxu0 0.0
      %2573 = vmatprep.subr.mxu0 0.0
      %2574 = vmatpush1.msra.mxu0 0.0
      %2575 = vmatprep.mubr.f32.mxu0 0.0
      %2576 = vmatmul.mubr.f32.gmra.mrb[0].mxu0 %v2509
      %v2577 = vpop.f32.mrb[0].mxu0
      %v2578 = vadd.f32 %v2281, %v2577
      %v2579 = vpop.f32.mrb[0].mxu0
      %2580 = vdwg.mxu0
      %s2581 = scalar_lea.vmem %s359, 24
      %2582 = vst.msk [vmem:[%s2581] sm:$0xff] %vm2356, %v2578
      %v2584 = vsel %vm1135, %v2269, 0
      %2586 = vmatprep.subr.mxu0 0.0
      %2587 = vmatpush1.msra.mxu0 %v2273
      %2588 = vmatprep.subr.mxu0 0.0
      %2589 = vmatpush1.msra.mxu0 %v2274
      %2590 = vmatprep.subr.mxu0 0.0
      %2591 = vmatpush1.msra.mxu0 %v2275
      %2592 = vmatprep.subr.mxu0 0.0
      %2593 = vmatpush1.msra.mxu0 0.0
      %2594 = vmatprep.subr.mxu0 0.0
      %2595 = vmatpush1.msra.mxu0 0.0
      %2596 = vmatprep.subr.mxu0 0.0
      %2597 = vmatpush1.msra.mxu0 0.0
      %2598 = vmatprep.subr.mxu0 0.0
      %2599 = vmatpush1.msra.mxu0 0.0
      %2600 = vmatprep.subr.mxu0 0.0
      %2601 = vmatpush1.msra.mxu0 0.0
      %2602 = vmatprep.subr.mxu0 0.0
      %2603 = vmatpush1.msra.mxu0 0.0
      %2604 = vmatprep.subr.mxu0 0.0
      %2605 = vmatpush1.msra.mxu0 0.0
      %2606 = vmatprep.subr.mxu0 0.0
      %2607 = vmatpush1.msra.mxu0 0.0
      %2608 = vmatprep.subr.mxu0 0.0
      %2609 = vmatpush1.msra.mxu0 0.0
      %2610 = vmatprep.subr.mxu0 0.0
      %2611 = vmatpush1.msra.mxu0 0.0
      %2612 = vmatprep.subr.mxu0 0.0
      %2613 = vmatpush1.msra.mxu0 0.0
      %2614 = vmatprep.subr.mxu0 0.0
      %2615 = vmatpush1.msra.mxu0 0.0
      %2616 = vmatprep.subr.mxu0 0.0
      %2617 = vmatpush1.msra.mxu0 0.0
      %2618 = vmatprep.subr.mxu0 0.0
      %2619 = vmatpush1.msra.mxu0 0.0
      %2620 = vmatprep.subr.mxu0 0.0
      %2621 = vmatpush1.msra.mxu0 0.0
      %2622 = vmatprep.subr.mxu0 0.0
      %2623 = vmatpush1.msra.mxu0 0.0
      %2624 = vmatprep.subr.mxu0 0.0
      %2625 = vmatpush1.msra.mxu0 0.0
      %2626 = vmatprep.subr.mxu0 0.0
      %2627 = vmatpush1.msra.mxu0 0.0
      %2628 = vmatprep.subr.mxu0 0.0
      %2629 = vmatpush1.msra.mxu0 0.0
      %2630 = vmatprep.subr.mxu0 0.0
      %2631 = vmatpush1.msra.mxu0 0.0
      %2632 = vmatprep.subr.mxu0 0.0
      %2633 = vmatpush1.msra.mxu0 0.0
      %2634 = vmatprep.subr.mxu0 0.0
      %2635 = vmatpush1.msra.mxu0 0.0
      %2636 = vmatprep.subr.mxu0 0.0
      %2637 = vmatpush1.msra.mxu0 0.0
      %2638 = vmatprep.subr.mxu0 0.0
      %2639 = vmatpush1.msra.mxu0 0.0
      %2640 = vmatprep.subr.mxu0 0.0
      %2641 = vmatpush1.msra.mxu0 0.0
      %2642 = vmatprep.subr.mxu0 0.0
      %2643 = vmatpush1.msra.mxu0 0.0
      %2644 = vmatprep.subr.mxu0 0.0
      %2645 = vmatpush1.msra.mxu0 0.0
      %2646 = vmatprep.subr.mxu0 0.0
      %2647 = vmatpush1.msra.mxu0 0.0
      %2648 = vmatprep.subr.mxu0 0.0
      %2649 = vmatpush1.msra.mxu0 0.0
      %2650 = vmatprep.mubr.f32.mxu0 0.0
      %2651 = vmatmul.mubr.f32.gmra.mrb[0].mxu0 %v2584
      %v2652 = vpop.f32.mrb[0].mxu0
      %v2653 = vadd.f32 %v2281, %v2652
      %v2654 = vpop.f32.mrb[0].mxu0
      %2655 = vdwg.mxu0
      %s2656 = scalar_lea.vmem %s359, 32
      %2657 = vst.msk [vmem:[%s2656] sm:$0xff] %vm2356, %v2653
      %v2659 = vsel %vm1135, %v2270, 0
      %2661 = vmatprep.subr.mxu0 0.0
      %2662 = vmatpush1.msra.mxu0 %v2273
      %2663 = vmatprep.subr.mxu0 0.0
      %2664 = vmatpush1.msra.mxu0 %v2274
      %2665 = vmatprep.subr.mxu0 0.0
      %2666 = vmatpush1.msra.mxu0 %v2275
      %2667 = vmatprep.subr.mxu0 0.0
      %2668 = vmatpush1.msra.mxu0 0.0
      %2669 = vmatprep.subr.mxu0 0.0
      %2670 = vmatpush1.msra.mxu0 0.0
      %2671 = vmatprep.subr.mxu0 0.0
      %2672 = vmatpush1.msra.mxu0 0.0
      %2673 = vmatprep.subr.mxu0 0.0
      %2674 = vmatpush1.msra.mxu0 0.0
      %2675 = vmatprep.subr.mxu0 0.0
      %2676 = vmatpush1.msra.mxu0 0.0
      %2677 = vmatprep.subr.mxu0 0.0
      %2678 = vmatpush1.msra.mxu0 0.0
      %2679 = vmatprep.subr.mxu0 0.0
      %2680 = vmatpush1.msra.mxu0 0.0
      %2681 = vmatprep.subr.mxu0 0.0
      %2682 = vmatpush1.msra.mxu0 0.0
      %2683 = vmatprep.subr.mxu0 0.0
      %2684 = vmatpush1.msra.mxu0 0.0
      %2685 = vmatprep.subr.mxu0 0.0
      %2686 = vmatpush1.msra.mxu0 0.0
      %2687 = vmatprep.subr.mxu0 0.0
      %2688 = vmatpush1.msra.mxu0 0.0
      %2689 = vmatprep.subr.mxu0 0.0
      %2690 = vmatpush1.msra.mxu0 0.0
      %2691 = vmatprep.subr.mxu0 0.0
      %2692 = vmatpush1.msra.mxu0 0.0
      %2693 = vmatprep.subr.mxu0 0.0
      %2694 = vmatpush1.msra.mxu0 0.0
      %2695 = vmatprep.subr.mxu0 0.0
      %2696 = vmatpush1.msra.mxu0 0.0
      %2697 = vmatprep.subr.mxu0 0.0
      %2698 = vmatpush1.msra.mxu0 0.0
      %2699 = vmatprep.subr.mxu0 0.0
      %2700 = vmatpush1.msra.mxu0 0.0
      %2701 = vmatprep.subr.mxu0 0.0
      %2702 = vmatpush1.msra.mxu0 0.0
      %2703 = vmatprep.subr.mxu0 0.0
      %2704 = vmatpush1.msra.mxu0 0.0
      %2705 = vmatprep.subr.mxu0 0.0
      %2706 = vmatpush1.msra.mxu0 0.0
      %2707 = vmatprep.subr.mxu0 0.0
      %2708 = vmatpush1.msra.mxu0 0.0
      %2709 = vmatprep.subr.mxu0 0.0
      %2710 = vmatpush1.msra.mxu0 0.0
      %2711 = vmatprep.subr.mxu0 0.0
      %2712 = vmatpush1.msra.mxu0 0.0
      %2713 = vmatprep.subr.mxu0 0.0
      %2714 = vmatpush1.msra.mxu0 0.0
      %2715 = vmatprep.subr.mxu0 0.0
      %2716 = vmatpush1.msra.mxu0 0.0
      %2717 = vmatprep.subr.mxu0 0.0
      %2718 = vmatpush1.msra.mxu0 0.0
      %2719 = vmatprep.subr.mxu0 0.0
      %2720 = vmatpush1.msra.mxu0 0.0
      %2721 = vmatprep.subr.mxu0 0.0
      %2722 = vmatpush1.msra.mxu0 0.0
      %2723 = vmatprep.subr.mxu0 0.0
      %2724 = vmatpush1.msra.mxu0 0.0
      %2725 = vmatprep.mubr.f32.mxu0 0.0
      %2726 = vmatmul.mubr.f32.gmra.mrb[0].mxu0 %v2659
      %v2727 = vpop.f32.mrb[0].mxu0
      %v2728 = vadd.f32 %v2281, %v2727
      %v2729 = vpop.f32.mrb[0].mxu0
      %2730 = vdwg.mxu0
      %s2731 = scalar_lea.vmem %s359, 40
      %2732 = vst.msk [vmem:[%s2731] sm:$0xff] %vm2356, %v2728
      %v2734 = vsel %vm1135, %v2271, 0
      %2736 = vmatprep.subr.mxu0 0.0
      %2737 = vmatpush1.msra.mxu0 %v2273
      %2738 = vmatprep.subr.mxu0 0.0
      %2739 = vmatpush1.msra.mxu0 %v2274
      %2740 = vmatprep.subr.mxu0 0.0
      %2741 = vmatpush1.msra.mxu0 %v2275
      %2742 = vmatprep.subr.mxu0 0.0
      %2743 = vmatpush1.msra.mxu0 0.0
      %2744 = vmatprep.subr.mxu0 0.0
      %2745 = vmatpush1.msra.mxu0 0.0
      %2746 = vmatprep.subr.mxu0 0.0
      %2747 = vmatpush1.msra.mxu0 0.0
      %2748 = vmatprep.subr.mxu0 0.0
      %2749 = vmatpush1.msra.mxu0 0.0
      %2750 = vmatprep.subr.mxu0 0.0
      %2751 = vmatpush1.msra.mxu0 0.0
      %2752 = vmatprep.subr.mxu0 0.0
      %2753 = vmatpush1.msra.mxu0 0.0
      %2754 = vmatprep.subr.mxu0 0.0
      %2755 = vmatpush1.msra.mxu0 0.0
      %2756 = vmatprep.subr.mxu0 0.0
      %2757 = vmatpush1.msra.mxu0 0.0
      %2758 = vmatprep.subr.mxu0 0.0
      %2759 = vmatpush1.msra.mxu0 0.0
      %2760 = vmatprep.subr.mxu0 0.0
      %2761 = vmatpush1.msra.mxu0 0.0
      %2762 = vmatprep.subr.mxu0 0.0
      %2763 = vmatpush1.msra.mxu0 0.0
      %2764 = vmatprep.subr.mxu0 0.0
      %2765 = vmatpush1.msra.mxu0 0.0
      %2766 = vmatprep.subr.mxu0 0.0
      %2767 = vmatpush1.msra.mxu0 0.0
      %2768 = vmatprep.subr.mxu0 0.0
      %2769 = vmatpush1.msra.mxu0 0.0
      %2770 = vmatprep.subr.mxu0 0.0
      %2771 = vmatpush1.msra.mxu0 0.0
      %2772 = vmatprep.subr.mxu0 0.0
      %2773 = vmatpush1.msra.mxu0 0.0
      %2774 = vmatprep.subr.mxu0 0.0
      %2775 = vmatpush1.msra.mxu0 0.0
      %2776 = vmatprep.subr.mxu0 0.0
      %2777 = vmatpush1.msra.mxu0 0.0
      %2778 = vmatprep.subr.mxu0 0.0
      %2779 = vmatpush1.msra.mxu0 0.0
      %2780 = vmatprep.subr.mxu0 0.0
      %2781 = vmatpush1.msra.mxu0 0.0
      %2782 = vmatprep.subr.mxu0 0.0
      %2783 = vmatpush1.msra.mxu0 0.0
      %2784 = vmatprep.subr.mxu0 0.0
      %2785 = vmatpush1.msra.mxu0 0.0
      %2786 = vmatprep.subr.mxu0 0.0
      %2787 = vmatpush1.msra.mxu0 0.0
      %2788 = vmatprep.subr.mxu0 0.0
      %2789 = vmatpush1.msra.mxu0 0.0
      %2790 = vmatprep.subr.mxu0 0.0
      %2791 = vmatpush1.msra.mxu0 0.0
      %2792 = vmatprep.subr.mxu0 0.0
      %2793 = vmatpush1.msra.mxu0 0.0
      %2794 = vmatprep.subr.mxu0 0.0
      %2795 = vmatpush1.msra.mxu0 0.0
      %2796 = vmatprep.subr.mxu0 0.0
      %2797 = vmatpush1.msra.mxu0 0.0
      %2798 = vmatprep.subr.mxu0 0.0
      %2799 = vmatpush1.msra.mxu0 0.0
      %2800 = vmatprep.mubr.f32.mxu0 0.0
      %2801 = vmatmul.mubr.f32.gmra.mrb[0].mxu0 %v2734
      %v2802 = vpop.f32.mrb[0].mxu0
      %v2803 = vadd.f32 %v2281, %v2802
      %v2804 = vpop.f32.mrb[0].mxu0
      %2805 = vdwg.mxu0
      %s2806 = scalar_lea.vmem %s359, 48
      %2807 = vst.msk [vmem:[%s2806] sm:$0xff] %vm2356, %v2803
      %v2809 = vsel %vm1135, %v2272, 0
      %2811 = vmatprep.subr.mxu0 0.0
      %2812 = vmatpush1.msra.mxu0 %v2273
      %2813 = vmatprep.subr.mxu0 0.0
      %2814 = vmatpush1.msra.mxu0 %v2274
      %2815 = vmatprep.subr.mxu0 0.0
      %2816 = vmatpush1.msra.mxu0 %v2275
      %2817 = vmatprep.subr.mxu0 0.0
      %2818 = vmatpush1.msra.mxu0 0.0
      %2819 = vmatprep.subr.mxu0 0.0
      %2820 = vmatpush1.msra.mxu0 0.0
      %2821 = vmatprep.subr.mxu0 0.0
      %2822 = vmatpush1.msra.mxu0 0.0
      %2823 = vmatprep.subr.mxu0 0.0
      %2824 = vmatpush1.msra.mxu0 0.0
      %2825 = vmatprep.subr.mxu0 0.0
      %2826 = vmatpush1.msra.mxu0 0.0
      %2827 = vmatprep.subr.mxu0 0.0
      %2828 = vmatpush1.msra.mxu0 0.0
      %2829 = vmatprep.subr.mxu0 0.0
      %2830 = vmatpush1.msra.mxu0 0.0
      %2831 = vmatprep.subr.mxu0 0.0
      %2832 = vmatpush1.msra.mxu0 0.0
      %2833 = vmatprep.subr.mxu0 0.0
      %2834 = vmatpush1.msra.mxu0 0.0
      %2835 = vmatprep.subr.mxu0 0.0
      %2836 = vmatpush1.msra.mxu0 0.0
      %2837 = vmatprep.subr.mxu0 0.0
      %2838 = vmatpush1.msra.mxu0 0.0
      %2839 = vmatprep.subr.mxu0 0.0
      %2840 = vmatpush1.msra.mxu0 0.0
      %2841 = vmatprep.subr.mxu0 0.0
      %2842 = vmatpush1.msra.mxu0 0.0
      %2843 = vmatprep.subr.mxu0 0.0
      %2844 = vmatpush1.msra.mxu0 0.0
      %2845 = vmatprep.subr.mxu0 0.0
      %2846 = vmatpush1.msra.mxu0 0.0
      %2847 = vmatprep.subr.mxu0 0.0
      %2848 = vmatpush1.msra.mxu0 0.0
      %2849 = vmatprep.subr.mxu0 0.0
      %2850 = vmatpush1.msra.mxu0 0.0
      %2851 = vmatprep.subr.mxu0 0.0
      %2852 = vmatpush1.msra.mxu0 0.0
      %2853 = vmatprep.subr.mxu0 0.0
      %2854 = vmatpush1.msra.mxu0 0.0
      %2855 = vmatprep.subr.mxu0 0.0
      %2856 = vmatpush1.msra.mxu0 0.0
      %2857 = vmatprep.subr.mxu0 0.0
      %2858 = vmatpush1.msra.mxu0 0.0
      %2859 = vmatprep.subr.mxu0 0.0
      %2860 = vmatpush1.msra.mxu0 0.0
      %2861 = vmatprep.subr.mxu0 0.0
      %2862 = vmatpush1.msra.mxu0 0.0
      %2863 = vmatprep.subr.mxu0 0.0
      %2864 = vmatpush1.msra.mxu0 0.0
      %2865 = vmatprep.subr.mxu0 0.0
      %2866 = vmatpush1.msra.mxu0 0.0
      %2867 = vmatprep.subr.mxu0 0.0
      %2868 = vmatpush1.msra.mxu0 0.0
      %2869 = vmatprep.subr.mxu0 0.0
      %2870 = vmatpush1.msra.mxu0 0.0
      %2871 = vmatprep.subr.mxu0 0.0
      %2872 = vmatpush1.msra.mxu0 0.0
      %2873 = vmatprep.subr.mxu0 0.0
      %2874 = vmatpush1.msra.mxu0 0.0
      %2875 = vmatprep.mubr.f32.mxu0 0.0
      %2876 = vmatmul.mubr.f32.gmra.mrb[0].mxu0 %v2809
      %v2877 = vpop.f32.mrb[0].mxu0
      %v2878 = vadd.f32 %v2281, %v2877
      %v2879 = vpop.f32.mrb[0].mxu0
      %2880 = vdwg.mxu0
      %s2881 = scalar_lea.vmem %s359, 56
      %2882 = vst.msk [vmem:[%s2881] sm:$0xff] %vm2356, %v2878
      %p2883 = scmp.lt.s32.totalorder %s21, 1
      %s2884 = scalar_select %p2883, %s21, 1
      %s2885 = smul.addr %s2884, 8
      %s2886 = smul.addr %s2885, 8
      %s2887 = scalar_lea.vmem %s10, %s2886
      // Predicated region
      $region61: #{mbconv_forward.1} parent=59 // pred_check
        %p2888 = pneg %p254
      $region62: #{mbconv_forward.1} parent=59 // pred_check_branch
        %2890 = sbr.rel (%p2888) target = $region64
      $region63: #{mbconv_forward.1} parent=59 // pred_region
        _
      $region64: #{mbconv_forward.1} parent=59 // pred_fallthru
        _
    $region60: #{mbconv_forward.1} parent=5 // pred_fallthru
      _
    %p2891 = scmp.le.s32.totalorder 2, %s16
    // Predicated region
    $region65: #{mbconv_forward.1} parent=5 // pred_check
      %p2892 = pneg %p2891
    $region66: #{mbconv_forward.1} parent=5 // pred_check_branch
      %2894 = sbr.rel (%p2892) target = $region68
    $region67: #{mbconv_forward.1} parent=5 // pred_region
      %s2895 = ssub.s32 %s16, 2
      // Predicated region
      $region69: #{mbconv_forward.1} parent=67 // pred_check
        %p2896 = pneg %p260
      $region70: #{mbconv_forward.1} parent=67 // pred_check_branch
        %2898 = sbr.rel (%p2896) target = $region72
      $region71: #{mbconv_forward.1} parent=67 // pred_region
        %p2899 = scmp.lt.s32.totalorder %s22, 1
        %s2900 = scalar_select %p2899, %s22, 1
        %s2901 = smul.addr %s2900, 8
        %s2902 = smul.addr %s2901, 8
        %s2903 = scalar_lea.vmem %s10, %s2902
      $region72: #{mbconv_forward.1} parent=67 // pred_fallthru
        _
    $region68: #{mbconv_forward.1} parent=5 // pred_fallthru
      _
  $region6: #{mbconv_forward.1} parent=0 // loop_footer
    %s20 = sadd.s32 1, %s16
  $region7: #{mbconv_forward.1} parent=0 // loop_footer_branch
    %15 = sbr.rel target = $region3
  $region8: #{mbconv_forward.1} parent=0 // loop_exit
    _

</llo_original>
